<compile_context>
chip_gen: v6e
topology: v6e:2x2x1
jax: 0.10.0
libtpu: 0.0.40
codegen_flags: <defaults>
</compile_context>

<pallas_src>
import functools
import numpy as np
import jax
import jax.numpy as jnp
from jax import lax
from jax.experimental import pallas as pl
from jax.experimental.pallas import tpu as pltpu

# ------------------------- cfg (py-faster-rcnn defaults) -------------------------
RPN_NEGATIVE_OVERLAP = 0.3
RPN_POSITIVE_OVERLAP = 0.7
RPN_FG_FRACTION = 0.5
RPN_BATCHSIZE = 256
RPN_BBOX_INSIDE_WEIGHT = 1.0          # RPN_BBOX_INSIDE_WEIGHTS[0]
RPN_POSITIVE_WEIGHT = -1.0            # < 0 -> uniform 1/num_examples weighting
RPN_CLOBBER_POSITIVES = False
ALLOWED_BORDER = 0

SUBLANES = 8
LANES = 128
PACK = SUBLANES * LANES               # 1024 anchors per vreg-aligned packet
MAX_TILE_PACKS = 4                    # tile <= 4096 anchors (review: 2048-8192 lanes)

GC = 8                                # per-gt SMEM channels: x1,y1,x2,y2,area,zero,gt_max,pad


# ------------------------- generate_anchors (numpy, glue) -------------------------
def _whctrs(anchor):
    w = anchor[2] - anchor[0] + 1
    h = anchor[3] - anchor[1] + 1
    x_ctr = anchor[0] + 0.5 * (w - 1)
    y_ctr = anchor[1] + 0.5 * (h - 1)
    return w, h, x_ctr, y_ctr


def _mkanchors(ws, hs, x_ctr, y_ctr):
    ws = ws[:, np.newaxis]
    hs = hs[:, np.newaxis]
    return np.hstack((x_ctr - 0.5 * (ws - 1), y_ctr - 0.5 * (hs - 1),
                      x_ctr + 0.5 * (ws - 1), y_ctr + 0.5 * (hs - 1)))


def _ratio_enum(anchor, ratios):
    w, h, x_ctr, y_ctr = _whctrs(anchor)
    size = w * h
    size_ratios = size / ratios
    ws = np.round(np.sqrt(size_ratios))
    hs = np.round(ws * ratios)
    return _mkanchors(ws, hs, x_ctr, y_ctr)


def _scale_enum(anchor, scales):
    w, h, x_ctr, y_ctr = _whctrs(anchor)
    ws = w * scales
    hs = h * scales
    return _mkanchors(ws, hs, x_ctr, y_ctr)


def generate_anchors(base_size=16, ratios=(0.5, 1, 2), scales=(8, 16, 32)):
    ratios = np.array(ratios, dtype=np.float64)
    scales = np.array(scales, dtype=np.float64)
    base_anchor = np.array([1, 1, base_size, base_size], dtype=np.float64) - 1
    ratio_anchors = _ratio_enum(base_anchor, ratios)
    anchors = np.vstack([_scale_enum(ratio_anchors[i, :], scales)
                         for i in range(ratio_anchors.shape[0])])
    return anchors


# ------------------------- shared in-kernel IoU helper -------------------------
def _iou_vs_gt(ax1, ay1, ax2, ay2, a_area, gx1, gy1, gx2, gy2, g_area, g_zero):
    """IoU of every anchor in the (8, T8) tile against one gt box (scalars).

    Matches bbox_overlaps_batch: zero-padded gt boxes (w==1 & h==1) get overlap 0.
    (The 'zero-area anchor -> -1' branch is dropped: generated anchors are never
    zero-area and zero padding anchors are masked invalid downstream.)
    Used by BOTH kernels so `ov == gt_max` compares bit-identical values.
    """
    iw = jnp.minimum(ax2, gx2) - jnp.maximum(ax1, gx1) + 1.0
    iw = jnp.maximum(iw, 0.0)
    ih = jnp.minimum(ay2, gy2) - jnp.maximum(ay1, gy1) + 1.0
    ih = jnp.maximum(ih, 0.0)
    inter = iw * ih
    ua = a_area + g_area - inter
    ov = inter * pl.reciprocal(ua, approx=False)
    return jnp.where(g_zero > 0.0, 0.0, ov)


# ------------------------- Pallas kernel #1: per-gt max IoU (cross-tile accumulator) ----
def _make_gtmax_kernel(G, gc):
    def kernel(gt_sm_ref, anchors_ref, valid_ref, gtmax_ref):
        b = pl.program_id(0)
        t = pl.program_id(1)

        @pl.when(t == 0)
        def _init():
            gtmax_ref[...] = jnp.full(gtmax_ref.shape, -1.0, dtype=jnp.float32)

        ax1 = anchors_ref[0]
        ay1 = anchors_ref[1]
        ax2 = anchors_ref[2]
        ay2 = anchors_ref[3]                       # (8, T8)
        validb = valid_ref[...] > 0.0
        aw = ax2 - ax1 + 1.0
        ah = ay2 - ay1 + 1.0
        a_area = aw * ah

        for g in range(G):                         # G is small & static -> unrolled
            base = g * gc
            gx1 = gt_sm_ref[b, base + 0]
            gy1 = gt_sm_ref[b, base + 1]
            gx2 = gt_sm_ref[b, base + 2]
            gy2 = gt_sm_ref[b, base + 3]
            g_area = gt_sm_ref[b, base + 4]
            g_zero = gt_sm_ref[b, base + 5]
            ov = _iou_vs_gt(ax1, ay1, ax2, ay2, a_area,
                            gx1, gy1, gx2, gy2, g_area, g_zero)
            ov_in = jnp.where(validb, ov, -1.0)    # only inside anchors count
            mg = jnp.max(ov_in, keepdims=True)     # (1, 1) tile-local max for gt g
            cur = gtmax_ref[0, g:g + 1, 0:1]
            gtmax_ref[0, g:g + 1, 0:1] = jnp.maximum(cur, mg)

    return kernel


# ------------------------- Pallas kernel #2: labels + bbox regression targets ----------
def _make_assign_kernel(G, gc):
    def kernel(gt_sm_ref, anchors_ref, valid_ref, labels_ref, targets_ref):
        b = pl.program_id(0)

        ax1 = anchors_ref[0]
        ay1 = anchors_ref[1]
        ax2 = anchors_ref[2]
        ay2 = anchors_ref[3]                       # (8, T8) sublane-dense
        validb = valid_ref[...] > 0.0
        aw = ax2 - ax1 + 1.0
        ah = ay2 - ay1 + 1.0
        a_area = aw * ah

        max_ov = None
        sel_x1 = sel_y1 = sel_x2 = sel_y2 = None
        keep_any = jnp.zeros(ax1.shape, dtype=jnp.bool_)

        for g in range(G):                         # unrolled loop over gt boxes
            base = g * gc
            gx1 = gt_sm_ref[b, base + 0]
            gy1 = gt_sm_ref[b, base + 1]
            gx2 = gt_sm_ref[b, base + 2]
            gy2 = gt_sm_ref[b, base + 3]
            g_area = gt_sm_ref[b, base + 4]
            g_zero = gt_sm_ref[b, base + 5]
            g_max = gt_sm_ref[b, base + 6]         # per-gt max IoU from pass 1

            ov = _iou_vs_gt(ax1, ay1, ax2, ay2, a_area,
                            gx1, gy1, gx2, gy2, g_area, g_zero)
            ov_in = jnp.where(validb, ov, -1.0)
            keep_any = jnp.logical_or(keep_any, ov_in == g_max)

            if g == 0:                             # running max / argmax-gather
                max_ov = ov
                sel_x1 = jnp.broadcast_to(gx1, ov.shape)
                sel_y1 = jnp.broadcast_to(gy1, ov.shape)
                sel_x2 = jnp.broadcast_to(gx2, ov.shape)
                sel_y2 = jnp.broadcast_to(gy2, ov.shape)
            else:
                better = ov > max_ov               # strict > == first-max tie break
                max_ov = jnp.where(better, ov, max_ov)
                sel_x1 = jnp.where(better, gx1, sel_x1)
                sel_y1 = jnp.where(better, gy1, sel_y1)
                sel_x2 = jnp.where(better, gx2, sel_x2)
                sel_y2 = jnp.where(better, gy2, sel_y2)

        # --- labels (RPN_CLOBBER_POSITIVES == False ordering) ---
        labels = jnp.full(ax1.shape, -1.0, jnp.float32)
        labels = jnp.where(max_ov < RPN_NEGATIVE_OVERLAP, 0.0, labels)
        labels = jnp.where(keep_any, 1.0, labels)
        labels = jnp.where(max_ov >= RPN_POSITIVE_OVERLAP, 1.0, labels)
        labels = jnp.where(validb, labels, -1.0)   # _unmap fill = -1 for outside anchors
        labels_ref[0] = labels

        # --- bbox_transform_batch on the argmax gt box ---
        inv_aw = pl.reciprocal(aw, approx=False)
        inv_ah = pl.reciprocal(ah, approx=False)
        ex_cx = ax1 + 0.5 * aw
        ex_cy = ay1 + 0.5 * ah
        tw = sel_x2 - sel_x1 + 1.0
        th = sel_y2 - sel_y1 + 1.0
        tcx = sel_x1 + 0.5 * tw
        tcy = sel_y1 + 0.5 * th
        dx = (tcx - ex_cx) * inv_aw
        dy = (tcy - ex_cy) * inv_ah
        dw = jnp.log(tw * inv_aw)
        dh = jnp.log(th * inv_ah)
        zero = jnp.zeros_like(dx)
        targets_ref[0, 0] = jnp.where(validb, dx, zero)   # _unmap fill = 0
        targets_ref[0, 1] = jnp.where(validb, dy, zero)
        targets_ref[0, 2] = jnp.where(validb, dw, zero)
        targets_ref[0, 3] = jnp.where(validb, dh, zero)

    return kernel


# ------------------------- wrapper -------------------------
def anchor_target_forward(rpn_cls_score, gt_boxes, im_info, num_boxes,
                          feat_stride=16, scales=(8, 16, 32), ratios=(0.5, 1.0, 2.0),
                          rng_key=None):
    del num_boxes  # unused by the reference forward pass as well
    B, G = gt_boxes.shape[0], gt_boxes.shape[1]
    H, W = rpn_cls_score.shape[2], rpn_cls_score.shape[3]
    A = len(scales) * len(ratios)
    N = H * W * A

    # ---- anchor-axis tiling (bounded VMEM, pipelined DMA, both TCs busy) ----
    n_pack = -(-N // PACK)
    tile_packs = min(n_pack, MAX_TILE_PACKS)
    n_pack = -(-n_pack // tile_packs) * tile_packs
    Np = n_pack * PACK
    TILE = tile_packs * PACK
    T8 = TILE // SUBLANES
    Nt = Np // TILE
    Np8 = Np // SUBLANES

    # ---- static anchor grid (numpy), packed sublane-dense: n = t*TILE + s*T8 + l ----
    base = generate_anchors(scales=np.array(scales), ratios=np.array(ratios)).astype(np.float32)
    shift_x = np.arange(0, W) * feat_stride
    shift_y = np.arange(0, H) * feat_stride
    sx, sy = np.meshgrid(shift_x, shift_y)
    shifts = np.stack([sx.ravel(), sy.ravel(), sx.ravel(), sy.ravel()], axis=1).astype(np.float32)
    all_anchors = (base[None, :, :] + shifts[:, None, :]).reshape(N, 4)
    anchors_pad = np.zeros((Np, 4), np.float32)
    anchors_pad[:N] = all_anchors
    a_packed = np.ascontiguousarray(
        anchors_pad.T.reshape(4, Nt, SUBLANES, T8).transpose(0, 2, 1, 3).reshape(4, SUBLANES, Np8))
    anchors_packed = jnp.asarray(a_packed)                 # (4, 8, Np/8)
    anchors_flat = jnp.asarray(anchors_pad)                # (Np, 4)

    # ---- inside-image mask (replaces torch.nonzero + _unmap).
    # NOTE: uses im_info[0] for every batch element, matching the reference's quirk. ----
    img_h = jnp.floor(im_info[0, 0])
    img_w = jnp.floor(im_info[0, 1])
    inside = ((anchors_flat[:, 0] >= -ALLOWED_BORDER) &
              (anchors_flat[:, 1] >= -ALLOWED_BORDER) &
              (anchors_flat[:, 2] < img_w + ALLOWED_BORDER) &
              (anchors_flat[:, 3] < img_h + ALLOWED_BORDER) &
              (jnp.arange(Np) < N))
    valid_packed = (inside.astype(jnp.float32)
                    .reshape(Nt, SUBLANES, T8).transpose(1, 0, 2).reshape(SUBLANES, Np8))

    # ---- per-gt scalar table (SMEM) ----
    gt = gt_boxes.astype(jnp.float32)
    gx1, gy1, gx2, gy2 = gt[..., 0], gt[..., 1], gt[..., 2], gt[..., 3]
    gw = gx2 - gx1 + 1.0
    gh = gy2 - gy1 + 1.0
    g_area = gw * gh
    g_zero = jnp.logical_and(gw == 1.0, gh == 1.0).astype(jnp.float32)
    zeros_g = jnp.zeros_like(gx1)
    gt_sm1 = jnp.stack([gx1, gy1, gx2, gy2, g_area, g_zero, zeros_g, zeros_g],
                       axis=-1).reshape(B, G * GC)

    common_in_specs = [
        pl.BlockSpec(memory_space=pltpu.MemorySpace.SMEM),          # per-gt scalar table
        pl.BlockSpec((4, SUBLANES, T8), lambda b, t: (0, 0, t)),    # packed anchors
        pl.BlockSpec((SUBLANES, T8), lambda b, t: (0, t)),          # packed valid mask
    ]

    # ---- pass 1: per-gt max IoU over inside anchors (accumulated across tiles) ----
    gtmax_raw = pl.pallas_call(
        _make_gtmax_kernel(G, GC),
        out_shape=jax.ShapeDtypeStruct((B, G, LANES), jnp.float32),
        grid=(B, Nt),
        in_specs=common_in_specs,
        out_specs=pl.BlockSpec((1, G, LANES), lambda b, t: (b, 0, 0)),
        compiler_params=pltpu.CompilerParams(
            dimension_semantics=("parallel", "arbitrary")),
    )(gt_sm1, anchors_packed, valid_packed)
    gt_max = gtmax_raw[:, :, 0]                                     # (B, G)
    gt_max = jnp.where(gt_max == 0.0, 1e-5, gt_max)
    gt_sm2 = jnp.stack([gx1, gy1, gx2, gy2, g_area, g_zero, gt_max, zeros_g],
                       axis=-1).reshape(B, G * GC)

    # ---- pass 2: labels + bbox regression targets ----
    labels_packed, targets_packed = pl.pallas_call(
        _make_assign_kernel(G, GC),
        out_shape=(jax.ShapeDtypeStruct((B, SUBLANES, Np8), jnp.float32),
                   jax.ShapeDtypeStruct((B, 4, SUBLANES, Np8), jnp.float32)),
        grid=(B, Nt),
        in_specs=common_in_specs,
        out_specs=(pl.BlockSpec((1, SUBLANES, T8), lambda b, t: (b, 0, t)),
                   pl.BlockSpec((1, 4, SUBLANES, T8), lambda b, t: (b, 0, 0, t))),
        compiler_params=pltpu.CompilerParams(
            dimension_semantics=("parallel", "parallel")),
    )(gt_sm2, anchors_packed, valid_packed)

    # ---- unpack the sublane-packed layout back to anchor order ----
    labels = (labels_packed.reshape(B, SUBLANES, Nt, T8)
              .transpose(0, 2, 1, 3).reshape(B, Np))                # (B, Np)
    targets = (targets_packed.reshape(B, 4, SUBLANES, Nt, T8)
               .transpose(0, 3, 2, 4, 1).reshape(B, Np, 4))         # (B, Np, 4)

    # ---- fg / bg subsampling via top_k thresholds (replaces 4 full argsorts) ----
    # TODO(synk): the reference uses per-image np.random.permutation over nonzero()
    # indices; this keeps the same counts with a different RNG stream.
    num_fg = int(RPN_FG_FRACTION * RPN_BATCHSIZE)
    if rng_key is None:
        rng_key = jax.random.PRNGKey(0)
    kf, kb = jax.random.split(rng_key)
    neg_inf = jnp.float32(-jnp.inf)

    fg_mask = labels == 1.0
    fg_sc = jnp.where(fg_mask, jax.random.uniform(kf, (B, Np)), neg_inf)
    kfg = min(num_fg, Np)
    fg_thresh = lax.top_k(fg_sc, kfg)[0][:, kfg - 1:kfg]            # (B, 1)
    labels = jnp.where(fg_mask & (fg_sc < fg_thresh), -1.0, labels)

    num_bg = (RPN_BATCHSIZE - jnp.sum(labels == 1.0, axis=1)).astype(jnp.int32)   # (B,)
    bg_mask = labels == 0.0
    bg_sc = jnp.where(bg_mask, jax.random.uniform(kb, (B, Np)), neg_inf)
    kbg = min(RPN_BATCHSIZE, Np)
    bg_top = lax.top_k(bg_sc, kbg)[0]                               # (B, kbg)
    bg_idx = jnp.clip(num_bg - 1, 0, kbg - 1)[:, None]
    bg_thresh = jnp.take_along_axis(bg_top, bg_idx, axis=1)         # (B, 1)
    labels = jnp.where(bg_mask & (bg_sc < bg_thresh), -1.0, labels)

    # ---- positive / negative weights (RPN_POSITIVE_WEIGHT < 0 branch).
    # NB: reproduces the reference's use of the *last* loop index `i`. ----
    num_examples = jnp.sum((labels[B - 1] >= 0.0).astype(jnp.float32))
    pos_w = 1.0 / num_examples
    neg_w = 1.0 / num_examples

    # ---- bbox inside / outside weights: plain fused selects (kernel #2 removed) ----
    lab_n = labels[:, :N]                                           # (B, N)
    biw = jnp.where(lab_n == 1.0, jnp.float32(RPN_BBOX_INSIDE_WEIGHT), 0.0)
    bow = jnp.where(lab_n == 1.0, pos_w, jnp.where(lab_n == 0.0, neg_w, 0.0))

    # ---- final reshapes to the PyTorch NCHW output convention ----
    labels_out = (lab_n.reshape(B, H, W, A).transpose(0, 3, 1, 2)
                  .reshape(B, 1, A * H, W))
    bbox_targets = targets[:, :N, :].reshape(B, H, W, A * 4).transpose(0, 3, 1, 2)
    biw4 = (jnp.broadcast_to(biw[:, :, None], (B, N, 4))
            .reshape(B, H, W, 4 * A).transpose(0, 3, 1, 2))
    bow4 = (jnp.broadcast_to(bow[:, :, None], (B, N, 4))
            .reshape(B, H, W, 4 * A).transpose(0, 3, 1, 2))

    return [labels_out, bbox_targets, biw4, bow4]


# ------------------------- main -------------------------
if __name__ == "__main__":
    key = jax.random.PRNGKey(0)
    feat_stride = 16
    scales = (8, 16, 32)
    ratios = (0.5, 1.0, 2.0)
    A = len(scales) * len(ratios)

    B, H, W, G = 2, 8, 8, 8          # small shapes: feature map 8x8 -> image 128x128
    im_h, im_w = H * feat_stride, W * feat_stride

    k0, k1, k2, k3, k4, ksub = jax.random.split(key, 6)
    rpn_cls_score = jax.random.normal(k0, (B, 2 * A, H, W), jnp.float32)   # only H, W used

    # deterministic synthetic gt boxes: 5 real boxes + 3 zero-padded rows per image
    n_real = 5
    cx = jax.random.uniform(k1, (B, G), minval=20.0, maxval=im_w - 20.0)
    cy = jax.random.uniform(k2, (B, G), minval=20.0, maxval=im_h - 20.0)
    bw = jax.random.uniform(k3, (B, G), minval=16.0, maxval=60.0)
    bh = jax.random.uniform(k4, (B, G), minval=16.0, maxval=60.0)
    x1 = jnp.clip(cx - bw / 2.0, 0.0, im_w - 2.0)
    y1 = jnp.clip(cy - bh / 2.0, 0.0, im_h - 2.0)
    x2 = jnp.clip(cx + bw / 2.0, x1 + 1.0, im_w - 1.0)
    y2 = jnp.clip(cy + bh / 2.0, y1 + 1.0, im_h - 1.0)
    cls = jnp.ones((B, G), jnp.float32)
    gt_boxes = jnp.stack([x1, y1, x2, y2, cls], axis=-1)
    real_mask = (jnp.arange(G) < n_real).astype(jnp.float32)[None, :, None]
    gt_boxes = gt_boxes * real_mask                                         # (B, G, 5)

    im_info = jnp.array([[im_h, im_w, 1.0]] * B, jnp.float32)               # (B, 3)
    num_boxes = jnp.array([n_real] * B, jnp.int32)                          # (B,)

    fwd = jax.jit(functools.partial(anchor_target_forward,
                                    feat_stride=feat_stride, scales=scales, ratios=ratios))
    outs = fwd(rpn_cls_score, gt_boxes, im_info, num_boxes, rng_key=ksub)
    for o in outs:
        jax.block_until_ready(o)

    expected_shapes = [(B, 1, A * H, W), (B, 4 * A, H, W), (B, 4 * A, H, W), (B, 4 * A, H, W)]
    assert [tuple(o.shape) for o in outs] == expected_shapes
    assert all(bool(jnp.all(jnp.isfinite(o))) for o in outs)
    print("KERNEL_OK")
</pallas_src>

<mosaic_0001>
module attributes {stable_mosaic.version = 11 : i64} {
  func.func @kernel(%arg0: i32, %arg1: i32, %arg2: memref<2x64xf32, #tpu.memory_space<smem>>, %arg3: memref<4x8x128xf32, #tpu.memory_space<vmem>>, %arg4: memref<8x128xf32, #tpu.memory_space<vmem>>, %arg5: memref<1x8x128xf32, #tpu.memory_space<vmem>>) attributes {dimension_semantics = [#tpu.dimension_semantics<parallel>, #tpu.dimension_semantics<arbitrary>], iteration_bounds = array<i64: 2, 1>, scalar_prefetch = 0 : i64, scratch_operands = 0 : i64, tpu.core_type = #tpu.core_type<tc>, window_params = [{transform_indices = @transform_0, window_bounds = array<i64: 2, 64>}, {transform_indices = @transform_1, window_bounds = array<i64: 4, 8, 128>}, {transform_indices = @transform_2, window_bounds = array<i64: 8, 128>}, {transform_indices = @transform_3, window_bounds = array<i64: 1, 8, 128>}]} {
    %c0_i32 = arith.constant 0 : i32
    %0 = arith.cmpi eq, %arg1, %c0_i32 : i32
    %1 = arith.extui %0 : i1 to i32
    %c0_i32_0 = arith.constant 0 : i32
    %2 = arith.cmpi ne, %1, %c0_i32_0 : i32
    scf.if %2 {
      %cst_127 = arith.constant -1.000000e+00 : f32
      %437 = vector.broadcast %cst_127 : f32 to vector<1x8x128xf32>
      %c0_128 = arith.constant 0 : index
      %c0_129 = arith.constant 0 : index
      %c0_130 = arith.constant 0 : index
      %438 = vector.load %arg5[%c0_128, %c0_129, %c0_130] : memref<1x8x128xf32, #tpu.memory_space<vmem>>, vector<1x8x128xf32>
      tpu.vector_store %arg5[%c0_128, %c0_129, %c0_130], %437 {strides = array<i32>} : memref<1x8x128xf32, #tpu.memory_space<vmem>>, vector<1x8x128xf32>,
    } else {
    }
    %c0 = arith.constant 0 : index
    %c0_1 = arith.constant 0 : index
    %c0_2 = arith.constant 0 : index
    %3 = vector.load %arg3[%c0, %c0_1, %c0_2] : memref<4x8x128xf32, #tpu.memory_space<vmem>>, vector<1x8x128xf32>
    %4 = vector.shape_cast %3 : vector<1x8x128xf32> to vector<8x128xf32>
    %c1 = arith.constant 1 : index
    %c0_3 = arith.constant 0 : index
    %c0_4 = arith.constant 0 : index
    %5 = vector.load %arg3[%c1, %c0_3, %c0_4] : memref<4x8x128xf32, #tpu.memory_space<vmem>>, vector<1x8x128xf32>
    %6 = vector.shape_cast %5 : vector<1x8x128xf32> to vector<8x128xf32>
    %c2 = arith.constant 2 : index
    %c0_5 = arith.constant 0 : index
    %c0_6 = arith.constant 0 : index
    %7 = vector.load %arg3[%c2, %c0_5, %c0_6] : memref<4x8x128xf32, #tpu.memory_space<vmem>>, vector<1x8x128xf32>
    %8 = vector.shape_cast %7 : vector<1x8x128xf32> to vector<8x128xf32>
    %c3 = arith.constant 3 : index
    %c0_7 = arith.constant 0 : index
    %c0_8 = arith.constant 0 : index
    %9 = vector.load %arg3[%c3, %c0_7, %c0_8] : memref<4x8x128xf32, #tpu.memory_space<vmem>>, vector<1x8x128xf32>
    %10 = vector.shape_cast %9 : vector<1x8x128xf32> to vector<8x128xf32>
    %c0_9 = arith.constant 0 : index
    %c0_10 = arith.constant 0 : index
    %11 = vector.load %arg4[%c0_9, %c0_10] : memref<8x128xf32, #tpu.memory_space<vmem>>, vector<8x128xf32>
    %cst = arith.constant 0.000000e+00 : f32
    %12 = vector.broadcast %cst : f32 to vector<8x128xf32>
    %13 = arith.cmpf ogt, %11, %12 : vector<8x128xf32>
    %14 = arith.subf %8, %4 : vector<8x128xf32>
    %cst_11 = arith.constant 1.000000e+00 : f32
    %15 = vector.broadcast %cst_11 : f32 to vector<8x128xf32>
    %16 = arith.addf %14, %15 : vector<8x128xf32>
    %17 = arith.subf %10, %6 : vector<8x128xf32>
    %cst_12 = arith.constant 1.000000e+00 : f32
    %18 = vector.broadcast %cst_12 : f32 to vector<8x128xf32>
    %19 = arith.addf %17, %18 : vector<8x128xf32>
    %20 = arith.mulf %16, %19 : vector<8x128xf32>
    %21 = arith.index_cast %arg0 : i32 to index
    %c0_13 = arith.constant 0 : index
    %22 = memref.load %arg2[%21, %c0_13] : memref<2x64xf32, #tpu.memory_space<smem>>
    %23 = arith.index_cast %arg0 : i32 to index
    %c1_14 = arith.constant 1 : index
    %24 = memref.load %arg2[%23, %c1_14] : memref<2x64xf32, #tpu.memory_space<smem>>
    %25 = arith.index_cast %arg0 : i32 to index
    %c2_15 = arith.constant 2 : index
    %26 = memref.load %arg2[%25, %c2_15] : memref<2x64xf32, #tpu.memory_space<smem>>
    %27 = arith.index_cast %arg0 : i32 to index
    %c3_16 = arith.constant 3 : index
    %28 = memref.load %arg2[%27, %c3_16] : memref<2x64xf32, #tpu.memory_space<smem>>
    %29 = arith.index_cast %arg0 : i32 to index
    %c4 = arith.constant 4 : index
    %30 = memref.load %arg2[%29, %c4] : memref<2x64xf32, #tpu.memory_space<smem>>
    %31 = arith.index_cast %arg0 : i32 to index
    %c5 = arith.constant 5 : index
    %32 = memref.load %arg2[%31, %c5] : memref<2x64xf32, #tpu.memory_space<smem>>
    %33 = vector.broadcast %26 : f32 to vector<8x128xf32>
    %34 = arith.minimumf %8, %33 : vector<8x128xf32>
    %35 = vector.broadcast %22 : f32 to vector<8x128xf32>
    %36 = arith.maximumf %4, %35 : vector<8x128xf32>
    %37 = arith.subf %34, %36 : vector<8x128xf32>
    %cst_17 = arith.constant 1.000000e+00 : f32
    %38 = vector.broadcast %cst_17 : f32 to vector<8x128xf32>
    %39 = arith.addf %37, %38 : vector<8x128xf32>
    %cst_18 = arith.constant 0.000000e+00 : f32
    %40 = vector.broadcast %cst_18 : f32 to vector<8x128xf32>
    %41 = arith.maximumf %39, %40 : vector<8x128xf32>
    %42 = vector.broadcast %28 : f32 to vector<8x128xf32>
    %43 = arith.minimumf %10, %42 : vector<8x128xf32>
    %44 = vector.broadcast %24 : f32 to vector<8x128xf32>
    %45 = arith.maximumf %6, %44 : vector<8x128xf32>
    %46 = arith.subf %43, %45 : vector<8x128xf32>
    %cst_19 = arith.constant 1.000000e+00 : f32
    %47 = vector.broadcast %cst_19 : f32 to vector<8x128xf32>
    %48 = arith.addf %46, %47 : vector<8x128xf32>
    %cst_20 = arith.constant 0.000000e+00 : f32
    %49 = vector.broadcast %cst_20 : f32 to vector<8x128xf32>
    %50 = arith.maximumf %48, %49 : vector<8x128xf32>
    %51 = arith.mulf %41, %50 : vector<8x128xf32>
    %52 = vector.broadcast %30 : f32 to vector<8x128xf32>
    %53 = arith.addf %20, %52 : vector<8x128xf32>
    %54 = arith.subf %53, %51 : vector<8x128xf32>
    %55 = tpu.reciprocal %54 : vector<8x128xf32> -> vector<8x128xf32>
    %56 = arith.mulf %51, %55 : vector<8x128xf32>
    %cst_21 = arith.constant 0.000000e+00 : f32
    %57 = arith.cmpf ogt, %32, %cst_21 : f32
    %cst_22 = arith.constant 0.000000e+00 : f32
    %58 = vector.broadcast %cst_22 : f32 to vector<8x128xf32>
    %59 = arith.select %57, %58, %56 : vector<8x128xf32>
    %cst_23 = arith.constant -1.000000e+00 : f32
    %60 = vector.broadcast %cst_23 : f32 to vector<8x128xf32>
    %61 = arith.select %13, %59, %60 : vector<8x128xi1>, vector<8x128xf32>
    %62 = vector.shape_cast %61 : vector<8x128xf32> to vector<1x8x128xf32>
    %cst_24 = arith.constant dense<0xFF800000> : vector<1xf32>
    %63 = vector.multi_reduction <maximumf>, %62, %cst_24 [1, 2] : vector<1x8x128xf32> to vector<1xf32>
    %64 = vector.shape_cast %63 : vector<1xf32> to vector<1x1x1xf32>
    %65 = vector.extract %64[0, 0, 0] : f32 from vector<1x1x1xf32>
    %66 = vector.broadcast %65 : f32 to vector<1x1xf32>
    %c0_25 = arith.constant 0 : index
    %c0_26 = arith.constant 0 : index
    %c0_27 = arith.constant 0 : index
    %67 = vector.load %arg5[%c0_25, %c0_26, %c0_27] : memref<1x8x128xf32, #tpu.memory_space<vmem>>, vector<1x1x1xf32>
    %68 = vector.shape_cast %67 : vector<1x1x1xf32> to vector<1x1xf32>
    %69 = arith.maximumf %68, %66 : vector<1x1xf32>
    %c0_28 = arith.constant 0 : index
    %c0_29 = arith.constant 0 : index
    %c0_30 = arith.constant 0 : index
    %70 = vector.load %arg5[%c0_28, %c0_29, %c0_30] : memref<1x8x128xf32, #tpu.memory_space<vmem>>, vector<1x1x1xf32>
    %71 = vector.shape_cast %70 : vector<1x1x1xf32> to vector<1x1xf32>
    %72 = vector.shape_cast %69 : vector<1x1xf32> to vector<1x1x1xf32>
    tpu.vector_store %arg5[%c0_28, %c0_29, %c0_30], %72 {strides = array<i32>} : memref<1x8x128xf32, #tpu.memory_space<vmem>>, vector<1x1x1xf32>,
    %73 = arith.index_cast %arg0 : i32 to index
    %c8 = arith.constant 8 : index
    %74 = memref.load %arg2[%73, %c8] : memref<2x64xf32, #tpu.memory_space<smem>>
    %75 = arith.index_cast %arg0 : i32 to index
    %c9 = arith.constant 9 : index
    %76 = memref.load %arg2[%75, %c9] : memref<2x64xf32, #tpu.memory_space<smem>>
    %77 = arith.index_cast %arg0 : i32 to index
    %c10 = arith.constant 10 : index
    %78 = memref.load %arg2[%77, %c10] : memref<2x64xf32, #tpu.memory_space<smem>>
    %79 = arith.index_cast %arg0 : i32 to index
    %c11 = arith.constant 11 : index
    %80 = memref.load %arg2[%79, %c11] : memref<2x64xf32, #tpu.memory_space<smem>>
    %81 = arith.index_cast %arg0 : i32 to index
    %c12 = arith.constant 12 : index
    %82 = memref.load %arg2[%81, %c12] : memref<2x64xf32, #tpu.memory_space<smem>>
    %83 = arith.index_cast %arg0 : i32 to index
    %c13 = arith.constant 13 : index
    %84 = memref.load %arg2[%83, %c13] : memref<2x64xf32, #tpu.memory_space<smem>>
    %85 = vector.broadcast %78 : f32 to vector<8x128xf32>
    %86 = arith.minimumf %8, %85 : vector<8x128xf32>
    %87 = vector.broadcast %74 : f32 to vector<8x128xf32>
    %88 = arith.maximumf %4, %87 : vector<8x128xf32>
    %89 = arith.subf %86, %88 : vector<8x128xf32>
    %cst_31 = arith.constant 1.000000e+00 : f32
    %90 = vector.broadcast %cst_31 : f32 to vector<8x128xf32>
    %91 = arith.addf %89, %90 : vector<8x128xf32>
    %cst_32 = arith.constant 0.000000e+00 : f32
    %92 = vector.broadcast %cst_32 : f32 to vector<8x128xf32>
    %93 = arith.maximumf %91, %92 : vector<8x128xf32>
    %94 = vector.broadcast %80 : f32 to vector<8x128xf32>
    %95 = arith.minimumf %10, %94 : vector<8x128xf32>
    %96 = vector.broadcast %76 : f32 to vector<8x128xf32>
    %97 = arith.maximumf %6, %96 : vector<8x128xf32>
    %98 = arith.subf %95, %97 : vector<8x128xf32>
    %cst_33 = arith.constant 1.000000e+00 : f32
    %99 = vector.broadcast %cst_33 : f32 to vector<8x128xf32>
    %100 = arith.addf %98, %99 : vector<8x128xf32>
    %cst_34 = arith.constant 0.000000e+00 : f32
    %101 = vector.broadcast %cst_34 : f32 to vector<8x128xf32>
    %102 = arith.maximumf %100, %101 : vector<8x128xf32>
    %103 = arith.mulf %93, %102 : vector<8x128xf32>
    %104 = vector.broadcast %82 : f32 to vector<8x128xf32>
    %105 = arith.addf %20, %104 : vector<8x128xf32>
    %106 = arith.subf %105, %103 : vector<8x128xf32>
    %107 = tpu.reciprocal %106 : vector<8x128xf32> -> vector<8x128xf32>
    %108 = arith.mulf %103, %107 : vector<8x128xf32>
    %cst_35 = arith.constant 0.000000e+00 : f32
    %109 = arith.cmpf ogt, %84, %cst_35 : f32
    %cst_36 = arith.constant 0.000000e+00 : f32
    %110 = vector.broadcast %cst_36 : f32 to vector<8x128xf32>
    %111 = arith.select %109, %110, %108 : vector<8x128xf32>
    %cst_37 = arith.constant -1.000000e+00 : f32
    %112 = vector.broadcast %cst_37 : f32 to vector<8x128xf32>
    %113 = arith.select %13, %111, %112 : vector<8x128xi1>, vector<8x128xf32>
    %114 = vector.shape_cast %113 : vector<8x128xf32> to vector<1x8x128xf32>
    %cst_38 = arith.constant dense<0xFF800000> : vector<1xf32>
    %115 = vector.multi_reduction <maximumf>, %114, %cst_38 [1, 2] : vector<1x8x128xf32> to vector<1xf32>
    %116 = vector.shape_cast %115 : vector<1xf32> to vector<1x1x1xf32>
    %117 = vector.extract %116[0, 0, 0] : f32 from vector<1x1x1xf32>
    %118 = vector.broadcast %117 : f32 to vector<1x1xf32>
    %c0_39 = arith.constant 0 : index
    %c1_40 = arith.constant 1 : index
    %c0_41 = arith.constant 0 : index
    %119 = vector.load %arg5[%c0_39, %c1_40, %c0_41] : memref<1x8x128xf32, #tpu.memory_space<vmem>>, vector<1x1x1xf32>
    %120 = vector.shape_cast %119 : vector<1x1x1xf32> to vector<1x1xf32>
    %121 = arith.maximumf %120, %118 : vector<1x1xf32>
    %c0_42 = arith.constant 0 : index
    %c1_43 = arith.constant 1 : index
    %c0_44 = arith.constant 0 : index
    %122 = vector.load %arg5[%c0_42, %c1_43, %c0_44] : memref<1x8x128xf32, #tpu.memory_space<vmem>>, vector<1x1x1xf32>
    %123 = vector.shape_cast %122 : vector<1x1x1xf32> to vector<1x1xf32>
    %124 = vector.shape_cast %121 : vector<1x1xf32> to vector<1x1x1xf32>
    tpu.vector_store %arg5[%c0_42, %c1_43, %c0_44], %124 {strides = array<i32>} : memref<1x8x128xf32, #tpu.memory_space<vmem>>, vector<1x1x1xf32>,
    %125 = arith.index_cast %arg0 : i32 to index
    %c16 = arith.constant 16 : index
    %126 = memref.load %arg2[%125, %c16] : memref<2x64xf32, #tpu.memory_space<smem>>
    %127 = arith.index_cast %arg0 : i32 to index
    %c17 = arith.constant 17 : index
    %128 = memref.load %arg2[%127, %c17] : memref<2x64xf32, #tpu.memory_space<smem>>
    %129 = arith.index_cast %arg0 : i32 to index
    %c18 = arith.constant 18 : index
    %130 = memref.load %arg2[%129, %c18] : memref<2x64xf32, #tpu.memory_space<smem>>
    %131 = arith.index_cast %arg0 : i32 to index
    %c19 = arith.constant 19 : index
    %132 = memref.load %arg2[%131, %c19] : memref<2x64xf32, #tpu.memory_space<smem>>
    %133 = arith.index_cast %arg0 : i32 to index
    %c20 = arith.constant 20 : index
    %134 = memref.load %arg2[%133, %c20] : memref<2x64xf32, #tpu.memory_space<smem>>
    %135 = arith.index_cast %arg0 : i32 to index
    %c21 = arith.constant 21 : index
    %136 = memref.load %arg2[%135, %c21] : memref<2x64xf32, #tpu.memory_space<smem>>
    %137 = vector.broadcast %130 : f32 to vector<8x128xf32>
    %138 = arith.minimumf %8, %137 : vector<8x128xf32>
    %139 = vector.broadcast %126 : f32 to vector<8x128xf32>
    %140 = arith.maximumf %4, %139 : vector<8x128xf32>
    %141 = arith.subf %138, %140 : vector<8x128xf32>
    %cst_45 = arith.constant 1.000000e+00 : f32
    %142 = vector.broadcast %cst_45 : f32 to vector<8x128xf32>
    %143 = arith.addf %141, %142 : vector<8x128xf32>
    %cst_46 = arith.constant 0.000000e+00 : f32
    %144 = vector.broadcast %cst_46 : f32 to vector<8x128xf32>
    %145 = arith.maximumf %143, %144 : vector<8x128xf32>
    %146 = vector.broadcast %132 : f32 to vector<8x128xf32>
    %147 = arith.minimumf %10, %146 : vector<8x128xf32>
    %148 = vector.broadcast %128 : f32 to vector<8x128xf32>
    %149 = arith.maximumf %6, %148 : vector<8x128xf32>
    %150 = arith.subf %147, %149 : vector<8x128xf32>
    %cst_47 = arith.constant 1.000000e+00 : f32
    %151 = vector.broadcast %cst_47 : f32 to vector<8x128xf32>
    %152 = arith.addf %150, %151 : vector<8x128xf32>
    %cst_48 = arith.constant 0.000000e+00 : f32
    %153 = vector.broadcast %cst_48 : f32 to vector<8x128xf32>
    %154 = arith.maximumf %152, %153 : vector<8x128xf32>
    %155 = arith.mulf %145, %154 : vector<8x128xf32>
    %156 = vector.broadcast %134 : f32 to vector<8x128xf32>
    %157 = arith.addf %20, %156 : vector<8x128xf32>
    %158 = arith.subf %157, %155 : vector<8x128xf32>
    %159 = tpu.reciprocal %158 : vector<8x128xf32> -> vector<8x128xf32>
    %160 = arith.mulf %155, %159 : vector<8x128xf32>
    %cst_49 = arith.constant 0.000000e+00 : f32
    %161 = arith.cmpf ogt, %136, %cst_49 : f32
    %cst_50 = arith.constant 0.000000e+00 : f32
    %162 = vector.broadcast %cst_50 : f32 to vector<8x128xf32>
    %163 = arith.select %161, %162, %160 : vector<8x128xf32>
    %cst_51 = arith.constant -1.000000e+00 : f32
    %164 = vector.broadcast %cst_51 : f32 to vector<8x128xf32>
    %165 = arith.select %13, %163, %164 : vector<8x128xi1>, vector<8x128xf32>
    %166 = vector.shape_cast %165 : vector<8x128xf32> to vector<1x8x128xf32>
    %cst_52 = arith.constant dense<0xFF800000> : vector<1xf32>
    %167 = vector.multi_reduction <maximumf>, %166, %cst_52 [1, 2] : vector<1x8x128xf32> to vector<1xf32>
    %168 = vector.shape_cast %167 : vector<1xf32> to vector<1x1x1xf32>
    %169 = vector.extract %168[0, 0, 0] : f32 from vector<1x1x1xf32>
    %170 = vector.broadcast %169 : f32 to vector<1x1xf32>
    %c0_53 = arith.constant 0 : index
    %c2_54 = arith.constant 2 : index
    %c0_55 = arith.constant 0 : index
    %171 = vector.load %arg5[%c0_53, %c2_54, %c0_55] : memref<1x8x128xf32, #tpu.memory_space<vmem>>, vector<1x1x1xf32>
    %172 = vector.shape_cast %171 : vector<1x1x1xf32> to vector<1x1xf32>
    %173 = arith.maximumf %172, %170 : vector<1x1xf32>
    %c0_56 = arith.constant 0 : index
    %c2_57 = arith.constant 2 : index
    %c0_58 = arith.constant 0 : index
    %174 = vector.load %arg5[%c0_56, %c2_57, %c0_58] : memref<1x8x128xf32, #tpu.memory_space<vmem>>, vector<1x1x1xf32>
    %175 = vector.shape_cast %174 : vector<1x1x1xf32> to vector<1x1xf32>
    %176 = vector.shape_cast %173 : vector<1x1xf32> to vector<1x1x1xf32>
    tpu.vector_store %arg5[%c0_56, %c2_57, %c0_58], %176 {strides = array<i32>} : memref<1x8x128xf32, #tpu.memory_space<vmem>>, vector<1x1x1xf32>,
    %177 = arith.index_cast %arg0 : i32 to index
    %c24 = arith.constant 24 : index
    %178 = memref.load %arg2[%177, %c24] : memref<2x64xf32, #tpu.memory_space<smem>>
    %179 = arith.index_cast %arg0 : i32 to index
    %c25 = arith.constant 25 : index
    %180 = memref.load %arg2[%179, %c25] : memref<2x64xf32, #tpu.memory_space<smem>>
    %181 = arith.index_cast %arg0 : i32 to index
    %c26 = arith.constant 26 : index
    %182 = memref.load %arg2[%181, %c26] : memref<2x64xf32, #tpu.memory_space<smem>>
    %183 = arith.index_cast %arg0 : i32 to index
    %c27 = arith.constant 27 : index
    %184 = memref.load %arg2[%183, %c27] : memref<2x64xf32, #tpu.memory_space<smem>>
    %185 = arith.index_cast %arg0 : i32 to index
    %c28 = arith.constant 28 : index
    %186 = memref.load %arg2[%185, %c28] : memref<2x64xf32, #tpu.memory_space<smem>>
    %187 = arith.index_cast %arg0 : i32 to index
    %c29 = arith.constant 29 : index
    %188 = memref.load %arg2[%187, %c29] : memref<2x64xf32, #tpu.memory_space<smem>>
    %189 = vector.broadcast %182 : f32 to vector<8x128xf32>
    %190 = arith.minimumf %8, %189 : vector<8x128xf32>
    %191 = vector.broadcast %178 : f32 to vector<8x128xf32>
    %192 = arith.maximumf %4, %191 : vector<8x128xf32>
    %193 = arith.subf %190, %192 : vector<8x128xf32>
    %cst_59 = arith.constant 1.000000e+00 : f32
    %194 = vector.broadcast %cst_59 : f32 to vector<8x128xf32>
    %195 = arith.addf %193, %194 : vector<8x128xf32>
    %cst_60 = arith.constant 0.000000e+00 : f32
    %196 = vector.broadcast %cst_60 : f32 to vector<8x128xf32>
    %197 = arith.maximumf %195, %196 : vector<8x128xf32>
    %198 = vector.broadcast %184 : f32 to vector<8x128xf32>
    %199 = arith.minimumf %10, %198 : vector<8x128xf32>
    %200 = vector.broadcast %180 : f32 to vector<8x128xf32>
    %201 = arith.maximumf %6, %200 : vector<8x128xf32>
    %202 = arith.subf %199, %201 : vector<8x128xf32>
    %cst_61 = arith.constant 1.000000e+00 : f32
    %203 = vector.broadcast %cst_61 : f32 to vector<8x128xf32>
    %204 = arith.addf %202, %203 : vector<8x128xf32>
    %cst_62 = arith.constant 0.000000e+00 : f32
    %205 = vector.broadcast %cst_62 : f32 to vector<8x128xf32>
    %206 = arith.maximumf %204, %205 : vector<8x128xf32>
    %207 = arith.mulf %197, %206 : vector<8x128xf32>
    %208 = vector.broadcast %186 : f32 to vector<8x128xf32>
    %209 = arith.addf %20, %208 : vector<8x128xf32>
    %210 = arith.subf %209, %207 : vector<8x128xf32>
    %211 = tpu.reciprocal %210 : vector<8x128xf32> -> vector<8x128xf32>
    %212 = arith.mulf %207, %211 : vector<8x128xf32>
    %cst_63 = arith.constant 0.000000e+00 : f32
    %213 = arith.cmpf ogt, %188, %cst_63 : f32
    %cst_64 = arith.constant 0.000000e+00 : f32
    %214 = vector.broadcast %cst_64 : f32 to vector<8x128xf32>
    %215 = arith.select %213, %214, %212 : vector<8x128xf32>
    %cst_65 = arith.constant -1.000000e+00 : f32
    %216 = vector.broadcast %cst_65 : f32 to vector<8x128xf32>
    %217 = arith.select %13, %215, %216 : vector<8x128xi1>, vector<8x128xf32>
    %218 = vector.shape_cast %217 : vector<8x128xf32> to vector<1x8x128xf32>
    %cst_66 = arith.constant dense<0xFF800000> : vector<1xf32>
    %219 = vector.multi_reduction <maximumf>, %218, %cst_66 [1, 2] : vector<1x8x128xf32> to vector<1xf32>
    %220 = vector.shape_cast %219 : vector<1xf32> to vector<1x1x1xf32>
    %221 = vector.extract %220[0, 0, 0] : f32 from vector<1x1x1xf32>
    %222 = vector.broadcast %221 : f32 to vector<1x1xf32>
    %c0_67 = arith.constant 0 : index
    %c3_68 = arith.constant 3 : index
    %c0_69 = arith.constant 0 : index
    %223 = vector.load %arg5[%c0_67, %c3_68, %c0_69] : memref<1x8x128xf32, #tpu.memory_space<vmem>>, vector<1x1x1xf32>
    %224 = vector.shape_cast %223 : vector<1x1x1xf32> to vector<1x1xf32>
    %225 = arith.maximumf %224, %222 : vector<1x1xf32>
    %c0_70 = arith.constant 0 : index
    %c3_71 = arith.constant 3 : index
    %c0_72 = arith.constant 0 : index
    %226 = vector.load %arg5[%c0_70, %c3_71, %c0_72] : memref<1x8x128xf32, #tpu.memory_space<vmem>>, vector<1x1x1xf32>
    %227 = vector.shape_cast %226 : vector<1x1x1xf32> to vector<1x1xf32>
    %228 = vector.shape_cast %225 : vector<1x1xf32> to vector<1x1x1xf32>
    tpu.vector_store %arg5[%c0_70, %c3_71, %c0_72], %228 {strides = array<i32>} : memref<1x8x128xf32, #tpu.memory_space<vmem>>, vector<1x1x1xf32>,
    %229 = arith.index_cast %arg0 : i32 to index
    %c32 = arith.constant 32 : index
    %230 = memref.load %arg2[%229, %c32] : memref<2x64xf32, #tpu.memory_space<smem>>
    %231 = arith.index_cast %arg0 : i32 to index
    %c33 = arith.constant 33 : index
    %232 = memref.load %arg2[%231, %c33] : memref<2x64xf32, #tpu.memory_space<smem>>
    %233 = arith.index_cast %arg0 : i32 to index
    %c34 = arith.constant 34 : index
    %234 = memref.load %arg2[%233, %c34] : memref<2x64xf32, #tpu.memory_space<smem>>
    %235 = arith.index_cast %arg0 : i32 to index
    %c35 = arith.constant 35 : index
    %236 = memref.load %arg2[%235, %c35] : memref<2x64xf32, #tpu.memory_space<smem>>
    %237 = arith.index_cast %arg0 : i32 to index
    %c36 = arith.constant 36 : index
    %238 = memref.load %arg2[%237, %c36] : memref<2x64xf32, #tpu.memory_space<smem>>
    %239 = arith.index_cast %arg0 : i32 to index
    %c37 = arith.constant 37 : index
    %240 = memref.load %arg2[%239, %c37] : memref<2x64xf32, #tpu.memory_space<smem>>
    %241 = vector.broadcast %234 : f32 to vector<8x128xf32>
    %242 = arith.minimumf %8, %241 : vector<8x128xf32>
    %243 = vector.broadcast %230 : f32 to vector<8x128xf32>
    %244 = arith.maximumf %4, %243 : vector<8x128xf32>
    %245 = arith.subf %242, %244 : vector<8x128xf32>
    %cst_73 = arith.constant 1.000000e+00 : f32
    %246 = vector.broadcast %cst_73 : f32 to vector<8x128xf32>
    %247 = arith.addf %245, %246 : vector<8x128xf32>
    %cst_74 = arith.constant 0.000000e+00 : f32
    %248 = vector.broadcast %cst_74 : f32 to vector<8x128xf32>
    %249 = arith.maximumf %247, %248 : vector<8x128xf32>
    %250 = vector.broadcast %236 : f32 to vector<8x128xf32>
    %251 = arith.minimumf %10, %250 : vector<8x128xf32>
    %252 = vector.broadcast %232 : f32 to vector<8x128xf32>
    %253 = arith.maximumf %6, %252 : vector<8x128xf32>
    %254 = arith.subf %251, %253 : vector<8x128xf32>
    %cst_75 = arith.constant 1.000000e+00 : f32
    %255 = vector.broadcast %cst_75 : f32 to vector<8x128xf32>
    %256 = arith.addf %254, %255 : vector<8x128xf32>
    %cst_76 = arith.constant 0.000000e+00 : f32
    %257 = vector.broadcast %cst_76 : f32 to vector<8x128xf32>
    %258 = arith.maximumf %256, %257 : vector<8x128xf32>
    %259 = arith.mulf %249, %258 : vector<8x128xf32>
    %260 = vector.broadcast %238 : f32 to vector<8x128xf32>
    %261 = arith.addf %20, %260 : vector<8x128xf32>
    %262 = arith.subf %261, %259 : vector<8x128xf32>
    %263 = tpu.reciprocal %262 : vector<8x128xf32> -> vector<8x128xf32>
    %264 = arith.mulf %259, %263 : vector<8x128xf32>
    %cst_77 = arith.constant 0.000000e+00 : f32
    %265 = arith.cmpf ogt, %240, %cst_77 : f32
    %cst_78 = arith.constant 0.000000e+00 : f32
    %266 = vector.broadcast %cst_78 : f32 to vector<8x128xf32>
    %267 = arith.select %265, %266, %264 : vector<8x128xf32>
    %cst_79 = arith.constant -1.000000e+00 : f32
    %268 = vector.broadcast %cst_79 : f32 to vector<8x128xf32>
    %269 = arith.select %13, %267, %268 : vector<8x128xi1>, vector<8x128xf32>
    %270 = vector.shape_cast %269 : vector<8x128xf32> to vector<1x8x128xf32>
    %cst_80 = arith.constant dense<0xFF800000> : vector<1xf32>
    %271 = vector.multi_reduction <maximumf>, %270, %cst_80 [1, 2] : vector<1x8x128xf32> to vector<1xf32>
    %272 = vector.shape_cast %271 : vector<1xf32> to vector<1x1x1xf32>
    %273 = vector.extract %272[0, 0, 0] : f32 from vector<1x1x1xf32>
    %274 = vector.broadcast %273 : f32 to vector<1x1xf32>
    %c0_81 = arith.constant 0 : index
    %c4_82 = arith.constant 4 : index
    %c0_83 = arith.constant 0 : index
    %275 = vector.load %arg5[%c0_81, %c4_82, %c0_83] : memref<1x8x128xf32, #tpu.memory_space<vmem>>, vector<1x1x1xf32>
    %276 = vector.shape_cast %275 : vector<1x1x1xf32> to vector<1x1xf32>
    %277 = arith.maximumf %276, %274 : vector<1x1xf32>
    %c0_84 = arith.constant 0 : index
    %c4_85 = arith.constant 4 : index
    %c0_86 = arith.constant 0 : index
    %278 = vector.load %arg5[%c0_84, %c4_85, %c0_86] : memref<1x8x128xf32, #tpu.memory_space<vmem>>, vector<1x1x1xf32>
    %279 = vector.shape_cast %278 : vector<1x1x1xf32> to vector<1x1xf32>
    %280 = vector.shape_cast %277 : vector<1x1xf32> to vector<1x1x1xf32>
    tpu.vector_store %arg5[%c0_84, %c4_85, %c0_86], %280 {strides = array<i32>} : memref<1x8x128xf32, #tpu.memory_space<vmem>>, vector<1x1x1xf32>,
    %281 = arith.index_cast %arg0 : i32 to index
    %c40 = arith.constant 40 : index
    %282 = memref.load %arg2[%281, %c40] : memref<2x64xf32, #tpu.memory_space<smem>>
    %283 = arith.index_cast %arg0 : i32 to index
    %c41 = arith.constant 41 : index
    %284 = memref.load %arg2[%283, %c41] : memref<2x64xf32, #tpu.memory_space<smem>>
    %285 = arith.index_cast %arg0 : i32 to index
    %c42 = arith.constant 42 : index
    %286 = memref.load %arg2[%285, %c42] : memref<2x64xf32, #tpu.memory_space<smem>>
    %287 = arith.index_cast %arg0 : i32 to index
    %c43 = arith.constant 43 : index
    %288 = memref.load %arg2[%287, %c43] : memref<2x64xf32, #tpu.memory_space<smem>>
    %289 = arith.index_cast %arg0 : i32 to index
    %c44 = arith.constant 44 : index
    %290 = memref.load %arg2[%289, %c44] : memref<2x64xf32, #tpu.memory_space<smem>>
    %291 = arith.index_cast %arg0 : i32 to index
    %c45 = arith.constant 45 : index
    %292 = memref.load %arg2[%291, %c45] : memref<2x64xf32, #tpu.memory_space<smem>>
    %293 = vector.broadcast %286 : f32 to vector<8x128xf32>
    %294 = arith.minimumf %8, %293 : vector<8x128xf32>
    %295 = vector.broadcast %282 : f32 to vector<8x128xf32>
    %296 = arith.maximumf %4, %295 : vector<8x128xf32>
    %297 = arith.subf %294, %296 : vector<8x128xf32>
    %cst_87 = arith.constant 1.000000e+00 : f32
    %298 = vector.broadcast %cst_87 : f32 to vector<8x128xf32>
    %299 = arith.addf %297, %298 : vector<8x128xf32>
    %cst_88 = arith.constant 0.000000e+00 : f32
    %300 = vector.broadcast %cst_88 : f32 to vector<8x128xf32>
    %301 = arith.maximumf %299, %300 : vector<8x128xf32>
    %302 = vector.broadcast %288 : f32 to vector<8x128xf32>
    %303 = arith.minimumf %10, %302 : vector<8x128xf32>
    %304 = vector.broadcast %284 : f32 to vector<8x128xf32>
    %305 = arith.maximumf %6, %304 : vector<8x128xf32>
    %306 = arith.subf %303, %305 : vector<8x128xf32>
    %cst_89 = arith.constant 1.000000e+00 : f32
    %307 = vector.broadcast %cst_89 : f32 to vector<8x128xf32>
    %308 = arith.addf %306, %307 : vector<8x128xf32>
    %cst_90 = arith.constant 0.000000e+00 : f32
    %309 = vector.broadcast %cst_90 : f32 to vector<8x128xf32>
    %310 = arith.maximumf %308, %309 : vector<8x128xf32>
    %311 = arith.mulf %301, %310 : vector<8x128xf32>
    %312 = vector.broadcast %290 : f32 to vector<8x128xf32>
    %313 = arith.addf %20, %312 : vector<8x128xf32>
    %314 = arith.subf %313, %311 : vector<8x128xf32>
    %315 = tpu.reciprocal %314 : vector<8x128xf32> -> vector<8x128xf32>
    %316 = arith.mulf %311, %315 : vector<8x128xf32>
    %cst_91 = arith.constant 0.000000e+00 : f32
    %317 = arith.cmpf ogt, %292, %cst_91 : f32
    %cst_92 = arith.constant 0.000000e+00 : f32
    %318 = vector.broadcast %cst_92 : f32 to vector<8x128xf32>
    %319 = arith.select %317, %318, %316 : vector<8x128xf32>
    %cst_93 = arith.constant -1.000000e+00 : f32
    %320 = vector.broadcast %cst_93 : f32 to vector<8x128xf32>
    %321 = arith.select %13, %319, %320 : vector<8x128xi1>, vector<8x128xf32>
    %322 = vector.shape_cast %321 : vector<8x128xf32> to vector<1x8x128xf32>
    %cst_94 = arith.constant dense<0xFF800000> : vector<1xf32>
    %323 = vector.multi_reduction <maximumf>, %322, %cst_94 [1, 2] : vector<1x8x128xf32> to vector<1xf32>
    %324 = vector.shape_cast %323 : vector<1xf32> to vector<1x1x1xf32>
    %325 = vector.extract %324[0, 0, 0] : f32 from vector<1x1x1xf32>
    %326 = vector.broadcast %325 : f32 to vector<1x1xf32>
    %c0_95 = arith.constant 0 : index
    %c5_96 = arith.constant 5 : index
    %c0_97 = arith.constant 0 : index
    %327 = vector.load %arg5[%c0_95, %c5_96, %c0_97] : memref<1x8x128xf32, #tpu.memory_space<vmem>>, vector<1x1x1xf32>
    %328 = vector.shape_cast %327 : vector<1x1x1xf32> to vector<1x1xf32>
    %329 = arith.maximumf %328, %326 : vector<1x1xf32>
    %c0_98 = arith.constant 0 : index
    %c5_99 = arith.constant 5 : index
    %c0_100 = arith.constant 0 : index
    %330 = vector.load %arg5[%c0_98, %c5_99, %c0_100] : memref<1x8x128xf32, #tpu.memory_space<vmem>>, vector<1x1x1xf32>
    %331 = vector.shape_cast %330 : vector<1x1x1xf32> to vector<1x1xf32>
    %332 = vector.shape_cast %329 : vector<1x1xf32> to vector<1x1x1xf32>
    tpu.vector_store %arg5[%c0_98, %c5_99, %c0_100], %332 {strides = array<i32>} : memref<1x8x128xf32, #tpu.memory_space<vmem>>, vector<1x1x1xf32>,
    %333 = arith.index_cast %arg0 : i32 to index
    %c48 = arith.constant 48 : index
    %334 = memref.load %arg2[%333, %c48] : memref<2x64xf32, #tpu.memory_space<smem>>
    %335 = arith.index_cast %arg0 : i32 to index
    %c49 = arith.constant 49 : index
    %336 = memref.load %arg2[%335, %c49] : memref<2x64xf32, #tpu.memory_space<smem>>
    %337 = arith.index_cast %arg0 : i32 to index
    %c50 = arith.constant 50 : index
    %338 = memref.load %arg2[%337, %c50] : memref<2x64xf32, #tpu.memory_space<smem>>
    %339 = arith.index_cast %arg0 : i32 to index
    %c51 = arith.constant 51 : index
    %340 = memref.load %arg2[%339, %c51] : memref<2x64xf32, #tpu.memory_space<smem>>
    %341 = arith.index_cast %arg0 : i32 to index
    %c52 = arith.constant 52 : index
    %342 = memref.load %arg2[%341, %c52] : memref<2x64xf32, #tpu.memory_space<smem>>
    %343 = arith.index_cast %arg0 : i32 to index
    %c53 = arith.constant 53 : index
    %344 = memref.load %arg2[%343, %c53] : memref<2x64xf32, #tpu.memory_space<smem>>
    %345 = vector.broadcast %338 : f32 to vector<8x128xf32>
    %346 = arith.minimumf %8, %345 : vector<8x128xf32>
    %347 = vector.broadcast %334 : f32 to vector<8x128xf32>
    %348 = arith.maximumf %4, %347 : vector<8x128xf32>
    %349 = arith.subf %346, %348 : vector<8x128xf32>
    %cst_101 = arith.constant 1.000000e+00 : f32
    %350 = vector.broadcast %cst_101 : f32 to vector<8x128xf32>
    %351 = arith.addf %349, %350 : vector<8x128xf32>
    %cst_102 = arith.constant 0.000000e+00 : f32
    %352 = vector.broadcast %cst_102 : f32 to vector<8x128xf32>
    %353 = arith.maximumf %351, %352 : vector<8x128xf32>
    %354 = vector.broadcast %340 : f32 to vector<8x128xf32>
    %355 = arith.minimumf %10, %354 : vector<8x128xf32>
    %356 = vector.broadcast %336 : f32 to vector<8x128xf32>
    %357 = arith.maximumf %6, %356 : vector<8x128xf32>
    %358 = arith.subf %355, %357 : vector<8x128xf32>
    %cst_103 = arith.constant 1.000000e+00 : f32
    %359 = vector.broadcast %cst_103 : f32 to vector<8x128xf32>
    %360 = arith.addf %358, %359 : vector<8x128xf32>
    %cst_104 = arith.constant 0.000000e+00 : f32
    %361 = vector.broadcast %cst_104 : f32 to vector<8x128xf32>
    %362 = arith.maximumf %360, %361 : vector<8x128xf32>
    %363 = arith.mulf %353, %362 : vector<8x128xf32>
    %364 = vector.broadcast %342 : f32 to vector<8x128xf32>
    %365 = arith.addf %20, %364 : vector<8x128xf32>
    %366 = arith.subf %365, %363 : vector<8x128xf32>
    %367 = tpu.reciprocal %366 : vector<8x128xf32> -> vector<8x128xf32>
    %368 = arith.mulf %363, %367 : vector<8x128xf32>
    %cst_105 = arith.constant 0.000000e+00 : f32
    %369 = arith.cmpf ogt, %344, %cst_105 : f32
    %cst_106 = arith.constant 0.000000e+00 : f32
    %370 = vector.broadcast %cst_106 : f32 to vector<8x128xf32>
    %371 = arith.select %369, %370, %368 : vector<8x128xf32>
    %cst_107 = arith.constant -1.000000e+00 : f32
    %372 = vector.broadcast %cst_107 : f32 to vector<8x128xf32>
    %373 = arith.select %13, %371, %372 : vector<8x128xi1>, vector<8x128xf32>
    %374 = vector.shape_cast %373 : vector<8x128xf32> to vector<1x8x128xf32>
    %cst_108 = arith.constant dense<0xFF800000> : vector<1xf32>
    %375 = vector.multi_reduction <maximumf>, %374, %cst_108 [1, 2] : vector<1x8x128xf32> to vector<1xf32>
    %376 = vector.shape_cast %375 : vector<1xf32> to vector<1x1x1xf32>
    %377 = vector.extract %376[0, 0, 0] : f32 from vector<1x1x1xf32>
    %378 = vector.broadcast %377 : f32 to vector<1x1xf32>
    %c0_109 = arith.constant 0 : index
    %c6 = arith.constant 6 : index
    %c0_110 = arith.constant 0 : index
    %379 = vector.load %arg5[%c0_109, %c6, %c0_110] : memref<1x8x128xf32, #tpu.memory_space<vmem>>, vector<1x1x1xf32>
    %380 = vector.shape_cast %379 : vector<1x1x1xf32> to vector<1x1xf32>
    %381 = arith.maximumf %380, %378 : vector<1x1xf32>
    %c0_111 = arith.constant 0 : index
    %c6_112 = arith.constant 6 : index
    %c0_113 = arith.constant 0 : index
    %382 = vector.load %arg5[%c0_111, %c6_112, %c0_113] : memref<1x8x128xf32, #tpu.memory_space<vmem>>, vector<1x1x1xf32>
    %383 = vector.shape_cast %382 : vector<1x1x1xf32> to vector<1x1xf32>
    %384 = vector.shape_cast %381 : vector<1x1xf32> to vector<1x1x1xf32>
    tpu.vector_store %arg5[%c0_111, %c6_112, %c0_113], %384 {strides = array<i32>} : memref<1x8x128xf32, #tpu.memory_space<vmem>>, vector<1x1x1xf32>,
    %385 = arith.index_cast %arg0 : i32 to index
    %c56 = arith.constant 56 : index
    %386 = memref.load %arg2[%385, %c56] : memref<2x64xf32, #tpu.memory_space<smem>>
    %387 = arith.index_cast %arg0 : i32 to index
    %c57 = arith.constant 57 : index
    %388 = memref.load %arg2[%387, %c57] : memref<2x64xf32, #tpu.memory_space<smem>>
    %389 = arith.index_cast %arg0 : i32 to index
    %c58 = arith.constant 58 : index
    %390 = memref.load %arg2[%389, %c58] : memref<2x64xf32, #tpu.memory_space<smem>>
    %391 = arith.index_cast %arg0 : i32 to index
    %c59 = arith.constant 59 : index
    %392 = memref.load %arg2[%391, %c59] : memref<2x64xf32, #tpu.memory_space<smem>>
    %393 = arith.index_cast %arg0 : i32 to index
    %c60 = arith.constant 60 : index
    %394 = memref.load %arg2[%393, %c60] : memref<2x64xf32, #tpu.memory_space<smem>>
    %395 = arith.index_cast %arg0 : i32 to index
    %c61 = arith.constant 61 : index
    %396 = memref.load %arg2[%395, %c61] : memref<2x64xf32, #tpu.memory_space<smem>>
    %397 = vector.broadcast %390 : f32 to vector<8x128xf32>
    %398 = arith.minimumf %8, %397 : vector<8x128xf32>
    %399 = vector.broadcast %386 : f32 to vector<8x128xf32>
    %400 = arith.maximumf %4, %399 : vector<8x128xf32>
    %401 = arith.subf %398, %400 : vector<8x128xf32>
    %cst_114 = arith.constant 1.000000e+00 : f32
    %402 = vector.broadcast %cst_114 : f32 to vector<8x128xf32>
    %403 = arith.addf %401, %402 : vector<8x128xf32>
    %cst_115 = arith.constant 0.000000e+00 : f32
    %404 = vector.broadcast %cst_115 : f32 to vector<8x128xf32>
    %405 = arith.maximumf %403, %404 : vector<8x128xf32>
    %406 = vector.broadcast %392 : f32 to vector<8x128xf32>
    %407 = arith.minimumf %10, %406 : vector<8x128xf32>
    %408 = vector.broadcast %388 : f32 to vector<8x128xf32>
    %409 = arith.maximumf %6, %408 : vector<8x128xf32>
    %410 = arith.subf %407, %409 : vector<8x128xf32>
    %cst_116 = arith.constant 1.000000e+00 : f32
    %411 = vector.broadcast %cst_116 : f32 to vector<8x128xf32>
    %412 = arith.addf %410, %411 : vector<8x128xf32>
    %cst_117 = arith.constant 0.000000e+00 : f32
    %413 = vector.broadcast %cst_117 : f32 to vector<8x128xf32>
    %414 = arith.maximumf %412, %413 : vector<8x128xf32>
    %415 = arith.mulf %405, %414 : vector<8x128xf32>
    %416 = vector.broadcast %394 : f32 to vector<8x128xf32>
    %417 = arith.addf %20, %416 : vector<8x128xf32>
    %418 = arith.subf %417, %415 : vector<8x128xf32>
    %419 = tpu.reciprocal %418 : vector<8x128xf32> -> vector<8x128xf32>
    %420 = arith.mulf %415, %419 : vector<8x128xf32>
    %cst_118 = arith.constant 0.000000e+00 : f32
    %421 = arith.cmpf ogt, %396, %cst_118 : f32
    %cst_119 = arith.constant 0.000000e+00 : f32
    %422 = vector.broadcast %cst_119 : f32 to vector<8x128xf32>
    %423 = arith.select %421, %422, %420 : vector<8x128xf32>
    %cst_120 = arith.constant -1.000000e+00 : f32
    %424 = vector.broadcast %cst_120 : f32 to vector<8x128xf32>
    %425 = arith.select %13, %423, %424 : vector<8x128xi1>, vector<8x128xf32>
    %426 = vector.shape_cast %425 : vector<8x128xf32> to vector<1x8x128xf32>
    %cst_121 = arith.constant dense<0xFF800000> : vector<1xf32>
    %427 = vector.multi_reduction <maximumf>, %426, %cst_121 [1, 2] : vector<1x8x128xf32> to vector<1xf32>
    %428 = vector.shape_cast %427 : vector<1xf32> to vector<1x1x1xf32>
    %429 = vector.extract %428[0, 0, 0] : f32 from vector<1x1x1xf32>
    %430 = vector.broadcast %429 : f32 to vector<1x1xf32>
    %c0_122 = arith.constant 0 : index
    %c7 = arith.constant 7 : index
    %c0_123 = arith.constant 0 : index
    %431 = vector.load %arg5[%c0_122, %c7, %c0_123] : memref<1x8x128xf32, #tpu.memory_space<vmem>>, vector<1x1x1xf32>
    %432 = vector.shape_cast %431 : vector<1x1x1xf32> to vector<1x1xf32>
    %433 = arith.maximumf %432, %430 : vector<1x1xf32>
    %c0_124 = arith.constant 0 : index
    %c7_125 = arith.constant 7 : index
    %c0_126 = arith.constant 0 : index
    %434 = vector.load %arg5[%c0_124, %c7_125, %c0_126] : memref<1x8x128xf32, #tpu.memory_space<vmem>>, vector<1x1x1xf32>
    %435 = vector.shape_cast %434 : vector<1x1x1xf32> to vector<1x1xf32>
    %436 = vector.shape_cast %433 : vector<1x1xf32> to vector<1x1x1xf32>
    tpu.vector_store %arg5[%c0_124, %c7_125, %c0_126], %436 {strides = array<i32>} : memref<1x8x128xf32, #tpu.memory_space<vmem>>, vector<1x1x1xf32>,
    return
  }
  func.func @transform_0(%arg0: i32, %arg1: i32) -> (i32, i32) {
    %c0_i32 = arith.constant 0 : i32
    %c0_i32_0 = arith.constant 0 : i32
    %c0_i32_1 = arith.constant 0 : i32
    return %c0_i32, %c0_i32_0 : i32, i32
  }
  func.func @transform_1(%arg0: i32, %arg1: i32) -> (i32, i32, i32) {
    %c0_i32 = arith.constant 0 : i32
    %c0_i32_0 = arith.constant 0 : i32
    %c0_i32_1 = arith.constant 0 : i32
    return %c0_i32, %c0_i32_0, %arg1 : i32, i32, i32
  }
  func.func @transform_2(%arg0: i32, %arg1: i32) -> (i32, i32) {
    %c0_i32 = arith.constant 0 : i32
    %c0_i32_0 = arith.constant 0 : i32
    return %c0_i32, %arg1 : i32, i32
  }
  func.func @transform_3(%arg0: i32, %arg1: i32) -> (i32, i32, i32) {
    %c0_i32 = arith.constant 0 : i32
    %c0_i32_0 = arith.constant 0 : i32
    %c0_i32_1 = arith.constant 0 : i32
    return %arg0, %c0_i32, %c0_i32_0 : i32, i32, i32
  }
}

module attributes {stable_mosaic.version = 11 : i64} {
  func.func @kernel(%arg0: i32, %arg1: i32, %arg2: memref<2x64xf32, #tpu.memory_space<smem>>, %arg3: memref<4x8x128xf32, #tpu.memory_space<vmem>>, %arg4: memref<8x128xf32, #tpu.memory_space<vmem>>, %arg5: memref<1x8x128xf32, #tpu.memory_space<vmem>>, %arg6: memref<1x4x8x128xf32, #tpu.memory_space<vmem>>) attributes {dimension_semantics = [#tpu.dimension_semantics<parallel>, #tpu.dimension_semantics<parallel>], iteration_bounds = array<i64: 2, 1>, scalar_prefetch = 0 : i64, scratch_operands = 0 : i64, tpu.core_type = #tpu.core_type<tc>, window_params = [{transform_indices = @transform_0, window_bounds = array<i64: 2, 64>}, {transform_indices = @transform_1, window_bounds = array<i64: 4, 8, 128>}, {transform_indices = @transform_2, window_bounds = array<i64: 8, 128>}, {transform_indices = @transform_3, window_bounds = array<i64: 1, 8, 128>}, {transform_indices = @transform_4, window_bounds = array<i64: 1, 4, 8, 128>}]} {
    %c0 = arith.constant 0 : index
    %c0_0 = arith.constant 0 : index
    %c0_1 = arith.constant 0 : index
    %0 = vector.load %arg3[%c0, %c0_0, %c0_1] : memref<4x8x128xf32, #tpu.memory_space<vmem>>, vector<1x8x128xf32>
    %1 = vector.shape_cast %0 : vector<1x8x128xf32> to vector<8x128xf32>
    %c1 = arith.constant 1 : index
    %c0_2 = arith.constant 0 : index
    %c0_3 = arith.constant 0 : index
    %2 = vector.load %arg3[%c1, %c0_2, %c0_3] : memref<4x8x128xf32, #tpu.memory_space<vmem>>, vector<1x8x128xf32>
    %3 = vector.shape_cast %2 : vector<1x8x128xf32> to vector<8x128xf32>
    %c2 = arith.constant 2 : index
    %c0_4 = arith.constant 0 : index
    %c0_5 = arith.constant 0 : index
    %4 = vector.load %arg3[%c2, %c0_4, %c0_5] : memref<4x8x128xf32, #tpu.memory_space<vmem>>, vector<1x8x128xf32>
    %5 = vector.shape_cast %4 : vector<1x8x128xf32> to vector<8x128xf32>
    %c3 = arith.constant 3 : index
    %c0_6 = arith.constant 0 : index
    %c0_7 = arith.constant 0 : index
    %6 = vector.load %arg3[%c3, %c0_6, %c0_7] : memref<4x8x128xf32, #tpu.memory_space<vmem>>, vector<1x8x128xf32>
    %7 = vector.shape_cast %6 : vector<1x8x128xf32> to vector<8x128xf32>
    %c0_8 = arith.constant 0 : index
    %c0_9 = arith.constant 0 : index
    %8 = vector.load %arg4[%c0_8, %c0_9] : memref<8x128xf32, #tpu.memory_space<vmem>>, vector<8x128xf32>
    %cst = arith.constant 0.000000e+00 : f32
    %9 = vector.broadcast %cst : f32 to vector<8x128xf32>
    %10 = arith.cmpf ogt, %8, %9 : vector<8x128xf32>
    %11 = arith.subf %5, %1 : vector<8x128xf32>
    %cst_10 = arith.constant 1.000000e+00 : f32
    %12 = vector.broadcast %cst_10 : f32 to vector<8x128xf32>
    %13 = arith.addf %11, %12 : vector<8x128xf32>
    %14 = arith.subf %7, %3 : vector<8x128xf32>
    %cst_11 = arith.constant 1.000000e+00 : f32
    %15 = vector.broadcast %cst_11 : f32 to vector<8x128xf32>
    %16 = arith.addf %14, %15 : vector<8x128xf32>
    %17 = arith.mulf %13, %16 : vector<8x128xf32>
    %false = arith.constant false
    %18 = vector.broadcast %false : i1 to vector<8x128xi1>
    %19 = arith.index_cast %arg0 : i32 to index
    %c0_12 = arith.constant 0 : index
    %20 = memref.load %arg2[%19, %c0_12] : memref<2x64xf32, #tpu.memory_space<smem>>
    %21 = arith.index_cast %arg0 : i32 to index
    %c1_13 = arith.constant 1 : index
    %22 = memref.load %arg2[%21, %c1_13] : memref<2x64xf32, #tpu.memory_space<smem>>
    %23 = arith.index_cast %arg0 : i32 to index
    %c2_14 = arith.constant 2 : index
    %24 = memref.load %arg2[%23, %c2_14] : memref<2x64xf32, #tpu.memory_space<smem>>
    %25 = arith.index_cast %arg0 : i32 to index
    %c3_15 = arith.constant 3 : index
    %26 = memref.load %arg2[%25, %c3_15] : memref<2x64xf32, #tpu.memory_space<smem>>
    %27 = arith.index_cast %arg0 : i32 to index
    %c4 = arith.constant 4 : index
    %28 = memref.load %arg2[%27, %c4] : memref<2x64xf32, #tpu.memory_space<smem>>
    %29 = arith.index_cast %arg0 : i32 to index
    %c5 = arith.constant 5 : index
    %30 = memref.load %arg2[%29, %c5] : memref<2x64xf32, #tpu.memory_space<smem>>
    %31 = arith.index_cast %arg0 : i32 to index
    %c6 = arith.constant 6 : index
    %32 = memref.load %arg2[%31, %c6] : memref<2x64xf32, #tpu.memory_space<smem>>
    %33 = vector.broadcast %24 : f32 to vector<8x128xf32>
    %34 = arith.minimumf %5, %33 : vector<8x128xf32>
    %35 = vector.broadcast %20 : f32 to vector<8x128xf32>
    %36 = arith.maximumf %1, %35 : vector<8x128xf32>
    %37 = arith.subf %34, %36 : vector<8x128xf32>
    %cst_16 = arith.constant 1.000000e+00 : f32
    %38 = vector.broadcast %cst_16 : f32 to vector<8x128xf32>
    %39 = arith.addf %37, %38 : vector<8x128xf32>
    %cst_17 = arith.constant 0.000000e+00 : f32
    %40 = vector.broadcast %cst_17 : f32 to vector<8x128xf32>
    %41 = arith.maximumf %39, %40 : vector<8x128xf32>
    %42 = vector.broadcast %26 : f32 to vector<8x128xf32>
    %43 = arith.minimumf %7, %42 : vector<8x128xf32>
    %44 = vector.broadcast %22 : f32 to vector<8x128xf32>
    %45 = arith.maximumf %3, %44 : vector<8x128xf32>
    %46 = arith.subf %43, %45 : vector<8x128xf32>
    %cst_18 = arith.constant 1.000000e+00 : f32
    %47 = vector.broadcast %cst_18 : f32 to vector<8x128xf32>
    %48 = arith.addf %46, %47 : vector<8x128xf32>
    %cst_19 = arith.constant 0.000000e+00 : f32
    %49 = vector.broadcast %cst_19 : f32 to vector<8x128xf32>
    %50 = arith.maximumf %48, %49 : vector<8x128xf32>
    %51 = arith.mulf %41, %50 : vector<8x128xf32>
    %52 = vector.broadcast %28 : f32 to vector<8x128xf32>
    %53 = arith.addf %17, %52 : vector<8x128xf32>
    %54 = arith.subf %53, %51 : vector<8x128xf32>
    %55 = tpu.reciprocal %54 : vector<8x128xf32> -> vector<8x128xf32>
    %56 = arith.mulf %51, %55 : vector<8x128xf32>
    %cst_20 = arith.constant 0.000000e+00 : f32
    %57 = arith.cmpf ogt, %30, %cst_20 : f32
    %cst_21 = arith.constant 0.000000e+00 : f32
    %58 = vector.broadcast %cst_21 : f32 to vector<8x128xf32>
    %59 = arith.select %57, %58, %56 : vector<8x128xf32>
    %cst_22 = arith.constant -1.000000e+00 : f32
    %60 = vector.broadcast %cst_22 : f32 to vector<8x128xf32>
    %61 = arith.select %10, %59, %60 : vector<8x128xi1>, vector<8x128xf32>
    %62 = vector.broadcast %32 : f32 to vector<8x128xf32>
    %63 = arith.cmpf oeq, %61, %62 : vector<8x128xf32>
    %64 = arith.ori %18, %63 : vector<8x128xi1>
    %65 = vector.broadcast %20 : f32 to vector<8x128xf32>
    %66 = vector.broadcast %22 : f32 to vector<8x128xf32>
    %67 = vector.broadcast %24 : f32 to vector<8x128xf32>
    %68 = vector.broadcast %26 : f32 to vector<8x128xf32>
    %69 = arith.index_cast %arg0 : i32 to index
    %c8 = arith.constant 8 : index
    %70 = memref.load %arg2[%69, %c8] : memref<2x64xf32, #tpu.memory_space<smem>>
    %71 = arith.index_cast %arg0 : i32 to index
    %c9 = arith.constant 9 : index
    %72 = memref.load %arg2[%71, %c9] : memref<2x64xf32, #tpu.memory_space<smem>>
    %73 = arith.index_cast %arg0 : i32 to index
    %c10 = arith.constant 10 : index
    %74 = memref.load %arg2[%73, %c10] : memref<2x64xf32, #tpu.memory_space<smem>>
    %75 = arith.index_cast %arg0 : i32 to index
    %c11 = arith.constant 11 : index
    %76 = memref.load %arg2[%75, %c11] : memref<2x64xf32, #tpu.memory_space<smem>>
    %77 = arith.index_cast %arg0 : i32 to index
    %c12 = arith.constant 12 : index
    %78 = memref.load %arg2[%77, %c12] : memref<2x64xf32, #tpu.memory_space<smem>>
    %79 = arith.index_cast %arg0 : i32 to index
    %c13 = arith.constant 13 : index
    %80 = memref.load %arg2[%79, %c13] : memref<2x64xf32, #tpu.memory_space<smem>>
    %81 = arith.index_cast %arg0 : i32 to index
    %c14 = arith.constant 14 : index
    %82 = memref.load %arg2[%81, %c14] : memref<2x64xf32, #tpu.memory_space<smem>>
    %83 = vector.broadcast %74 : f32 to vector<8x128xf32>
    %84 = arith.minimumf %5, %83 : vector<8x128xf32>
    %85 = vector.broadcast %70 : f32 to vector<8x128xf32>
    %86 = arith.maximumf %1, %85 : vector<8x128xf32>
    %87 = arith.subf %84, %86 : vector<8x128xf32>
    %cst_23 = arith.constant 1.000000e+00 : f32
    %88 = vector.broadcast %cst_23 : f32 to vector<8x128xf32>
    %89 = arith.addf %87, %88 : vector<8x128xf32>
    %cst_24 = arith.constant 0.000000e+00 : f32
    %90 = vector.broadcast %cst_24 : f32 to vector<8x128xf32>
    %91 = arith.maximumf %89, %90 : vector<8x128xf32>
    %92 = vector.broadcast %76 : f32 to vector<8x128xf32>
    %93 = arith.minimumf %7, %92 : vector<8x128xf32>
    %94 = vector.broadcast %72 : f32 to vector<8x128xf32>
    %95 = arith.maximumf %3, %94 : vector<8x128xf32>
    %96 = arith.subf %93, %95 : vector<8x128xf32>
    %cst_25 = arith.constant 1.000000e+00 : f32
    %97 = vector.broadcast %cst_25 : f32 to vector<8x128xf32>
    %98 = arith.addf %96, %97 : vector<8x128xf32>
    %cst_26 = arith.constant 0.000000e+00 : f32
    %99 = vector.broadcast %cst_26 : f32 to vector<8x128xf32>
    %100 = arith.maximumf %98, %99 : vector<8x128xf32>
    %101 = arith.mulf %91, %100 : vector<8x128xf32>
    %102 = vector.broadcast %78 : f32 to vector<8x128xf32>
    %103 = arith.addf %17, %102 : vector<8x128xf32>
    %104 = arith.subf %103, %101 : vector<8x128xf32>
    %105 = tpu.reciprocal %104 : vector<8x128xf32> -> vector<8x128xf32>
    %106 = arith.mulf %101, %105 : vector<8x128xf32>
    %cst_27 = arith.constant 0.000000e+00 : f32
    %107 = arith.cmpf ogt, %80, %cst_27 : f32
    %cst_28 = arith.constant 0.000000e+00 : f32
    %108 = vector.broadcast %cst_28 : f32 to vector<8x128xf32>
    %109 = arith.select %107, %108, %106 : vector<8x128xf32>
    %cst_29 = arith.constant -1.000000e+00 : f32
    %110 = vector.broadcast %cst_29 : f32 to vector<8x128xf32>
    %111 = arith.select %10, %109, %110 : vector<8x128xi1>, vector<8x128xf32>
    %112 = vector.broadcast %82 : f32 to vector<8x128xf32>
    %113 = arith.cmpf oeq, %111, %112 : vector<8x128xf32>
    %114 = arith.ori %64, %113 : vector<8x128xi1>
    %115 = arith.cmpf ogt, %109, %59 : vector<8x128xf32>
    %116 = arith.select %115, %109, %59 : vector<8x128xi1>, vector<8x128xf32>
    %117 = vector.broadcast %70 : f32 to vector<8x128xf32>
    %118 = arith.select %115, %117, %65 : vector<8x128xi1>, vector<8x128xf32>
    %119 = vector.broadcast %72 : f32 to vector<8x128xf32>
    %120 = arith.select %115, %119, %66 : vector<8x128xi1>, vector<8x128xf32>
    %121 = vector.broadcast %74 : f32 to vector<8x128xf32>
    %122 = arith.select %115, %121, %67 : vector<8x128xi1>, vector<8x128xf32>
    %123 = vector.broadcast %76 : f32 to vector<8x128xf32>
    %124 = arith.select %115, %123, %68 : vector<8x128xi1>, vector<8x128xf32>
    %125 = arith.index_cast %arg0 : i32 to index
    %c16 = arith.constant 16 : index
    %126 = memref.load %arg2[%125, %c16] : memref<2x64xf32, #tpu.memory_space<smem>>
    %127 = arith.index_cast %arg0 : i32 to index
    %c17 = arith.constant 17 : index
    %128 = memref.load %arg2[%127, %c17] : memref<2x64xf32, #tpu.memory_space<smem>>
    %129 = arith.index_cast %arg0 : i32 to index
    %c18 = arith.constant 18 : index
    %130 = memref.load %arg2[%129, %c18] : memref<2x64xf32, #tpu.memory_space<smem>>
    %131 = arith.index_cast %arg0 : i32 to index
    %c19 = arith.constant 19 : index
    %132 = memref.load %arg2[%131, %c19] : memref<2x64xf32, #tpu.memory_space<smem>>
    %133 = arith.index_cast %arg0 : i32 to index
    %c20 = arith.constant 20 : index
    %134 = memref.load %arg2[%133, %c20] : memref<2x64xf32, #tpu.memory_space<smem>>
    %135 = arith.index_cast %arg0 : i32 to index
    %c21 = arith.constant 21 : index
    %136 = memref.load %arg2[%135, %c21] : memref<2x64xf32, #tpu.memory_space<smem>>
    %137 = arith.index_cast %arg0 : i32 to index
    %c22 = arith.constant 22 : index
    %138 = memref.load %arg2[%137, %c22] : memref<2x64xf32, #tpu.memory_space<smem>>
    %139 = vector.broadcast %130 : f32 to vector<8x128xf32>
    %140 = arith.minimumf %5, %139 : vector<8x128xf32>
    %141 = vector.broadcast %126 : f32 to vector<8x128xf32>
    %142 = arith.maximumf %1, %141 : vector<8x128xf32>
    %143 = arith.subf %140, %142 : vector<8x128xf32>
    %cst_30 = arith.constant 1.000000e+00 : f32
    %144 = vector.broadcast %cst_30 : f32 to vector<8x128xf32>
    %145 = arith.addf %143, %144 : vector<8x128xf32>
    %cst_31 = arith.constant 0.000000e+00 : f32
    %146 = vector.broadcast %cst_31 : f32 to vector<8x128xf32>
    %147 = arith.maximumf %145, %146 : vector<8x128xf32>
    %148 = vector.broadcast %132 : f32 to vector<8x128xf32>
    %149 = arith.minimumf %7, %148 : vector<8x128xf32>
    %150 = vector.broadcast %128 : f32 to vector<8x128xf32>
    %151 = arith.maximumf %3, %150 : vector<8x128xf32>
    %152 = arith.subf %149, %151 : vector<8x128xf32>
    %cst_32 = arith.constant 1.000000e+00 : f32
    %153 = vector.broadcast %cst_32 : f32 to vector<8x128xf32>
    %154 = arith.addf %152, %153 : vector<8x128xf32>
    %cst_33 = arith.constant 0.000000e+00 : f32
    %155 = vector.broadcast %cst_33 : f32 to vector<8x128xf32>
    %156 = arith.maximumf %154, %155 : vector<8x128xf32>
    %157 = arith.mulf %147, %156 : vector<8x128xf32>
    %158 = vector.broadcast %134 : f32 to vector<8x128xf32>
    %159 = arith.addf %17, %158 : vector<8x128xf32>
    %160 = arith.subf %159, %157 : vector<8x128xf32>
    %161 = tpu.reciprocal %160 : vector<8x128xf32> -> vector<8x128xf32>
    %162 = arith.mulf %157, %161 : vector<8x128xf32>
    %cst_34 = arith.constant 0.000000e+00 : f32
    %163 = arith.cmpf ogt, %136, %cst_34 : f32
    %cst_35 = arith.constant 0.000000e+00 : f32
    %164 = vector.broadcast %cst_35 : f32 to vector<8x128xf32>
    %165 = arith.select %163, %164, %162 : vector<8x128xf32>
    %cst_36 = arith.constant -1.000000e+00 : f32
    %166 = vector.broadcast %cst_36 : f32 to vector<8x128xf32>
    %167 = arith.select %10, %165, %166 : vector<8x128xi1>, vector<8x128xf32>
    %168 = vector.broadcast %138 : f32 to vector<8x128xf32>
    %169 = arith.cmpf oeq, %167, %168 : vector<8x128xf32>
    %170 = arith.ori %114, %169 : vector<8x128xi1>
    %171 = arith.cmpf ogt, %165, %116 : vector<8x128xf32>
    %172 = arith.select %171, %165, %116 : vector<8x128xi1>, vector<8x128xf32>
    %173 = vector.broadcast %126 : f32 to vector<8x128xf32>
    %174 = arith.select %171, %173, %118 : vector<8x128xi1>, vector<8x128xf32>
    %175 = vector.broadcast %128 : f32 to vector<8x128xf32>
    %176 = arith.select %171, %175, %120 : vector<8x128xi1>, vector<8x128xf32>
    %177 = vector.broadcast %130 : f32 to vector<8x128xf32>
    %178 = arith.select %171, %177, %122 : vector<8x128xi1>, vector<8x128xf32>
    %179 = vector.broadcast %132 : f32 to vector<8x128xf32>
    %180 = arith.select %171, %179, %124 : vector<8x128xi1>, vector<8x128xf32>
    %181 = arith.index_cast %arg0 : i32 to index
    %c24 = arith.constant 24 : index
    %182 = memref.load %arg2[%181, %c24] : memref<2x64xf32, #tpu.memory_space<smem>>
    %183 = arith.index_cast %arg0 : i32 to index
    %c25 = arith.constant 25 : index
    %184 = memref.load %arg2[%183, %c25] : memref<2x64xf32, #tpu.memory_space<smem>>
    %185 = arith.index_cast %arg0 : i32 to index
    %c26 = arith.constant 26 : index
    %186 = memref.load %arg2[%185, %c26] : memref<2x64xf32, #tpu.memory_space<smem>>
    %187 = arith.index_cast %arg0 : i32 to index
    %c27 = arith.constant 27 : index
    %188 = memref.load %arg2[%187, %c27] : memref<2x64xf32, #tpu.memory_space<smem>>
    %189 = arith.index_cast %arg0 : i32 to index
    %c28 = arith.constant 28 : index
    %190 = memref.load %arg2[%189, %c28] : memref<2x64xf32, #tpu.memory_space<smem>>
    %191 = arith.index_cast %arg0 : i32 to index
    %c29 = arith.constant 29 : index
    %192 = memref.load %arg2[%191, %c29] : memref<2x64xf32, #tpu.memory_space<smem>>
    %193 = arith.index_cast %arg0 : i32 to index
    %c30 = arith.constant 30 : index
    %194 = memref.load %arg2[%193, %c30] : memref<2x64xf32, #tpu.memory_space<smem>>
    %195 = vector.broadcast %186 : f32 to vector<8x128xf32>
    %196 = arith.minimumf %5, %195 : vector<8x128xf32>
    %197 = vector.broadcast %182 : f32 to vector<8x128xf32>
    %198 = arith.maximumf %1, %197 : vector<8x128xf32>
    %199 = arith.subf %196, %198 : vector<8x128xf32>
    %cst_37 = arith.constant 1.000000e+00 : f32
    %200 = vector.broadcast %cst_37 : f32 to vector<8x128xf32>
    %201 = arith.addf %199, %200 : vector<8x128xf32>
    %cst_38 = arith.constant 0.000000e+00 : f32
    %202 = vector.broadcast %cst_38 : f32 to vector<8x128xf32>
    %203 = arith.maximumf %201, %202 : vector<8x128xf32>
    %204 = vector.broadcast %188 : f32 to vector<8x128xf32>
    %205 = arith.minimumf %7, %204 : vector<8x128xf32>
    %206 = vector.broadcast %184 : f32 to vector<8x128xf32>
    %207 = arith.maximumf %3, %206 : vector<8x128xf32>
    %208 = arith.subf %205, %207 : vector<8x128xf32>
    %cst_39 = arith.constant 1.000000e+00 : f32
    %209 = vector.broadcast %cst_39 : f32 to vector<8x128xf32>
    %210 = arith.addf %208, %209 : vector<8x128xf32>
    %cst_40 = arith.constant 0.000000e+00 : f32
    %211 = vector.broadcast %cst_40 : f32 to vector<8x128xf32>
    %212 = arith.maximumf %210, %211 : vector<8x128xf32>
    %213 = arith.mulf %203, %212 : vector<8x128xf32>
    %214 = vector.broadcast %190 : f32 to vector<8x128xf32>
    %215 = arith.addf %17, %214 : vector<8x128xf32>
    %216 = arith.subf %215, %213 : vector<8x128xf32>
    %217 = tpu.reciprocal %216 : vector<8x128xf32> -> vector<8x128xf32>
    %218 = arith.mulf %213, %217 : vector<8x128xf32>
    %cst_41 = arith.constant 0.000000e+00 : f32
    %219 = arith.cmpf ogt, %192, %cst_41 : f32
    %cst_42 = arith.constant 0.000000e+00 : f32
    %220 = vector.broadcast %cst_42 : f32 to vector<8x128xf32>
    %221 = arith.select %219, %220, %218 : vector<8x128xf32>
    %cst_43 = arith.constant -1.000000e+00 : f32
    %222 = vector.broadcast %cst_43 : f32 to vector<8x128xf32>
    %223 = arith.select %10, %221, %222 : vector<8x128xi1>, vector<8x128xf32>
    %224 = vector.broadcast %194 : f32 to vector<8x128xf32>
    %225 = arith.cmpf oeq, %223, %224 : vector<8x128xf32>
    %226 = arith.ori %170, %225 : vector<8x128xi1>
    %227 = arith.cmpf ogt, %221, %172 : vector<8x128xf32>
    %228 = arith.select %227, %221, %172 : vector<8x128xi1>, vector<8x128xf32>
    %229 = vector.broadcast %182 : f32 to vector<8x128xf32>
    %230 = arith.select %227, %229, %174 : vector<8x128xi1>, vector<8x128xf32>
    %231 = vector.broadcast %184 : f32 to vector<8x128xf32>
    %232 = arith.select %227, %231, %176 : vector<8x128xi1>, vector<8x128xf32>
    %233 = vector.broadcast %186 : f32 to vector<8x128xf32>
    %234 = arith.select %227, %233, %178 : vector<8x128xi1>, vector<8x128xf32>
    %235 = vector.broadcast %188 : f32 to vector<8x128xf32>
    %236 = arith.select %227, %235, %180 : vector<8x128xi1>, vector<8x128xf32>
    %237 = arith.index_cast %arg0 : i32 to index
    %c32 = arith.constant 32 : index
    %238 = memref.load %arg2[%237, %c32] : memref<2x64xf32, #tpu.memory_space<smem>>
    %239 = arith.index_cast %arg0 : i32 to index
    %c33 = arith.constant 33 : index
    %240 = memref.load %arg2[%239, %c33] : memref<2x64xf32, #tpu.memory_space<smem>>
    %241 = arith.index_cast %arg0 : i32 to index
    %c34 = arith.constant 34 : index
    %242 = memref.load %arg2[%241, %c34] : memref<2x64xf32, #tpu.memory_space<smem>>
    %243 = arith.index_cast %arg0 : i32 to index
    %c35 = arith.constant 35 : index
    %244 = memref.load %arg2[%243, %c35] : memref<2x64xf32, #tpu.memory_space<smem>>
    %245 = arith.index_cast %arg0 : i32 to index
    %c36 = arith.constant 36 : index
    %246 = memref.load %arg2[%245, %c36] : memref<2x64xf32, #tpu.memory_space<smem>>
    %247 = arith.index_cast %arg0 : i32 to index
    %c37 = arith.constant 37 : index
    %248 = memref.load %arg2[%247, %c37] : memref<2x64xf32, #tpu.memory_space<smem>>
    %249 = arith.index_cast %arg0 : i32 to index
    %c38 = arith.constant 38 : index
    %250 = memref.load %arg2[%249, %c38] : memref<2x64xf32, #tpu.memory_space<smem>>
    %251 = vector.broadcast %242 : f32 to vector<8x128xf32>
    %252 = arith.minimumf %5, %251 : vector<8x128xf32>
    %253 = vector.broadcast %238 : f32 to vector<8x128xf32>
    %254 = arith.maximumf %1, %253 : vector<8x128xf32>
    %255 = arith.subf %252, %254 : vector<8x128xf32>
    %cst_44 = arith.constant 1.000000e+00 : f32
    %256 = vector.broadcast %cst_44 : f32 to vector<8x128xf32>
    %257 = arith.addf %255, %256 : vector<8x128xf32>
    %cst_45 = arith.constant 0.000000e+00 : f32
    %258 = vector.broadcast %cst_45 : f32 to vector<8x128xf32>
    %259 = arith.maximumf %257, %258 : vector<8x128xf32>
    %260 = vector.broadcast %244 : f32 to vector<8x128xf32>
    %261 = arith.minimumf %7, %260 : vector<8x128xf32>
    %262 = vector.broadcast %240 : f32 to vector<8x128xf32>
    %263 = arith.maximumf %3, %262 : vector<8x128xf32>
    %264 = arith.subf %261, %263 : vector<8x128xf32>
    %cst_46 = arith.constant 1.000000e+00 : f32
    %265 = vector.broadcast %cst_46 : f32 to vector<8x128xf32>
    %266 = arith.addf %264, %265 : vector<8x128xf32>
    %cst_47 = arith.constant 0.000000e+00 : f32
    %267 = vector.broadcast %cst_47 : f32 to vector<8x128xf32>
    %268 = arith.maximumf %266, %267 : vector<8x128xf32>
    %269 = arith.mulf %259, %268 : vector<8x128xf32>
    %270 = vector.broadcast %246 : f32 to vector<8x128xf32>
    %271 = arith.addf %17, %270 : vector<8x128xf32>
    %272 = arith.subf %271, %269 : vector<8x128xf32>
    %273 = tpu.reciprocal %272 : vector<8x128xf32> -> vector<8x128xf32>
    %274 = arith.mulf %269, %273 : vector<8x128xf32>
    %cst_48 = arith.constant 0.000000e+00 : f32
    %275 = arith.cmpf ogt, %248, %cst_48 : f32
    %cst_49 = arith.constant 0.000000e+00 : f32
    %276 = vector.broadcast %cst_49 : f32 to vector<8x128xf32>
    %277 = arith.select %275, %276, %274 : vector<8x128xf32>
    %cst_50 = arith.constant -1.000000e+00 : f32
    %278 = vector.broadcast %cst_50 : f32 to vector<8x128xf32>
    %279 = arith.select %10, %277, %278 : vector<8x128xi1>, vector<8x128xf32>
    %280 = vector.broadcast %250 : f32 to vector<8x128xf32>
    %281 = arith.cmpf oeq, %279, %280 : vector<8x128xf32>
    %282 = arith.ori %226, %281 : vector<8x128xi1>
    %283 = arith.cmpf ogt, %277, %228 : vector<8x128xf32>
    %284 = arith.select %283, %277, %228 : vector<8x128xi1>, vector<8x128xf32>
    %285 = vector.broadcast %238 : f32 to vector<8x128xf32>
    %286 = arith.select %283, %285, %230 : vector<8x128xi1>, vector<8x128xf32>
    %287 = vector.broadcast %240 : f32 to vector<8x128xf32>
    %288 = arith.select %283, %287, %232 : vector<8x128xi1>, vector<8x128xf32>
    %289 = vector.broadcast %242 : f32 to vector<8x128xf32>
    %290 = arith.select %283, %289, %234 : vector<8x128xi1>, vector<8x128xf32>
    %291 = vector.broadcast %244 : f32 to vector<8x128xf32>
    %292 = arith.select %283, %291, %236 : vector<8x128xi1>, vector<8x128xf32>
    %293 = arith.index_cast %arg0 : i32 to index
    %c40 = arith.constant 40 : index
    %294 = memref.load %arg2[%293, %c40] : memref<2x64xf32, #tpu.memory_space<smem>>
    %295 = arith.index_cast %arg0 : i32 to index
    %c41 = arith.constant 41 : index
    %296 = memref.load %arg2[%295, %c41] : memref<2x64xf32, #tpu.memory_space<smem>>
    %297 = arith.index_cast %arg0 : i32 to index
    %c42 = arith.constant 42 : index
    %298 = memref.load %arg2[%297, %c42] : memref<2x64xf32, #tpu.memory_space<smem>>
    %299 = arith.index_cast %arg0 : i32 to index
    %c43 = arith.constant 43 : index
    %300 = memref.load %arg2[%299, %c43] : memref<2x64xf32, #tpu.memory_space<smem>>
    %301 = arith.index_cast %arg0 : i32 to index
    %c44 = arith.constant 44 : index
    %302 = memref.load %arg2[%301, %c44] : memref<2x64xf32, #tpu.memory_space<smem>>
    %303 = arith.index_cast %arg0 : i32 to index
    %c45 = arith.constant 45 : index
    %304 = memref.load %arg2[%303, %c45] : memref<2x64xf32, #tpu.memory_space<smem>>
    %305 = arith.index_cast %arg0 : i32 to index
    %c46 = arith.constant 46 : index
    %306 = memref.load %arg2[%305, %c46] : memref<2x64xf32, #tpu.memory_space<smem>>
    %307 = vector.broadcast %298 : f32 to vector<8x128xf32>
    %308 = arith.minimumf %5, %307 : vector<8x128xf32>
    %309 = vector.broadcast %294 : f32 to vector<8x128xf32>
    %310 = arith.maximumf %1, %309 : vector<8x128xf32>
    %311 = arith.subf %308, %310 : vector<8x128xf32>
    %cst_51 = arith.constant 1.000000e+00 : f32
    %312 = vector.broadcast %cst_51 : f32 to vector<8x128xf32>
    %313 = arith.addf %311, %312 : vector<8x128xf32>
    %cst_52 = arith.constant 0.000000e+00 : f32
    %314 = vector.broadcast %cst_52 : f32 to vector<8x128xf32>
    %315 = arith.maximumf %313, %314 : vector<8x128xf32>
    %316 = vector.broadcast %300 : f32 to vector<8x128xf32>
    %317 = arith.minimumf %7, %316 : vector<8x128xf32>
    %318 = vector.broadcast %296 : f32 to vector<8x128xf32>
    %319 = arith.maximumf %3, %318 : vector<8x128xf32>
    %320 = arith.subf %317, %319 : vector<8x128xf32>
    %cst_53 = arith.constant 1.000000e+00 : f32
    %321 = vector.broadcast %cst_53 : f32 to vector<8x128xf32>
    %322 = arith.addf %320, %321 : vector<8x128xf32>
    %cst_54 = arith.constant 0.000000e+00 : f32
    %323 = vector.broadcast %cst_54 : f32 to vector<8x128xf32>
    %324 = arith.maximumf %322, %323 : vector<8x128xf32>
    %325 = arith.mulf %315, %324 : vector<8x128xf32>
    %326 = vector.broadcast %302 : f32 to vector<8x128xf32>
    %327 = arith.addf %17, %326 : vector<8x128xf32>
    %328 = arith.subf %327, %325 : vector<8x128xf32>
    %329 = tpu.reciprocal %328 : vector<8x128xf32> -> vector<8x128xf32>
    %330 = arith.mulf %325, %329 : vector<8x128xf32>
    %cst_55 = arith.constant 0.000000e+00 : f32
    %331 = arith.cmpf ogt, %304, %cst_55 : f32
    %cst_56 = arith.constant 0.000000e+00 : f32
    %332 = vector.broadcast %cst_56 : f32 to vector<8x128xf32>
    %333 = arith.select %331, %332, %330 : vector<8x128xf32>
    %cst_57 = arith.constant -1.000000e+00 : f32
    %334 = vector.broadcast %cst_57 : f32 to vector<8x128xf32>
    %335 = arith.select %10, %333, %334 : vector<8x128xi1>, vector<8x128xf32>
    %336 = vector.broadcast %306 : f32 to vector<8x128xf32>
    %337 = arith.cmpf oeq, %335, %336 : vector<8x128xf32>
    %338 = arith.ori %282, %337 : vector<8x128xi1>
    %339 = arith.cmpf ogt, %333, %284 : vector<8x128xf32>
    %340 = arith.select %339, %333, %284 : vector<8x128xi1>, vector<8x128xf32>
    %341 = vector.broadcast %294 : f32 to vector<8x128xf32>
    %342 = arith.select %339, %341, %286 : vector<8x128xi1>, vector<8x128xf32>
    %343 = vector.broadcast %296 : f32 to vector<8x128xf32>
    %344 = arith.select %339, %343, %288 : vector<8x128xi1>, vector<8x128xf32>
    %345 = vector.broadcast %298 : f32 to vector<8x128xf32>
    %346 = arith.select %339, %345, %290 : vector<8x128xi1>, vector<8x128xf32>
    %347 = vector.broadcast %300 : f32 to vector<8x128xf32>
    %348 = arith.select %339, %347, %292 : vector<8x128xi1>, vector<8x128xf32>
    %349 = arith.index_cast %arg0 : i32 to index
    %c48 = arith.constant 48 : index
    %350 = memref.load %arg2[%349, %c48] : memref<2x64xf32, #tpu.memory_space<smem>>
    %351 = arith.index_cast %arg0 : i32 to index
    %c49 = arith.constant 49 : index
    %352 = memref.load %arg2[%351, %c49] : memref<2x64xf32, #tpu.memory_space<smem>>
    %353 = arith.index_cast %arg0 : i32 to index
    %c50 = arith.constant 50 : index
    %354 = memref.load %arg2[%353, %c50] : memref<2x64xf32, #tpu.memory_space<smem>>
    %355 = arith.index_cast %arg0 : i32 to index
    %c51 = arith.constant 51 : index
    %356 = memref.load %arg2[%355, %c51] : memref<2x64xf32, #tpu.memory_space<smem>>
    %357 = arith.index_cast %arg0 : i32 to index
    %c52 = arith.constant 52 : index
    %358 = memref.load %arg2[%357, %c52] : memref<2x64xf32, #tpu.memory_space<smem>>
    %359 = arith.index_cast %arg0 : i32 to index
    %c53 = arith.constant 53 : index
    %360 = memref.load %arg2[%359, %c53] : memref<2x64xf32, #tpu.memory_space<smem>>
    %361 = arith.index_cast %arg0 : i32 to index
    %c54 = arith.constant 54 : index
    %362 = memref.load %arg2[%361, %c54] : memref<2x64xf32, #tpu.memory_space<smem>>
    %363 = vector.broadcast %354 : f32 to vector<8x128xf32>
    %364 = arith.minimumf %5, %363 : vector<8x128xf32>
    %365 = vector.broadcast %350 : f32 to vector<8x128xf32>
    %366 = arith.maximumf %1, %365 : vector<8x128xf32>
    %367 = arith.subf %364, %366 : vector<8x128xf32>
    %cst_58 = arith.constant 1.000000e+00 : f32
    %368 = vector.broadcast %cst_58 : f32 to vector<8x128xf32>
    %369 = arith.addf %367, %368 : vector<8x128xf32>
    %cst_59 = arith.constant 0.000000e+00 : f32
    %370 = vector.broadcast %cst_59 : f32 to vector<8x128xf32>
    %371 = arith.maximumf %369, %370 : vector<8x128xf32>
    %372 = vector.broadcast %356 : f32 to vector<8x128xf32>
    %373 = arith.minimumf %7, %372 : vector<8x128xf32>
    %374 = vector.broadcast %352 : f32 to vector<8x128xf32>
    %375 = arith.maximumf %3, %374 : vector<8x128xf32>
    %376 = arith.subf %373, %375 : vector<8x128xf32>
    %cst_60 = arith.constant 1.000000e+00 : f32
    %377 = vector.broadcast %cst_60 : f32 to vector<8x128xf32>
    %378 = arith.addf %376, %377 : vector<8x128xf32>
    %cst_61 = arith.constant 0.000000e+00 : f32
    %379 = vector.broadcast %cst_61 : f32 to vector<8x128xf32>
    %380 = arith.maximumf %378, %379 : vector<8x128xf32>
    %381 = arith.mulf %371, %380 : vector<8x128xf32>
    %382 = vector.broadcast %358 : f32 to vector<8x128xf32>
    %383 = arith.addf %17, %382 : vector<8x128xf32>
    %384 = arith.subf %383, %381 : vector<8x128xf32>
    %385 = tpu.reciprocal %384 : vector<8x128xf32> -> vector<8x128xf32>
    %386 = arith.mulf %381, %385 : vector<8x128xf32>
    %cst_62 = arith.constant 0.000000e+00 : f32
    %387 = arith.cmpf ogt, %360, %cst_62 : f32
    %cst_63 = arith.constant 0.000000e+00 : f32
    %388 = vector.broadcast %cst_63 : f32 to vector<8x128xf32>
    %389 = arith.select %387, %388, %386 : vector<8x128xf32>
    %cst_64 = arith.constant -1.000000e+00 : f32
    %390 = vector.broadcast %cst_64 : f32 to vector<8x128xf32>
    %391 = arith.select %10, %389, %390 : vector<8x128xi1>, vector<8x128xf32>
    %392 = vector.broadcast %362 : f32 to vector<8x128xf32>
    %393 = arith.cmpf oeq, %391, %392 : vector<8x128xf32>
    %394 = arith.ori %338, %393 : vector<8x128xi1>
    %395 = arith.cmpf ogt, %389, %340 : vector<8x128xf32>
    %396 = arith.select %395, %389, %340 : vector<8x128xi1>, vector<8x128xf32>
    %397 = vector.broadcast %350 : f32 to vector<8x128xf32>
    %398 = arith.select %395, %397, %342 : vector<8x128xi1>, vector<8x128xf32>
    %399 = vector.broadcast %352 : f32 to vector<8x128xf32>
    %400 = arith.select %395, %399, %344 : vector<8x128xi1>, vector<8x128xf32>
    %401 = vector.broadcast %354 : f32 to vector<8x128xf32>
    %402 = arith.select %395, %401, %346 : vector<8x128xi1>, vector<8x128xf32>
    %403 = vector.broadcast %356 : f32 to vector<8x128xf32>
    %404 = arith.select %395, %403, %348 : vector<8x128xi1>, vector<8x128xf32>
    %405 = arith.index_cast %arg0 : i32 to index
    %c56 = arith.constant 56 : index
    %406 = memref.load %arg2[%405, %c56] : memref<2x64xf32, #tpu.memory_space<smem>>
    %407 = arith.index_cast %arg0 : i32 to index
    %c57 = arith.constant 57 : index
    %408 = memref.load %arg2[%407, %c57] : memref<2x64xf32, #tpu.memory_space<smem>>
    %409 = arith.index_cast %arg0 : i32 to index
    %c58 = arith.constant 58 : index
    %410 = memref.load %arg2[%409, %c58] : memref<2x64xf32, #tpu.memory_space<smem>>
    %411 = arith.index_cast %arg0 : i32 to index
    %c59 = arith.constant 59 : index
    %412 = memref.load %arg2[%411, %c59] : memref<2x64xf32, #tpu.memory_space<smem>>
    %413 = arith.index_cast %arg0 : i32 to index
    %c60 = arith.constant 60 : index
    %414 = memref.load %arg2[%413, %c60] : memref<2x64xf32, #tpu.memory_space<smem>>
    %415 = arith.index_cast %arg0 : i32 to index
    %c61 = arith.constant 61 : index
    %416 = memref.load %arg2[%415, %c61] : memref<2x64xf32, #tpu.memory_space<smem>>
    %417 = arith.index_cast %arg0 : i32 to index
    %c62 = arith.constant 62 : index
    %418 = memref.load %arg2[%417, %c62] : memref<2x64xf32, #tpu.memory_space<smem>>
    %419 = vector.broadcast %410 : f32 to vector<8x128xf32>
    %420 = arith.minimumf %5, %419 : vector<8x128xf32>
    %421 = vector.broadcast %406 : f32 to vector<8x128xf32>
    %422 = arith.maximumf %1, %421 : vector<8x128xf32>
    %423 = arith.subf %420, %422 : vector<8x128xf32>
    %cst_65 = arith.constant 1.000000e+00 : f32
    %424 = vector.broadcast %cst_65 : f32 to vector<8x128xf32>
    %425 = arith.addf %423, %424 : vector<8x128xf32>
    %cst_66 = arith.constant 0.000000e+00 : f32
    %426 = vector.broadcast %cst_66 : f32 to vector<8x128xf32>
    %427 = arith.maximumf %425, %426 : vector<8x128xf32>
    %428 = vector.broadcast %412 : f32 to vector<8x128xf32>
    %429 = arith.minimumf %7, %428 : vector<8x128xf32>
    %430 = vector.broadcast %408 : f32 to vector<8x128xf32>
    %431 = arith.maximumf %3, %430 : vector<8x128xf32>
    %432 = arith.subf %429, %431 : vector<8x128xf32>
    %cst_67 = arith.constant 1.000000e+00 : f32
    %433 = vector.broadcast %cst_67 : f32 to vector<8x128xf32>
    %434 = arith.addf %432, %433 : vector<8x128xf32>
    %cst_68 = arith.constant 0.000000e+00 : f32
    %435 = vector.broadcast %cst_68 : f32 to vector<8x128xf32>
    %436 = arith.maximumf %434, %435 : vector<8x128xf32>
    %437 = arith.mulf %427, %436 : vector<8x128xf32>
    %438 = vector.broadcast %414 : f32 to vector<8x128xf32>
    %439 = arith.addf %17, %438 : vector<8x128xf32>
    %440 = arith.subf %439, %437 : vector<8x128xf32>
    %441 = tpu.reciprocal %440 : vector<8x128xf32> -> vector<8x128xf32>
    %442 = arith.mulf %437, %441 : vector<8x128xf32>
    %cst_69 = arith.constant 0.000000e+00 : f32
    %443 = arith.cmpf ogt, %416, %cst_69 : f32
    %cst_70 = arith.constant 0.000000e+00 : f32
    %444 = vector.broadcast %cst_70 : f32 to vector<8x128xf32>
    %445 = arith.select %443, %444, %442 : vector<8x128xf32>
    %cst_71 = arith.constant -1.000000e+00 : f32
    %446 = vector.broadcast %cst_71 : f32 to vector<8x128xf32>
    %447 = arith.select %10, %445, %446 : vector<8x128xi1>, vector<8x128xf32>
    %448 = vector.broadcast %418 : f32 to vector<8x128xf32>
    %449 = arith.cmpf oeq, %447, %448 : vector<8x128xf32>
    %450 = arith.ori %394, %449 : vector<8x128xi1>
    %451 = arith.cmpf ogt, %445, %396 : vector<8x128xf32>
    %452 = arith.select %451, %445, %396 : vector<8x128xi1>, vector<8x128xf32>
    %453 = vector.broadcast %406 : f32 to vector<8x128xf32>
    %454 = arith.select %451, %453, %398 : vector<8x128xi1>, vector<8x128xf32>
    %455 = vector.broadcast %408 : f32 to vector<8x128xf32>
    %456 = arith.select %451, %455, %400 : vector<8x128xi1>, vector<8x128xf32>
    %457 = vector.broadcast %410 : f32 to vector<8x128xf32>
    %458 = arith.select %451, %457, %402 : vector<8x128xi1>, vector<8x128xf32>
    %459 = vector.broadcast %412 : f32 to vector<8x128xf32>
    %460 = arith.select %451, %459, %404 : vector<8x128xi1>, vector<8x128xf32>
    %cst_72 = arith.constant -1.000000e+00 : f32
    %461 = vector.broadcast %cst_72 : f32 to vector<8x128xf32>
    %cst_73 = arith.constant 3.000000e-01 : f32
    %462 = vector.broadcast %cst_73 : f32 to vector<8x128xf32>
    %463 = arith.cmpf olt, %452, %462 : vector<8x128xf32>
    %cst_74 = arith.constant 0.000000e+00 : f32
    %464 = vector.broadcast %cst_74 : f32 to vector<8x128xf32>
    %465 = arith.select %463, %464, %461 : vector<8x128xi1>, vector<8x128xf32>
    %cst_75 = arith.constant 1.000000e+00 : f32
    %466 = vector.broadcast %cst_75 : f32 to vector<8x128xf32>
    %467 = arith.select %450, %466, %465 : vector<8x128xi1>, vector<8x128xf32>
    %cst_76 = arith.constant 0.699999988 : f32
    %468 = vector.broadcast %cst_76 : f32 to vector<8x128xf32>
    %469 = arith.cmpf oge, %452, %468 : vector<8x128xf32>
    %cst_77 = arith.constant 1.000000e+00 : f32
    %470 = vector.broadcast %cst_77 : f32 to vector<8x128xf32>
    %471 = arith.select %469, %470, %467 : vector<8x128xi1>, vector<8x128xf32>
    %cst_78 = arith.constant -1.000000e+00 : f32
    %472 = vector.broadcast %cst_78 : f32 to vector<8x128xf32>
    %473 = arith.select %10, %471, %472 : vector<8x128xi1>, vector<8x128xf32>
    %c0_79 = arith.constant 0 : index
    %c0_80 = arith.constant 0 : index
    %c0_81 = arith.constant 0 : index
    %474 = vector.load %arg5[%c0_79, %c0_80, %c0_81] : memref<1x8x128xf32, #tpu.memory_space<vmem>>, vector<1x8x128xf32>
    %475 = vector.shape_cast %474 : vector<1x8x128xf32> to vector<8x128xf32>
    %476 = vector.shape_cast %473 : vector<8x128xf32> to vector<1x8x128xf32>
    tpu.vector_store %arg5[%c0_79, %c0_80, %c0_81], %476 {strides = array<i32>} : memref<1x8x128xf32, #tpu.memory_space<vmem>>, vector<1x8x128xf32>,
    %477 = tpu.reciprocal %13 : vector<8x128xf32> -> vector<8x128xf32>
    %478 = tpu.reciprocal %16 : vector<8x128xf32> -> vector<8x128xf32>
    %cst_82 = arith.constant 5.000000e-01 : f32
    %479 = vector.broadcast %cst_82 : f32 to vector<8x128xf32>
    %480 = arith.mulf %479, %13 : vector<8x128xf32>
    %481 = arith.addf %1, %480 : vector<8x128xf32>
    %cst_83 = arith.constant 5.000000e-01 : f32
    %482 = vector.broadcast %cst_83 : f32 to vector<8x128xf32>
    %483 = arith.mulf %482, %16 : vector<8x128xf32>
    %484 = arith.addf %3, %483 : vector<8x128xf32>
    %485 = arith.subf %458, %454 : vector<8x128xf32>
    %cst_84 = arith.constant 1.000000e+00 : f32
    %486 = vector.broadcast %cst_84 : f32 to vector<8x128xf32>
    %487 = arith.addf %485, %486 : vector<8x128xf32>
    %488 = arith.subf %460, %456 : vector<8x128xf32>
    %cst_85 = arith.constant 1.000000e+00 : f32
    %489 = vector.broadcast %cst_85 : f32 to vector<8x128xf32>
    %490 = arith.addf %488, %489 : vector<8x128xf32>
    %cst_86 = arith.constant 5.000000e-01 : f32
    %491 = vector.broadcast %cst_86 : f32 to vector<8x128xf32>
    %492 = arith.mulf %491, %487 : vector<8x128xf32>
    %493 = arith.addf %454, %492 : vector<8x128xf32>
    %cst_87 = arith.constant 5.000000e-01 : f32
    %494 = vector.broadcast %cst_87 : f32 to vector<8x128xf32>
    %495 = arith.mulf %494, %490 : vector<8x128xf32>
    %496 = arith.addf %456, %495 : vector<8x128xf32>
    %497 = arith.subf %493, %481 : vector<8x128xf32>
    %498 = arith.mulf %497, %477 : vector<8x128xf32>
    %499 = arith.subf %496, %484 : vector<8x128xf32>
    %500 = arith.mulf %499, %478 : vector<8x128xf32>
    %501 = arith.mulf %487, %477 : vector<8x128xf32>
    %502 = math.log %501 : vector<8x128xf32>
    %503 = arith.mulf %490, %478 : vector<8x128xf32>
    %504 = math.log %503 : vector<8x128xf32>
    %cst_88 = arith.constant 0.000000e+00 : f32
    %505 = vector.broadcast %cst_88 : f32 to vector<8x128xf32>
    %506 = arith.select %10, %498, %505 : vector<8x128xi1>, vector<8x128xf32>
    %c0_89 = arith.constant 0 : index
    %c0_90 = arith.constant 0 : index
    %c0_91 = arith.constant 0 : index
    %c0_92 = arith.constant 0 : index
    %507 = vector.load %arg6[%c0_89, %c0_90, %c0_91, %c0_92] : memref<1x4x8x128xf32, #tpu.memory_space<vmem>>, vector<1x1x8x128xf32>
    %508 = vector.shape_cast %507 : vector<1x1x8x128xf32> to vector<8x128xf32>
    %509 = vector.shape_cast %506 : vector<8x128xf32> to vector<1x1x8x128xf32>
    tpu.vector_store %arg6[%c0_89, %c0_90, %c0_91, %c0_92], %509 {strides = array<i32>} : memref<1x4x8x128xf32, #tpu.memory_space<vmem>>, vector<1x1x8x128xf32>,
    %510 = arith.select %10, %500, %505 : vector<8x128xi1>, vector<8x128xf32>
    %c0_93 = arith.constant 0 : index
    %c1_94 = arith.constant 1 : index
    %c0_95 = arith.constant 0 : index
    %c0_96 = arith.constant 0 : index
    %511 = vector.load %arg6[%c0_93, %c1_94, %c0_95, %c0_96] : memref<1x4x8x128xf32, #tpu.memory_space<vmem>>, vector<1x1x8x128xf32>
    %512 = vector.shape_cast %511 : vector<1x1x8x128xf32> to vector<8x128xf32>
    %513 = vector.shape_cast %510 : vector<8x128xf32> to vector<1x1x8x128xf32>
    tpu.vector_store %arg6[%c0_93, %c1_94, %c0_95, %c0_96], %513 {strides = array<i32>} : memref<1x4x8x128xf32, #tpu.memory_space<vmem>>, vector<1x1x8x128xf32>,
    %514 = arith.select %10, %502, %505 : vector<8x128xi1>, vector<8x128xf32>
    %c0_97 = arith.constant 0 : index
    %c2_98 = arith.constant 2 : index
    %c0_99 = arith.constant 0 : index
    %c0_100 = arith.constant 0 : index
    %515 = vector.load %arg6[%c0_97, %c2_98, %c0_99, %c0_100] : memref<1x4x8x128xf32, #tpu.memory_space<vmem>>, vector<1x1x8x128xf32>
    %516 = vector.shape_cast %515 : vector<1x1x8x128xf32> to vector<8x128xf32>
    %517 = vector.shape_cast %514 : vector<8x128xf32> to vector<1x1x8x128xf32>
    tpu.vector_store %arg6[%c0_97, %c2_98, %c0_99, %c0_100], %517 {strides = array<i32>} : memref<1x4x8x128xf32, #tpu.memory_space<vmem>>, vector<1x1x8x128xf32>,
    %518 = arith.select %10, %504, %505 : vector<8x128xi1>, vector<8x128xf32>
    %c0_101 = arith.constant 0 : index
    %c3_102 = arith.constant 3 : index
    %c0_103 = arith.constant 0 : index
    %c0_104 = arith.constant 0 : index
    %519 = vector.load %arg6[%c0_101, %c3_102, %c0_103, %c0_104] : memref<1x4x8x128xf32, #tpu.memory_space<vmem>>, vector<1x1x8x128xf32>
    %520 = vector.shape_cast %519 : vector<1x1x8x128xf32> to vector<8x128xf32>
    %521 = vector.shape_cast %518 : vector<8x128xf32> to vector<1x1x8x128xf32>
    tpu.vector_store %arg6[%c0_101, %c3_102, %c0_103, %c0_104], %521 {strides = array<i32>} : memref<1x4x8x128xf32, #tpu.memory_space<vmem>>, vector<1x1x8x128xf32>,
    return
  }
  func.func @transform_0(%arg0: i32, %arg1: i32) -> (i32, i32) {
    %c0_i32 = arith.constant 0 : i32
    %c0_i32_0 = arith.constant 0 : i32
    %c0_i32_1 = arith.constant 0 : i32
    return %c0_i32, %c0_i32_0 : i32, i32
  }
  func.func @transform_1(%arg0: i32, %arg1: i32) -> (i32, i32, i32) {
    %c0_i32 = arith.constant 0 : i32
    %c0_i32_0 = arith.constant 0 : i32
    %c0_i32_1 = arith.constant 0 : i32
    return %c0_i32, %c0_i32_0, %arg1 : i32, i32, i32
  }
  func.func @transform_2(%arg0: i32, %arg1: i32) -> (i32, i32) {
    %c0_i32 = arith.constant 0 : i32
    %c0_i32_0 = arith.constant 0 : i32
    return %c0_i32, %arg1 : i32, i32
  }
  func.func @transform_3(%arg0: i32, %arg1: i32) -> (i32, i32, i32) {
    %c0_i32 = arith.constant 0 : i32
    %c0_i32_0 = arith.constant 0 : i32
    return %arg0, %c0_i32, %arg1 : i32, i32, i32
  }
  func.func @transform_4(%arg0: i32, %arg1: i32) -> (i32, i32, i32, i32) {
    %c0_i32 = arith.constant 0 : i32
    %c0_i32_0 = arith.constant 0 : i32
    %c0_i32_1 = arith.constant 0 : i32
    return %arg0, %c0_i32, %c0_i32_0, %arg1 : i32, i32, i32, i32
  }
}

</mosaic_0001>

<llo_original>
// kernel: anchor_target_forward.4
$region0: #{anchor_target_forward.4}
  #allocation0 [shape = 'u32[]', space=smem, size = 0x4, offset = 0x4, fixed_abs, tag = 'smem constant byte address 0x4 - core index']
  #allocation1 [shape = 'u32[144,128]{1,0:T(1,128)}', space=vmem, size = 0x12000, scoped, tag = 'internal scratch']
  %s0 = inlined_call_operand.vmem [shape: f32[2,64], index: 0, kind: input, shape index: {}]
  %s1 = inlined_call_operand.vmem [shape: f32[4,8,128], index: 1, kind: input, shape index: {}]
  %s2 = inlined_call_operand.vmem [shape: f32[8,128], index: 2, kind: input, shape index: {}]
  %s3 = inlined_call_operand.vmem [shape: f32[2,8,128], index: 3, kind: output, shape index: {}]
  %s4 = sld [smem:[#allocation0]]
  $region53: #{anchor_target_forward.4} parent=0
    _
  %s6 = ssub.s32 1, %s4
  %s7 = scalar_select 0, %s6, %s4
  $region1: #{anchor_target_forward.4} parent=0
    #allocation2 [shape = 'u8[1024]{0}', space=smem, size = 0x400, scoped, tag = 'input window, operand 0, single buffered']
    #allocation3 [shape = 's32[2]{0}', space=sflag, size = 0x8, scoped, tag = 'scoped memory for anchor_target_forward.4']
    %8 = vsyncpa [#allocation3], 0
    loop: start=0, step=1, limit=4
    $region2: #{anchor_target_forward.4} parent=1 // loop_pre_header
      _
    $region3: #{anchor_target_forward.4} parent=1 // loop_header
      %s10 = sphi 0, %s14
      %p11 = scmp.ge.s32.totalorder %s10, 4
      %s17 = sphi 0, %s29
      %s18 = sphi 0, %s25
      %s19 = sphi 0, %s17
      %s20 = sphi 0, %s18
      %s21 = sphi 0, %s19
      %s22 = sphi 0, %s20
      %s30 = sphi 0, %s30
      %s32 = sphi 0, %s30
      %s33 = sphi 0, %s32
      %s47 = sphi 0, %s33
      %s53 = sphi 0, %s55
      %s56 = sphi 0, %s53
      %s57 = sphi 0, %s56
      %s73 = sphi 0, %s57
      %s79 = sphi 0, %s81
      %s82 = sphi 0, %s79
      %s83 = sphi 0, %s82
      %s99 = sphi 0, %s83
      %s105 = sphi 0, %s107
      %s108 = sphi 0, %s105
      %s109 = sphi 0, %s108
      %s125 = sphi 0, %s109
    $region4: #{anchor_target_forward.4} parent=1 // loop_header_branch
      %13 = sbr.rel (%p11) target = $region8
    $region5: #{anchor_target_forward.4} parent=1 // loop_body
      %s15 = ssub.s32 %s10, 1
      %s16 = ssub.s32 %s10, 2
      %s23 = sadd.s32 1, %s18
      %p24 = scmp.ge.s32.totalorder %s23, 1
      %s25 = scalar_select %p24, 0, %s23
      %s26 = sadd.s32 1, %s17
      %s27 = scalar_select %p24, %s26, %s17
      %p28 = scmp.ge.s32.totalorder %s27, 2
      %s29 = scalar_select %p28, 0, %s27
      %s31 = sadd.s32 %s30, 1
      %p34 = scmp.eq.s32.totalorder %s10, 1
      %p35 = scmp.ne.s32.totalorder %s30, %s32
      %p36 = scmp.eq.s32.totalorder %s10, 0
      %p37 = por %p35, %p36
      %p38 = scmp.ne.s32.totalorder %s30, %s32
      %p39 = scmp.eq.s32.totalorder %s15, 1
      %p40 = por %p38, %p39
      %p41 = scmp.ne.s32.totalorder %s32, %s33
      %p42 = scmp.eq.s32.totalorder %s15, 0
      %p43 = por %p41, %p42
      %p44 = scmp.ne.s32.totalorder %s32, %s33
      %p45 = scmp.eq.s32.totalorder %s16, 1
      %p46 = por %p44, %p45
      %p48 = scmp.ne.s32.totalorder %s33, %s47
      %p49 = scmp.eq.s32.totalorder %s16, 0
      %p50 = por %p48, %p49
      %s51 = ssub.s32 %s18, %s25
      %p52 = scmp.eq.s32.totalorder %s51, 0
      %s54 = sadd.s32 %s53, 1
      %s55 = scalar_select %p52, %s53, %s54
      %p58 = pneg %p52
      %p59 = scmp.eq.s32.totalorder %s10, 1
      %p60 = por %p58, %p59
      %p61 = scmp.ne.s32.totalorder %s53, %s56
      %p62 = scmp.eq.s32.totalorder %s10, 0
      %p63 = por %p61, %p62
      %p64 = scmp.ne.s32.totalorder %s53, %s56
      %p65 = scmp.eq.s32.totalorder %s15, 1
      %p66 = por %p64, %p65
      %p67 = scmp.ne.s32.totalorder %s56, %s57
      %p68 = scmp.eq.s32.totalorder %s15, 0
      %p69 = por %p67, %p68
      %p70 = scmp.ne.s32.totalorder %s56, %s57
      %p71 = scmp.eq.s32.totalorder %s16, 1
      %p72 = por %p70, %p71
      %p74 = scmp.ne.s32.totalorder %s57, %s73
      %p75 = scmp.eq.s32.totalorder %s16, 0
      %p76 = por %p74, %p75
      %s77 = ssub.s32 %s18, %s25
      %p78 = scmp.eq.s32.totalorder %s77, 0
      %s80 = sadd.s32 %s79, 1
      %s81 = scalar_select %p78, %s79, %s80
      %p84 = pneg %p78
      %p85 = scmp.eq.s32.totalorder %s10, 1
      %p86 = por %p84, %p85
      %p87 = scmp.ne.s32.totalorder %s79, %s82
      %p88 = scmp.eq.s32.totalorder %s10, 0
      %p89 = por %p87, %p88
      %p90 = scmp.ne.s32.totalorder %s79, %s82
      %p91 = scmp.eq.s32.totalorder %s15, 1
      %p92 = por %p90, %p91
      %p93 = scmp.ne.s32.totalorder %s82, %s83
      %p94 = scmp.eq.s32.totalorder %s15, 0
      %p95 = por %p93, %p94
      %p96 = scmp.ne.s32.totalorder %s82, %s83
      %p97 = scmp.eq.s32.totalorder %s16, 1
      %p98 = por %p96, %p97
      %p100 = scmp.ne.s32.totalorder %s83, %s99
      %p101 = scmp.eq.s32.totalorder %s16, 0
      %p102 = por %p100, %p101
      %s103 = ssub.s32 %s17, %s29
      %p104 = scmp.eq.s32.totalorder %s103, 0
      %s106 = sadd.s32 %s105, 1
      %s107 = scalar_select %p104, %s105, %s106
      %p110 = pneg %p104
      %p111 = scmp.eq.s32.totalorder %s10, 1
      %p112 = por %p110, %p111
      %p113 = scmp.ne.s32.totalorder %s105, %s108
      %p114 = scmp.eq.s32.totalorder %s10, 0
      %p115 = por %p113, %p114
      %p116 = scmp.ne.s32.totalorder %s105, %s108
      %p117 = scmp.eq.s32.totalorder %s15, 1
      %p118 = por %p116, %p117
      %p119 = scmp.ne.s32.totalorder %s108, %s109
      %p120 = scmp.eq.s32.totalorder %s15, 0
      %p121 = por %p119, %p120
      %p122 = scmp.ne.s32.totalorder %s108, %s109
      %p123 = scmp.eq.s32.totalorder %s16, 1
      %p124 = por %p122, %p123
      %p126 = scmp.ne.s32.totalorder %s109, %s125
      %p127 = scmp.eq.s32.totalorder %s16, 0
      %p128 = por %p126, %p127
      %p129 = scmp.le.s32.totalorder 1, %s10
      %p130 = scmp.lt.s32.totalorder %s10, 3
      %p131 = pnand %p129, %p130
      %p132 = pneg %p131
      // Predicated region
      $region9: #{anchor_target_forward.4} parent=5 // pred_check
        _
      $region10: #{anchor_target_forward.4} parent=5 // pred_check_branch
        %134 = sbr.rel (%p131) target = $region12
      $region11: #{anchor_target_forward.4} parent=5 // pred_region
        %s135 = ssub.s32 %s10, 1
        // Predicated region
        $region13: #{anchor_target_forward.4} parent=11 // pred_check
          %p136 = pneg %p43
        $region14: #{anchor_target_forward.4} parent=11 // pred_check_branch
          %138 = sbr.rel (%p136) target = $region16
        $region15: #{anchor_target_forward.4} parent=11 // pred_region
          %s140 = ssub.s32 32, 32
          %141 = vsyncadd [#allocation3], %s140
          %s143 = sshll.u32 %s0, 4
          %s144 = int_to_ptr.vmem [resolvable:$true] %s143
          %146 = dma.vmem_to_smem %s144, 32, [#allocation2], [#allocation3]
        $region16: #{anchor_target_forward.4} parent=11 // pred_fallthru
          _
        // Predicated region
        $region17: #{anchor_target_forward.4} parent=11 // pred_check
          %p147 = pneg %p69
        $region18: #{anchor_target_forward.4} parent=11 // pred_check_branch
          %149 = sbr.rel (%p147) target = $region20
        $region19: #{anchor_target_forward.4} parent=11 // pred_region
          %p150 = scmp.lt.s32.totalorder %s20, 0
          %s151 = scalar_select %p150, %s20, 0
          %s152 = smul.addr %s151, 8
          %s153 = scalar_lea.vmem %s1, %s152
        $region20: #{anchor_target_forward.4} parent=11 // pred_fallthru
          _
        // Predicated region
        $region21: #{anchor_target_forward.4} parent=11 // pred_check
          %p154 = pneg %p95
        $region22: #{anchor_target_forward.4} parent=11 // pred_check_branch
          %156 = sbr.rel (%p154) target = $region24
        $region23: #{anchor_target_forward.4} parent=11 // pred_region
          %p157 = scmp.lt.s32.totalorder %s20, 0
          %s158 = scalar_select %p157, %s20, 0
          %s159 = smul.addr %s158, 8
          %s160 = scalar_lea.vmem %s2, %s159
        $region24: #{anchor_target_forward.4} parent=11 // pred_fallthru
          _
      $region12: #{anchor_target_forward.4} parent=5 // pred_fallthru
        _
      %p161 = scmp.lt.s32.totalorder %s10, 2
      // Predicated region
      $region25: #{anchor_target_forward.4} parent=5 // pred_check
        %p162 = pneg %p161
      $region26: #{anchor_target_forward.4} parent=5 // pred_check_branch
        %164 = sbr.rel (%p162) target = $region28
      $region27: #{anchor_target_forward.4} parent=5 // pred_region
        _
      $region28: #{anchor_target_forward.4} parent=5 // pred_fallthru
        _
      %p165 = scmp.le.s32.totalorder 1, %s10
      %p166 = scmp.lt.s32.totalorder %s10, 3
      %p167 = pnand %p165, %p166
      %p168 = pneg %p167
      // Predicated region
      $region29: #{anchor_target_forward.4} parent=5 // pred_check
        _
      $region30: #{anchor_target_forward.4} parent=5 // pred_check_branch
        %170 = sbr.rel (%p167) target = $region32
      $region31: #{anchor_target_forward.4} parent=5 // pred_region
        %s171 = ssub.s32 %s10, 1
        // Predicated region
        $region33: #{anchor_target_forward.4} parent=31 // pred_check
          %p172 = pneg %p43
        $region34: #{anchor_target_forward.4} parent=31 // pred_check_branch
          %174 = sbr.rel (%p172) target = $region36
        $region35: #{anchor_target_forward.4} parent=31 // pred_region
          %175 = dma.done [#allocation3], 32
        $region36: #{anchor_target_forward.4} parent=31 // pred_fallthru
          _
        %176 = sfence
        %p177 = pneg %p43
        %p178 = pneg %p40
        %p179 = scmp.lt.s32.totalorder %s20, 0
        %s180 = scalar_select %p179, %s20, 0
        %s181 = smul.addr %s180, 8
        %s182 = scalar_lea.vmem %s1, %s181
        %p183 = pneg %p69
        %p184 = pneg %p66
        %p185 = scmp.lt.s32.totalorder %s20, 0
        %s186 = scalar_select %p185, %s20, 0
        %s187 = smul.addr %s186, 8
        %s188 = scalar_lea.vmem %s2, %s187
        %p189 = pneg %p95
        %p190 = pneg %p92
        %p191 = pneg %p121
        %p192 = pneg %p118
        %p193 = scmp.lt.s32.totalorder %s19, 1
        %s194 = scalar_select %p193, %s19, 1
        %s195 = smul.addr %s194, 8
        %s196 = scalar_lea.vmem %s3, %s195
        %p197 = scmp.lt.s32.totalorder %s20, 0
        %s198 = scalar_select %p197, %s20, 0
        %s199 = smul.addr %s198, 8
        %s200 = scalar_lea.vmem %s1, %s199
        %p201 = scmp.lt.s32.totalorder %s20, 0
        %s202 = scalar_select %p201, %s20, 0
        %s203 = smul.addr %s202, 8
        %s204 = scalar_lea.vmem %s2, %s203
        %p205 = scmp.lt.s32.totalorder %s19, 1
        %s206 = scalar_select %p205, %s19, 1
        %s207 = smul.addr %s206, 8
        %s208 = scalar_lea.vmem %s3, %s207
        %p209 = scmp.eq.s32.totalorder %s20, 0
        // Predicated region
        $region37: #{anchor_target_forward.4} parent=31 // pred_check
          %p210 = pneg %p209
        $region38: #{anchor_target_forward.4} parent=31 // pred_check_branch
          %212 = sbr.rel (%p210) target = $region40
        $region39: #{anchor_target_forward.4} parent=31 // pred_region
          %213 = vst [vmem:[%s208] sm:$0xff] -1.0
        $region40: #{anchor_target_forward.4} parent=31 // pred_fallthru
          _
        %v214 = vld [vmem:[%s200] sm:$0xff]
        %s215 = scalar_lea.vmem %s200, 8
        %v216 = vld [vmem:[%s215] sm:$0xff]
        %s217 = scalar_lea.vmem %s200, 16
        %v218 = vld [vmem:[%s217] sm:$0xff]
        %s219 = scalar_lea.vmem %s200, 24
        %v220 = vld [vmem:[%s219] sm:$0xff]
        %v221 = vld [vmem:[%s204] sm:$0xff]
        %vm222 = vcmp.gt.f32.partialorder %v221, 0.0
        %v223 = vsub.f32 %v218, %v214
        %v224 = vadd.f32 %v223, 1.0
        %v225 = vsub.f32 %v220, %v216
        %v226 = vadd.f32 %v225, 1.0
        %v227 = vmul.f32 %v224, %v226
        %s228 = smul.u32 %s19, 128
        %s229 = sld [smem:[#allocation2 + %s228]]
        %s230 = sadd.s32 %s228, 1
        %s231 = sld [smem:[#allocation2 + %s230]]
        %s232 = sadd.s32 %s228, 2
        %s233 = sld [smem:[#allocation2 + %s232]]
        %s234 = sadd.s32 %s228, 3
        %s235 = sld [smem:[#allocation2 + %s234]]
        %s236 = sadd.s32 %s228, 4
        %s237 = sld [smem:[#allocation2 + %s236]]
        %s238 = sadd.s32 %s228, 5
        %s239 = sld [smem:[#allocation2 + %s238]]
        %v240 = vstv %s233
        %v241 = vmin.f32 %v218, %v240
        %v242 = vstv %s229
        %v243 = vmax.f32 %v214, %v242
        %v244 = vsub.f32 %v241, %v243
        %v245 = vadd.f32 %v244, 1.0
        %v246 = vmax.f32 %v245, 0.0
        %v247 = vstv %s235
        %v248 = vmin.f32 %v220, %v247
        %v249 = vstv %s231
        %v250 = vmax.f32 %v216, %v249
        %v251 = vsub.f32 %v248, %v250
        %v252 = vadd.f32 %v251, 1.0
        %v253 = vmax.f32 %v252, 0.0
        %v254 = vmul.f32 %v246, %v253
        %v255 = vstv %s237
        %v256 = vadd.f32 %v227, %v255
        %v257 = vsub.f32 %v256, %v254
        %v258 = vrcp.pop %v257
        %v259 = vmul.f32 %v254, %v258
        %p260 = scmp.gt.f32.partialorder %s239, 0.0
        %s261 = scalar_select %p260, 1, 0
        %v262 = vstv %s261
        %vm263 = vcmp.eq.s32.totalorder %v262, 1
        %v264 = vsel %vm263, 0.0, %v259
        %v265 = vsel %vm222, %v264, -1.0
        %266 = vmax.xlane.f32.xlu0 %v265
        %v267 = vpop.xlane.xlu0 %266
        %v268 = vrot.slane %v267, 4
        %v269 = vmax.f32 %v267, %v268
        %v270 = vrot.slane %v269, 2
        %v271 = vmax.f32 %v269, %v270
        %v272 = vrot.slane %v271, 1
        %v273 = vmax.f32 %v271, %v272
        %s274 = vtos %v273
        %v275 = vstv %s274
        %v276 = vld [vmem:[%s208] sm:$0x1]
        %v277 = vmax.f32 %v276, %v275
        %vm278 = vcmask 0
        %279 = vst.msk [vmem:[%s208] sm:$0x1] %vm278, %v277
        %s280 = sadd.s32 %s228, 8
        %s281 = sld [smem:[#allocation2 + %s280]]
        %s282 = sadd.s32 %s228, 9
        %s283 = sld [smem:[#allocation2 + %s282]]
        %s284 = sadd.s32 %s228, 10
        %s285 = sld [smem:[#allocation2 + %s284]]
        %s286 = sadd.s32 %s228, 11
        %s287 = sld [smem:[#allocation2 + %s286]]
        %s288 = sadd.s32 %s228, 12
        %s289 = sld [smem:[#allocation2 + %s288]]
        %s290 = sadd.s32 %s228, 13
        %s291 = sld [smem:[#allocation2 + %s290]]
        %v292 = vstv %s285
        %v293 = vmin.f32 %v218, %v292
        %v294 = vstv %s281
        %v295 = vmax.f32 %v214, %v294
        %v296 = vsub.f32 %v293, %v295
        %v297 = vadd.f32 %v296, 1.0
        %v298 = vmax.f32 %v297, 0.0
        %v299 = vstv %s287
        %v300 = vmin.f32 %v220, %v299
        %v301 = vstv %s283
        %v302 = vmax.f32 %v216, %v301
        %v303 = vsub.f32 %v300, %v302
        %v304 = vadd.f32 %v303, 1.0
        %v305 = vmax.f32 %v304, 0.0
        %v306 = vmul.f32 %v298, %v305
        %v307 = vstv %s289
        %v308 = vadd.f32 %v227, %v307
        %v309 = vsub.f32 %v308, %v306
        %v310 = vrcp.pop %v309
        %v311 = vmul.f32 %v306, %v310
        %p312 = scmp.gt.f32.partialorder %s291, 0.0
        %s313 = scalar_select %p312, 1, 0
        %v314 = vstv %s313
        %vm315 = vcmp.eq.s32.totalorder %v314, 1
        %v316 = vsel %vm315, 0.0, %v311
        %v317 = vsel %vm222, %v316, -1.0
        %318 = vmax.xlane.f32.xlu0 %v317
        %v319 = vpop.xlane.xlu0 %318
        %v320 = vrot.slane %v319, 4
        %v321 = vmax.f32 %v319, %v320
        %v322 = vrot.slane %v321, 2
        %v323 = vmax.f32 %v321, %v322
        %v324 = vrot.slane %v323, 1
        %v325 = vmax.f32 %v323, %v324
        %s326 = vtos %v325
        %v327 = vstv %s326
        %v328 = vld [vmem:[%s208 + $0x1] sm:$0x1]
        %v329 = vmax.f32 %v328, %v327
        %330 = vst.msk [vmem:[%s208 + $0x1] sm:$0x1] %vm278, %v329
        %s331 = sadd.s32 %s228, 16
        %s332 = sld [smem:[#allocation2 + %s331]]
        %s333 = sadd.s32 %s228, 17
        %s334 = sld [smem:[#allocation2 + %s333]]
        %s335 = sadd.s32 %s228, 18
        %s336 = sld [smem:[#allocation2 + %s335]]
        %s337 = sadd.s32 %s228, 19
        %s338 = sld [smem:[#allocation2 + %s337]]
        %s339 = sadd.s32 %s228, 20
        %s340 = sld [smem:[#allocation2 + %s339]]
        %s341 = sadd.s32 %s228, 21
        %s342 = sld [smem:[#allocation2 + %s341]]
        %v343 = vstv %s336
        %v344 = vmin.f32 %v218, %v343
        %v345 = vstv %s332
        %v346 = vmax.f32 %v214, %v345
        %v347 = vsub.f32 %v344, %v346
        %v348 = vadd.f32 %v347, 1.0
        %v349 = vmax.f32 %v348, 0.0
        %v350 = vstv %s338
        %v351 = vmin.f32 %v220, %v350
        %v352 = vstv %s334
        %v353 = vmax.f32 %v216, %v352
        %v354 = vsub.f32 %v351, %v353
        %v355 = vadd.f32 %v354, 1.0
        %v356 = vmax.f32 %v355, 0.0
        %v357 = vmul.f32 %v349, %v356
        %v358 = vstv %s340
        %v359 = vadd.f32 %v227, %v358
        %v360 = vsub.f32 %v359, %v357
        %v361 = vrcp.pop %v360
        %v362 = vmul.f32 %v357, %v361
        %p363 = scmp.gt.f32.partialorder %s342, 0.0
        %s364 = scalar_select %p363, 1, 0
        %v365 = vstv %s364
        %vm366 = vcmp.eq.s32.totalorder %v365, 1
        %v367 = vsel %vm366, 0.0, %v362
        %v368 = vsel %vm222, %v367, -1.0
        %369 = vmax.xlane.f32.xlu0 %v368
        %v370 = vpop.xlane.xlu0 %369
        %v371 = vrot.slane %v370, 4
        %v372 = vmax.f32 %v370, %v371
        %v373 = vrot.slane %v372, 2
        %v374 = vmax.f32 %v372, %v373
        %v375 = vrot.slane %v374, 1
        %v376 = vmax.f32 %v374, %v375
        %s377 = vtos %v376
        %v378 = vstv %s377
        %v379 = vld [vmem:[%s208 + $0x2] sm:$0x1]
        %v380 = vmax.f32 %v379, %v378
        %381 = vst.msk [vmem:[%s208 + $0x2] sm:$0x1] %vm278, %v380
        %s382 = sadd.s32 %s228, 24
        %s383 = sld [smem:[#allocation2 + %s382]]
        %s384 = sadd.s32 %s228, 25
        %s385 = sld [smem:[#allocation2 + %s384]]
        %s386 = sadd.s32 %s228, 26
        %s387 = sld [smem:[#allocation2 + %s386]]
        %s388 = sadd.s32 %s228, 27
        %s389 = sld [smem:[#allocation2 + %s388]]
        %s390 = sadd.s32 %s228, 28
        %s391 = sld [smem:[#allocation2 + %s390]]
        %s392 = sadd.s32 %s228, 29
        %s393 = sld [smem:[#allocation2 + %s392]]
        %v394 = vstv %s387
        %v395 = vmin.f32 %v218, %v394
        %v396 = vstv %s383
        %v397 = vmax.f32 %v214, %v396
        %v398 = vsub.f32 %v395, %v397
        %v399 = vadd.f32 %v398, 1.0
        %v400 = vmax.f32 %v399, 0.0
        %v401 = vstv %s389
        %v402 = vmin.f32 %v220, %v401
        %v403 = vstv %s385
        %v404 = vmax.f32 %v216, %v403
        %v405 = vsub.f32 %v402, %v404
        %v406 = vadd.f32 %v405, 1.0
        %v407 = vmax.f32 %v406, 0.0
        %v408 = vmul.f32 %v400, %v407
        %v409 = vstv %s391
        %v410 = vadd.f32 %v227, %v409
        %v411 = vsub.f32 %v410, %v408
        %v412 = vrcp.pop %v411
        %v413 = vmul.f32 %v408, %v412
        %p414 = scmp.gt.f32.partialorder %s393, 0.0
        %s415 = scalar_select %p414, 1, 0
        %v416 = vstv %s415
        %vm417 = vcmp.eq.s32.totalorder %v416, 1
        %v418 = vsel %vm417, 0.0, %v413
        %v419 = vsel %vm222, %v418, -1.0
        %420 = vmax.xlane.f32.xlu0 %v419
        %v421 = vpop.xlane.xlu0 %420
        %v422 = vrot.slane %v421, 4
        %v423 = vmax.f32 %v421, %v422
        %v424 = vrot.slane %v423, 2
        %v425 = vmax.f32 %v423, %v424
        %v426 = vrot.slane %v425, 1
        %v427 = vmax.f32 %v425, %v426
        %s428 = vtos %v427
        %v429 = vstv %s428
        %v430 = vld [vmem:[%s208 + $0x3] sm:$0x1]
        %v431 = vmax.f32 %v430, %v429
        %432 = vst.msk [vmem:[%s208 + $0x3] sm:$0x1] %vm278, %v431
        %s433 = sadd.s32 %s228, 32
        %s434 = sld [smem:[#allocation2 + %s433]]
        %s435 = sadd.s32 %s228, 33
        %s436 = sld [smem:[#allocation2 + %s435]]
        %s437 = sadd.s32 %s228, 34
        %s438 = sld [smem:[#allocation2 + %s437]]
        %s439 = sadd.s32 %s228, 35
        %s440 = sld [smem:[#allocation2 + %s439]]
        %s441 = sadd.s32 %s228, 36
        %s442 = sld [smem:[#allocation2 + %s441]]
        %s443 = sadd.s32 %s228, 37
        %s444 = sld [smem:[#allocation2 + %s443]]
        %v445 = vstv %s438
        %v446 = vmin.f32 %v218, %v445
        %v447 = vstv %s434
        %v448 = vmax.f32 %v214, %v447
        %v449 = vsub.f32 %v446, %v448
        %v450 = vadd.f32 %v449, 1.0
        %v451 = vmax.f32 %v450, 0.0
        %v452 = vstv %s440
        %v453 = vmin.f32 %v220, %v452
        %v454 = vstv %s436
        %v455 = vmax.f32 %v216, %v454
        %v456 = vsub.f32 %v453, %v455
        %v457 = vadd.f32 %v456, 1.0
        %v458 = vmax.f32 %v457, 0.0
        %v459 = vmul.f32 %v451, %v458
        %v460 = vstv %s442
        %v461 = vadd.f32 %v227, %v460
        %v462 = vsub.f32 %v461, %v459
        %v463 = vrcp.pop %v462
        %v464 = vmul.f32 %v459, %v463
        %p465 = scmp.gt.f32.partialorder %s444, 0.0
        %s466 = scalar_select %p465, 1, 0
        %v467 = vstv %s466
        %vm468 = vcmp.eq.s32.totalorder %v467, 1
        %v469 = vsel %vm468, 0.0, %v464
        %v470 = vsel %vm222, %v469, -1.0
        %471 = vmax.xlane.f32.xlu0 %v470
        %v472 = vpop.xlane.xlu0 %471
        %v473 = vrot.slane %v472, 4
        %v474 = vmax.f32 %v472, %v473
        %v475 = vrot.slane %v474, 2
        %v476 = vmax.f32 %v474, %v475
        %v477 = vrot.slane %v476, 1
        %v478 = vmax.f32 %v476, %v477
        %s479 = vtos %v478
        %v480 = vstv %s479
        %v481 = vld [vmem:[%s208 + $0x4] sm:$0x1]
        %v482 = vmax.f32 %v481, %v480
        %483 = vst.msk [vmem:[%s208 + $0x4] sm:$0x1] %vm278, %v482
        %s484 = sadd.s32 %s228, 40
        %s485 = sld [smem:[#allocation2 + %s484]]
        %s486 = sadd.s32 %s228, 41
        %s487 = sld [smem:[#allocation2 + %s486]]
        %s488 = sadd.s32 %s228, 42
        %s489 = sld [smem:[#allocation2 + %s488]]
        %s490 = sadd.s32 %s228, 43
        %s491 = sld [smem:[#allocation2 + %s490]]
        %s492 = sadd.s32 %s228, 44
        %s493 = sld [smem:[#allocation2 + %s492]]
        %s494 = sadd.s32 %s228, 45
        %s495 = sld [smem:[#allocation2 + %s494]]
        %v496 = vstv %s489
        %v497 = vmin.f32 %v218, %v496
        %v498 = vstv %s485
        %v499 = vmax.f32 %v214, %v498
        %v500 = vsub.f32 %v497, %v499
        %v501 = vadd.f32 %v500, 1.0
        %v502 = vmax.f32 %v501, 0.0
        %v503 = vstv %s491
        %v504 = vmin.f32 %v220, %v503
        %v505 = vstv %s487
        %v506 = vmax.f32 %v216, %v505
        %v507 = vsub.f32 %v504, %v506
        %v508 = vadd.f32 %v507, 1.0
        %v509 = vmax.f32 %v508, 0.0
        %v510 = vmul.f32 %v502, %v509
        %v511 = vstv %s493
        %v512 = vadd.f32 %v227, %v511
        %v513 = vsub.f32 %v512, %v510
        %v514 = vrcp.pop %v513
        %v515 = vmul.f32 %v510, %v514
        %p516 = scmp.gt.f32.partialorder %s495, 0.0
        %s517 = scalar_select %p516, 1, 0
        %v518 = vstv %s517
        %vm519 = vcmp.eq.s32.totalorder %v518, 1
        %v520 = vsel %vm519, 0.0, %v515
        %v521 = vsel %vm222, %v520, -1.0
        %522 = vmax.xlane.f32.xlu0 %v521
        %v523 = vpop.xlane.xlu0 %522
        %v524 = vrot.slane %v523, 4
        %v525 = vmax.f32 %v523, %v524
        %v526 = vrot.slane %v525, 2
        %v527 = vmax.f32 %v525, %v526
        %v528 = vrot.slane %v527, 1
        %v529 = vmax.f32 %v527, %v528
        %s530 = vtos %v529
        %v531 = vstv %s530
        %v532 = vld [vmem:[%s208 + $0x5] sm:$0x1]
        %v533 = vmax.f32 %v532, %v531
        %534 = vst.msk [vmem:[%s208 + $0x5] sm:$0x1] %vm278, %v533
        %s535 = sadd.s32 %s228, 48
        %s536 = sld [smem:[#allocation2 + %s535]]
        %s537 = sadd.s32 %s228, 49
        %s538 = sld [smem:[#allocation2 + %s537]]
        %s539 = sadd.s32 %s228, 50
        %s540 = sld [smem:[#allocation2 + %s539]]
        %s541 = sadd.s32 %s228, 51
        %s542 = sld [smem:[#allocation2 + %s541]]
        %s543 = sadd.s32 %s228, 52
        %s544 = sld [smem:[#allocation2 + %s543]]
        %s545 = sadd.s32 %s228, 53
        %s546 = sld [smem:[#allocation2 + %s545]]
        %v547 = vstv %s540
        %v548 = vmin.f32 %v218, %v547
        %v549 = vstv %s536
        %v550 = vmax.f32 %v214, %v549
        %v551 = vsub.f32 %v548, %v550
        %v552 = vadd.f32 %v551, 1.0
        %v553 = vmax.f32 %v552, 0.0
        %v554 = vstv %s542
        %v555 = vmin.f32 %v220, %v554
        %v556 = vstv %s538
        %v557 = vmax.f32 %v216, %v556
        %v558 = vsub.f32 %v555, %v557
        %v559 = vadd.f32 %v558, 1.0
        %v560 = vmax.f32 %v559, 0.0
        %v561 = vmul.f32 %v553, %v560
        %v562 = vstv %s544
        %v563 = vadd.f32 %v227, %v562
        %v564 = vsub.f32 %v563, %v561
        %v565 = vrcp.pop %v564
        %v566 = vmul.f32 %v561, %v565
        %p567 = scmp.gt.f32.partialorder %s546, 0.0
        %s568 = scalar_select %p567, 1, 0
        %v569 = vstv %s568
        %vm570 = vcmp.eq.s32.totalorder %v569, 1
        %v571 = vsel %vm570, 0.0, %v566
        %v572 = vsel %vm222, %v571, -1.0
        %573 = vmax.xlane.f32.xlu0 %v572
        %v574 = vpop.xlane.xlu0 %573
        %v575 = vrot.slane %v574, 4
        %v576 = vmax.f32 %v574, %v575
        %v577 = vrot.slane %v576, 2
        %v578 = vmax.f32 %v576, %v577
        %v579 = vrot.slane %v578, 1
        %v580 = vmax.f32 %v578, %v579
        %s581 = vtos %v580
        %v582 = vstv %s581
        %v583 = vld [vmem:[%s208 + $0x6] sm:$0x1]
        %v584 = vmax.f32 %v583, %v582
        %585 = vst.msk [vmem:[%s208 + $0x6] sm:$0x1] %vm278, %v584
        %s586 = sadd.s32 %s228, 56
        %s587 = sld [smem:[#allocation2 + %s586]]
        %s588 = sadd.s32 %s228, 57
        %s589 = sld [smem:[#allocation2 + %s588]]
        %s590 = sadd.s32 %s228, 58
        %s591 = sld [smem:[#allocation2 + %s590]]
        %s592 = sadd.s32 %s228, 59
        %s593 = sld [smem:[#allocation2 + %s592]]
        %s594 = sadd.s32 %s228, 60
        %s595 = sld [smem:[#allocation2 + %s594]]
        %s596 = sadd.s32 %s228, 61
        %s597 = sld [smem:[#allocation2 + %s596]]
        %v598 = vstv %s591
        %v599 = vmin.f32 %v218, %v598
        %v600 = vstv %s587
        %v601 = vmax.f32 %v214, %v600
        %v602 = vsub.f32 %v599, %v601
        %v603 = vadd.f32 %v602, 1.0
        %v604 = vmax.f32 %v603, 0.0
        %v605 = vstv %s593
        %v606 = vmin.f32 %v220, %v605
        %v607 = vstv %s589
        %v608 = vmax.f32 %v216, %v607
        %v609 = vsub.f32 %v606, %v608
        %v610 = vadd.f32 %v609, 1.0
        %v611 = vmax.f32 %v610, 0.0
        %v612 = vmul.f32 %v604, %v611
        %v613 = vstv %s595
        %v614 = vadd.f32 %v227, %v613
        %v615 = vsub.f32 %v614, %v612
        %v616 = vrcp.pop %v615
        %v617 = vmul.f32 %v612, %v616
        %p618 = scmp.gt.f32.partialorder %s597, 0.0
        %s619 = scalar_select %p618, 1, 0
        %v620 = vstv %s619
        %vm621 = vcmp.eq.s32.totalorder %v620, 1
        %v622 = vsel %vm621, 0.0, %v617
        %v623 = vsel %vm222, %v622, -1.0
        %624 = vmax.xlane.f32.xlu0 %v623
        %v625 = vpop.xlane.xlu0 %624
        %v626 = vrot.slane %v625, 4
        %v627 = vmax.f32 %v625, %v626
        %v628 = vrot.slane %v627, 2
        %v629 = vmax.f32 %v627, %v628
        %v630 = vrot.slane %v629, 1
        %v631 = vmax.f32 %v629, %v630
        %s632 = vtos %v631
        %v633 = vstv %s632
        %v634 = vld [vmem:[%s208 + $0x7] sm:$0x1]
        %v635 = vmax.f32 %v634, %v633
        %636 = vst.msk [vmem:[%s208 + $0x7] sm:$0x1] %vm278, %v635
        %p637 = scmp.lt.s32.totalorder %s19, 1
        %s638 = scalar_select %p637, %s19, 1
        %s639 = smul.addr %s638, 8
        %s640 = scalar_lea.vmem %s3, %s639
        // Predicated region
        $region41: #{anchor_target_forward.4} parent=31 // pred_check
          %p641 = pneg %p118
        $region42: #{anchor_target_forward.4} parent=31 // pred_check_branch
          %643 = sbr.rel (%p641) target = $region44
        $region43: #{anchor_target_forward.4} parent=31 // pred_region
          _
        $region44: #{anchor_target_forward.4} parent=31 // pred_fallthru
          _
      $region32: #{anchor_target_forward.4} parent=5 // pred_fallthru
        _
      %p644 = scmp.le.s32.totalorder 2, %s10
      // Predicated region
      $region45: #{anchor_target_forward.4} parent=5 // pred_check
        %p645 = pneg %p644
      $region46: #{anchor_target_forward.4} parent=5 // pred_check_branch
        %647 = sbr.rel (%p645) target = $region48
      $region47: #{anchor_target_forward.4} parent=5 // pred_region
        %s648 = ssub.s32 %s10, 2
        // Predicated region
        $region49: #{anchor_target_forward.4} parent=47 // pred_check
          %p649 = pneg %p124
        $region50: #{anchor_target_forward.4} parent=47 // pred_check_branch
          %651 = sbr.rel (%p649) target = $region52
        $region51: #{anchor_target_forward.4} parent=47 // pred_region
          %p652 = scmp.lt.s32.totalorder %s21, 1
          %s653 = scalar_select %p652, %s21, 1
          %s654 = smul.addr %s653, 8
          %s655 = scalar_lea.vmem %s3, %s654
        $region52: #{anchor_target_forward.4} parent=47 // pred_fallthru
          _
      $region48: #{anchor_target_forward.4} parent=5 // pred_fallthru
        _
    $region6: #{anchor_target_forward.4} parent=1 // loop_footer
      %s14 = sadd.s32 1, %s10
    $region7: #{anchor_target_forward.4} parent=1 // loop_footer_branch
      %9 = sbr.rel target = $region3
    $region8: #{anchor_target_forward.4} parent=1 // loop_exit
      _
    %656 = vsyncpa [#allocation3], 1
    %s657 = scalar_lea.sflag [#allocation3], 1
    %658 = vsyncpa %s657, 1

// kernel: anchor_target_forward.5
$region0: #{anchor_target_forward.5}
  #allocation0 [shape = 'u32[]', space=smem, size = 0x4, offset = 0x4, fixed_abs, tag = 'smem constant byte address 0x4 - core index']
  #allocation1 [shape = 'u32[144,128]{1,0:T(1,128)}', space=vmem, size = 0x12000, scoped, tag = 'internal scratch']
  %s0 = inlined_call_operand.vmem [shape: f32[2,64], index: 0, kind: input, shape index: {}]
  %s1 = inlined_call_operand.vmem [shape: f32[4,8,128], index: 1, kind: input, shape index: {}]
  %s2 = inlined_call_operand.vmem [shape: f32[8,128], index: 2, kind: input, shape index: {}]
  %s3 = inlined_call_operand.vmem [shape: f32[2,8,128], index: 3, kind: output, shape index: {0}]
  %s4 = inlined_call_operand.vmem [shape: f32[2,4,8,128], index: 4, kind: output, shape index: {1}]
  %5 = xla_tuple %s3, %s4
  %s6 = sld [smem:[#allocation0]]
  $region57: #{anchor_target_forward.5} parent=0
    _
  %s8 = ssub.s32 1, %s6
  %s9 = scalar_select 0, %s8, %s6
  $region1: #{anchor_target_forward.5} parent=0
    #allocation2 [shape = 'u8[1024]{0}', space=smem, size = 0x400, scoped, tag = 'input window, operand 0, single buffered']
    #allocation3 [shape = 's32[2]{0}', space=sflag, size = 0x8, scoped, tag = 'scoped memory for anchor_target_forward.5']
    %10 = vsyncpa [#allocation3], 0
    loop: start=0, step=1, limit=4
    $region2: #{anchor_target_forward.5} parent=1 // loop_pre_header
      _
    $region3: #{anchor_target_forward.5} parent=1 // loop_header
      %s12 = sphi 0, %s16
      %p13 = scmp.ge.s32.totalorder %s12, 4
      %s19 = sphi 0, %s31
      %s20 = sphi 0, %s27
      %s21 = sphi 0, %s19
      %s22 = sphi 0, %s20
      %s23 = sphi 0, %s21
      %s24 = sphi 0, %s22
      %s32 = sphi 0, %s32
      %s34 = sphi 0, %s32
      %s35 = sphi 0, %s34
      %s49 = sphi 0, %s35
      %s55 = sphi 0, %s57
      %s58 = sphi 0, %s55
      %s59 = sphi 0, %s58
      %s75 = sphi 0, %s59
      %s81 = sphi 0, %s83
      %s84 = sphi 0, %s81
      %s85 = sphi 0, %s84
      %s101 = sphi 0, %s85
      %s109 = sphi 0, %s111
      %s112 = sphi 0, %s109
      %s113 = sphi 0, %s112
      %s129 = sphi 0, %s113
      %s137 = sphi 0, %s139
      %s140 = sphi 0, %s137
      %s141 = sphi 0, %s140
      %s157 = sphi 0, %s141
    $region4: #{anchor_target_forward.5} parent=1 // loop_header_branch
      %15 = sbr.rel (%p13) target = $region8
    $region5: #{anchor_target_forward.5} parent=1 // loop_body
      %s17 = ssub.s32 %s12, 1
      %s18 = ssub.s32 %s12, 2
      %s25 = sadd.s32 1, %s20
      %p26 = scmp.ge.s32.totalorder %s25, 1
      %s27 = scalar_select %p26, 0, %s25
      %s28 = sadd.s32 1, %s19
      %s29 = scalar_select %p26, %s28, %s19
      %p30 = scmp.ge.s32.totalorder %s29, 2
      %s31 = scalar_select %p30, 0, %s29
      %s33 = sadd.s32 %s32, 1
      %p36 = scmp.eq.s32.totalorder %s12, 1
      %p37 = scmp.ne.s32.totalorder %s32, %s34
      %p38 = scmp.eq.s32.totalorder %s12, 0
      %p39 = por %p37, %p38
      %p40 = scmp.ne.s32.totalorder %s32, %s34
      %p41 = scmp.eq.s32.totalorder %s17, 1
      %p42 = por %p40, %p41
      %p43 = scmp.ne.s32.totalorder %s34, %s35
      %p44 = scmp.eq.s32.totalorder %s17, 0
      %p45 = por %p43, %p44
      %p46 = scmp.ne.s32.totalorder %s34, %s35
      %p47 = scmp.eq.s32.totalorder %s18, 1
      %p48 = por %p46, %p47
      %p50 = scmp.ne.s32.totalorder %s35, %s49
      %p51 = scmp.eq.s32.totalorder %s18, 0
      %p52 = por %p50, %p51
      %s53 = ssub.s32 %s20, %s27
      %p54 = scmp.eq.s32.totalorder %s53, 0
      %s56 = sadd.s32 %s55, 1
      %s57 = scalar_select %p54, %s55, %s56
      %p60 = pneg %p54
      %p61 = scmp.eq.s32.totalorder %s12, 1
      %p62 = por %p60, %p61
      %p63 = scmp.ne.s32.totalorder %s55, %s58
      %p64 = scmp.eq.s32.totalorder %s12, 0
      %p65 = por %p63, %p64
      %p66 = scmp.ne.s32.totalorder %s55, %s58
      %p67 = scmp.eq.s32.totalorder %s17, 1
      %p68 = por %p66, %p67
      %p69 = scmp.ne.s32.totalorder %s58, %s59
      %p70 = scmp.eq.s32.totalorder %s17, 0
      %p71 = por %p69, %p70
      %p72 = scmp.ne.s32.totalorder %s58, %s59
      %p73 = scmp.eq.s32.totalorder %s18, 1
      %p74 = por %p72, %p73
      %p76 = scmp.ne.s32.totalorder %s59, %s75
      %p77 = scmp.eq.s32.totalorder %s18, 0
      %p78 = por %p76, %p77
      %s79 = ssub.s32 %s20, %s27
      %p80 = scmp.eq.s32.totalorder %s79, 0
      %s82 = sadd.s32 %s81, 1
      %s83 = scalar_select %p80, %s81, %s82
      %p86 = pneg %p80
      %p87 = scmp.eq.s32.totalorder %s12, 1
      %p88 = por %p86, %p87
      %p89 = scmp.ne.s32.totalorder %s81, %s84
      %p90 = scmp.eq.s32.totalorder %s12, 0
      %p91 = por %p89, %p90
      %p92 = scmp.ne.s32.totalorder %s81, %s84
      %p93 = scmp.eq.s32.totalorder %s17, 1
      %p94 = por %p92, %p93
      %p95 = scmp.ne.s32.totalorder %s84, %s85
      %p96 = scmp.eq.s32.totalorder %s17, 0
      %p97 = por %p95, %p96
      %p98 = scmp.ne.s32.totalorder %s84, %s85
      %p99 = scmp.eq.s32.totalorder %s18, 1
      %p100 = por %p98, %p99
      %p102 = scmp.ne.s32.totalorder %s85, %s101
      %p103 = scmp.eq.s32.totalorder %s18, 0
      %p104 = por %p102, %p103
      %s105 = ssub.s32 %s19, %s31
      %s106 = ssub.s32 %s20, %s27
      %s107 = sor.u32 %s105, %s106
      %p108 = scmp.eq.s32.totalorder %s107, 0
      %s110 = sadd.s32 %s109, 1
      %s111 = scalar_select %p108, %s109, %s110
      %p114 = pneg %p108
      %p115 = scmp.eq.s32.totalorder %s12, 1
      %p116 = por %p114, %p115
      %p117 = scmp.ne.s32.totalorder %s109, %s112
      %p118 = scmp.eq.s32.totalorder %s12, 0
      %p119 = por %p117, %p118
      %p120 = scmp.ne.s32.totalorder %s109, %s112
      %p121 = scmp.eq.s32.totalorder %s17, 1
      %p122 = por %p120, %p121
      %p123 = scmp.ne.s32.totalorder %s112, %s113
      %p124 = scmp.eq.s32.totalorder %s17, 0
      %p125 = por %p123, %p124
      %p126 = scmp.ne.s32.totalorder %s112, %s113
      %p127 = scmp.eq.s32.totalorder %s18, 1
      %p128 = por %p126, %p127
      %p130 = scmp.ne.s32.totalorder %s113, %s129
      %p131 = scmp.eq.s32.totalorder %s18, 0
      %p132 = por %p130, %p131
      %s133 = ssub.s32 %s19, %s31
      %s134 = ssub.s32 %s20, %s27
      %s135 = sor.u32 %s133, %s134
      %p136 = scmp.eq.s32.totalorder %s135, 0
      %s138 = sadd.s32 %s137, 1
      %s139 = scalar_select %p136, %s137, %s138
      %p142 = pneg %p136
      %p143 = scmp.eq.s32.totalorder %s12, 1
      %p144 = por %p142, %p143
      %p145 = scmp.ne.s32.totalorder %s137, %s140
      %p146 = scmp.eq.s32.totalorder %s12, 0
      %p147 = por %p145, %p146
      %p148 = scmp.ne.s32.totalorder %s137, %s140
      %p149 = scmp.eq.s32.totalorder %s17, 1
      %p150 = por %p148, %p149
      %p151 = scmp.ne.s32.totalorder %s140, %s141
      %p152 = scmp.eq.s32.totalorder %s17, 0
      %p153 = por %p151, %p152
      %p154 = scmp.ne.s32.totalorder %s140, %s141
      %p155 = scmp.eq.s32.totalorder %s18, 1
      %p156 = por %p154, %p155
      %p158 = scmp.ne.s32.totalorder %s141, %s157
      %p159 = scmp.eq.s32.totalorder %s18, 0
      %p160 = por %p158, %p159
      %p161 = scmp.le.s32.totalorder 1, %s12
      %p162 = scmp.lt.s32.totalorder %s12, 3
      %p163 = pnand %p161, %p162
      %p164 = pneg %p163
      // Predicated region
      $region9: #{anchor_target_forward.5} parent=5 // pred_check
        _
      $region10: #{anchor_target_forward.5} parent=5 // pred_check_branch
        %166 = sbr.rel (%p163) target = $region12
      $region11: #{anchor_target_forward.5} parent=5 // pred_region
        %s167 = ssub.s32 %s12, 1
        // Predicated region
        $region13: #{anchor_target_forward.5} parent=11 // pred_check
          %p168 = pneg %p45
        $region14: #{anchor_target_forward.5} parent=11 // pred_check_branch
          %170 = sbr.rel (%p168) target = $region16
        $region15: #{anchor_target_forward.5} parent=11 // pred_region
          %s172 = ssub.s32 32, 32
          %173 = vsyncadd [#allocation3], %s172
          %s175 = sshll.u32 %s0, 4
          %s176 = int_to_ptr.vmem [resolvable:$true] %s175
          %178 = dma.vmem_to_smem %s176, 32, [#allocation2], [#allocation3]
        $region16: #{anchor_target_forward.5} parent=11 // pred_fallthru
          _
        // Predicated region
        $region17: #{anchor_target_forward.5} parent=11 // pred_check
          %p179 = pneg %p71
        $region18: #{anchor_target_forward.5} parent=11 // pred_check_branch
          %181 = sbr.rel (%p179) target = $region20
        $region19: #{anchor_target_forward.5} parent=11 // pred_region
          %p182 = scmp.lt.s32.totalorder %s22, 0
          %s183 = scalar_select %p182, %s22, 0
          %s184 = smul.addr %s183, 8
          %s185 = scalar_lea.vmem %s1, %s184
        $region20: #{anchor_target_forward.5} parent=11 // pred_fallthru
          _
        // Predicated region
        $region21: #{anchor_target_forward.5} parent=11 // pred_check
          %p186 = pneg %p97
        $region22: #{anchor_target_forward.5} parent=11 // pred_check_branch
          %188 = sbr.rel (%p186) target = $region24
        $region23: #{anchor_target_forward.5} parent=11 // pred_region
          %p189 = scmp.lt.s32.totalorder %s22, 0
          %s190 = scalar_select %p189, %s22, 0
          %s191 = smul.addr %s190, 8
          %s192 = scalar_lea.vmem %s2, %s191
        $region24: #{anchor_target_forward.5} parent=11 // pred_fallthru
          _
      $region12: #{anchor_target_forward.5} parent=5 // pred_fallthru
        _
      %p193 = scmp.lt.s32.totalorder %s12, 2
      // Predicated region
      $region25: #{anchor_target_forward.5} parent=5 // pred_check
        %p194 = pneg %p193
      $region26: #{anchor_target_forward.5} parent=5 // pred_check_branch
        %196 = sbr.rel (%p194) target = $region28
      $region27: #{anchor_target_forward.5} parent=5 // pred_region
        _
      $region28: #{anchor_target_forward.5} parent=5 // pred_fallthru
        _
      %p197 = scmp.le.s32.totalorder 1, %s12
      %p198 = scmp.lt.s32.totalorder %s12, 3
      %p199 = pnand %p197, %p198
      %p200 = pneg %p199
      // Predicated region
      $region29: #{anchor_target_forward.5} parent=5 // pred_check
        _
      $region30: #{anchor_target_forward.5} parent=5 // pred_check_branch
        %202 = sbr.rel (%p199) target = $region32
      $region31: #{anchor_target_forward.5} parent=5 // pred_region
        %s203 = ssub.s32 %s12, 1
        // Predicated region
        $region33: #{anchor_target_forward.5} parent=31 // pred_check
          %p204 = pneg %p45
        $region34: #{anchor_target_forward.5} parent=31 // pred_check_branch
          %206 = sbr.rel (%p204) target = $region36
        $region35: #{anchor_target_forward.5} parent=31 // pred_region
          %207 = dma.done [#allocation3], 32
        $region36: #{anchor_target_forward.5} parent=31 // pred_fallthru
          _
        %208 = sfence
        %p209 = pneg %p45
        %p210 = pneg %p42
        %p211 = scmp.lt.s32.totalorder %s22, 0
        %s212 = scalar_select %p211, %s22, 0
        %s213 = smul.addr %s212, 8
        %s214 = scalar_lea.vmem %s1, %s213
        %p215 = pneg %p71
        %p216 = pneg %p68
        %p217 = scmp.lt.s32.totalorder %s22, 0
        %s218 = scalar_select %p217, %s22, 0
        %s219 = smul.addr %s218, 8
        %s220 = scalar_lea.vmem %s2, %s219
        %p221 = pneg %p97
        %p222 = pneg %p94
        %p223 = pneg %p125
        %p224 = pneg %p122
        %p225 = scmp.lt.s32.totalorder %s21, 1
        %s226 = scalar_select %p225, %s21, 1
        %p227 = scmp.lt.s32.totalorder %s22, 0
        %s228 = scalar_select %p227, %s22, 0
        %s229 = sadd.s32 %s228, %s226
        %s230 = smul.addr %s229, 8
        %s231 = scalar_lea.vmem %s3, %s230
        %p232 = pneg %p153
        %p233 = pneg %p150
        %p234 = scmp.lt.s32.totalorder %s21, 1
        %s235 = scalar_select %p234, %s21, 1
        %p236 = scmp.lt.s32.totalorder %s22, 0
        %s237 = scalar_select %p236, %s22, 0
        %s238 = smul.addr %s235, 4
        %s239 = sadd.s32 %s237, %s238
        %s240 = smul.addr %s239, 8
        %s241 = scalar_lea.vmem %s4, %s240
        %p242 = scmp.lt.s32.totalorder %s22, 0
        %s243 = scalar_select %p242, %s22, 0
        %s244 = smul.addr %s243, 8
        %s245 = scalar_lea.vmem %s1, %s244
        %p246 = scmp.lt.s32.totalorder %s22, 0
        %s247 = scalar_select %p246, %s22, 0
        %s248 = smul.addr %s247, 8
        %s249 = scalar_lea.vmem %s2, %s248
        %p250 = scmp.lt.s32.totalorder %s21, 1
        %s251 = scalar_select %p250, %s21, 1
        %p252 = scmp.lt.s32.totalorder %s22, 0
        %s253 = scalar_select %p252, %s22, 0
        %s254 = sadd.s32 %s253, %s251
        %s255 = smul.addr %s254, 8
        %s256 = scalar_lea.vmem %s3, %s255
        %p257 = scmp.lt.s32.totalorder %s21, 1
        %s258 = scalar_select %p257, %s21, 1
        %p259 = scmp.lt.s32.totalorder %s22, 0
        %s260 = scalar_select %p259, %s22, 0
        %s261 = smul.addr %s258, 4
        %s262 = sadd.s32 %s260, %s261
        %s263 = smul.addr %s262, 8
        %s264 = scalar_lea.vmem %s4, %s263
        %v265 = vld [vmem:[%s245] sm:$0xff]
        %s266 = scalar_lea.vmem %s245, 8
        %v267 = vld [vmem:[%s266] sm:$0xff]
        %s268 = scalar_lea.vmem %s245, 16
        %v269 = vld [vmem:[%s268] sm:$0xff]
        %s270 = scalar_lea.vmem %s245, 24
        %v271 = vld [vmem:[%s270] sm:$0xff]
        %v272 = vld [vmem:[%s249] sm:$0xff]
        %vm273 = vcmp.gt.f32.partialorder %v272, 0.0
        %v274 = vsub.f32 %v269, %v265
        %v275 = vadd.f32 %v274, 1.0
        %v276 = vsub.f32 %v271, %v267
        %v277 = vadd.f32 %v276, 1.0
        %v278 = vmul.f32 %v275, %v277
        %s279 = smul.u32 %s21, 128
        %s280 = sld [smem:[#allocation2 + %s279]]
        %s281 = sadd.s32 %s279, 1
        %s282 = sld [smem:[#allocation2 + %s281]]
        %s283 = sadd.s32 %s279, 2
        %s284 = sld [smem:[#allocation2 + %s283]]
        %s285 = sadd.s32 %s279, 3
        %s286 = sld [smem:[#allocation2 + %s285]]
        %s287 = sadd.s32 %s279, 4
        %s288 = sld [smem:[#allocation2 + %s287]]
        %s289 = sadd.s32 %s279, 5
        %s290 = sld [smem:[#allocation2 + %s289]]
        %s291 = sadd.s32 %s279, 6
        %s292 = sld [smem:[#allocation2 + %s291]]
        %v293 = vstv %s284
        %v294 = vmin.f32 %v269, %v293
        %v295 = vstv %s280
        %v296 = vmax.f32 %v265, %v295
        %v297 = vsub.f32 %v294, %v296
        %v298 = vadd.f32 %v297, 1.0
        %v299 = vmax.f32 %v298, 0.0
        %v300 = vstv %s286
        %v301 = vmin.f32 %v271, %v300
        %v302 = vstv %s282
        %v303 = vmax.f32 %v267, %v302
        %v304 = vsub.f32 %v301, %v303
        %v305 = vadd.f32 %v304, 1.0
        %v306 = vmax.f32 %v305, 0.0
        %v307 = vmul.f32 %v299, %v306
        %v308 = vstv %s288
        %v309 = vadd.f32 %v278, %v308
        %v310 = vsub.f32 %v309, %v307
        %v311 = vrcp.pop %v310
        %v312 = vmul.f32 %v307, %v311
        %p313 = scmp.gt.f32.partialorder %s290, 0.0
        %s314 = scalar_select %p313, 1, 0
        %v315 = vstv %s314
        %vm316 = vcmp.eq.s32.totalorder %v315, 1
        %v317 = vsel %vm316, 0.0, %v312
        %v318 = vsel %vm273, %v317, -1.0
        %v319 = vstv %s292
        %vm320 = vcmp.eq.f32.partialorder %v318, %v319
        %s321 = sadd.s32 %s279, 8
        %s322 = sld [smem:[#allocation2 + %s321]]
        %s323 = sadd.s32 %s279, 9
        %s324 = sld [smem:[#allocation2 + %s323]]
        %s325 = sadd.s32 %s279, 10
        %s326 = sld [smem:[#allocation2 + %s325]]
        %s327 = sadd.s32 %s279, 11
        %s328 = sld [smem:[#allocation2 + %s327]]
        %s329 = sadd.s32 %s279, 12
        %s330 = sld [smem:[#allocation2 + %s329]]
        %s331 = sadd.s32 %s279, 13
        %s332 = sld [smem:[#allocation2 + %s331]]
        %s333 = sadd.s32 %s279, 14
        %s334 = sld [smem:[#allocation2 + %s333]]
        %v335 = vstv %s326
        %v336 = vmin.f32 %v269, %v335
        %v337 = vstv %s322
        %v338 = vmax.f32 %v265, %v337
        %v339 = vsub.f32 %v336, %v338
        %v340 = vadd.f32 %v339, 1.0
        %v341 = vmax.f32 %v340, 0.0
        %v342 = vstv %s328
        %v343 = vmin.f32 %v271, %v342
        %v344 = vstv %s324
        %v345 = vmax.f32 %v267, %v344
        %v346 = vsub.f32 %v343, %v345
        %v347 = vadd.f32 %v346, 1.0
        %v348 = vmax.f32 %v347, 0.0
        %v349 = vmul.f32 %v341, %v348
        %v350 = vstv %s330
        %v351 = vadd.f32 %v278, %v350
        %v352 = vsub.f32 %v351, %v349
        %v353 = vrcp.pop %v352
        %v354 = vmul.f32 %v349, %v353
        %p355 = scmp.gt.f32.partialorder %s332, 0.0
        %s356 = scalar_select %p355, 1, 0
        %v357 = vstv %s356
        %vm358 = vcmp.eq.s32.totalorder %v357, 1
        %v359 = vsel %vm358, 0.0, %v354
        %v360 = vsel %vm273, %v359, -1.0
        %v361 = vstv %s334
        %vm362 = vcmp.eq.f32.partialorder %v360, %v361
        %vm363 = vmor %vm320, %vm362
        %vm364 = vcmp.gt.f32.partialorder %v359, %v317
        %v365 = vsel %vm364, %v359, %v317
        %v366 = vsel %vm364, %v337, %v295
        %v367 = vsel %vm364, %v344, %v302
        %v368 = vsel %vm364, %v335, %v293
        %v369 = vsel %vm364, %v342, %v300
        %s370 = sadd.s32 %s279, 16
        %s371 = sld [smem:[#allocation2 + %s370]]
        %s372 = sadd.s32 %s279, 17
        %s373 = sld [smem:[#allocation2 + %s372]]
        %s374 = sadd.s32 %s279, 18
        %s375 = sld [smem:[#allocation2 + %s374]]
        %s376 = sadd.s32 %s279, 19
        %s377 = sld [smem:[#allocation2 + %s376]]
        %s378 = sadd.s32 %s279, 20
        %s379 = sld [smem:[#allocation2 + %s378]]
        %s380 = sadd.s32 %s279, 21
        %s381 = sld [smem:[#allocation2 + %s380]]
        %s382 = sadd.s32 %s279, 22
        %s383 = sld [smem:[#allocation2 + %s382]]
        %v384 = vstv %s375
        %v385 = vmin.f32 %v269, %v384
        %v386 = vstv %s371
        %v387 = vmax.f32 %v265, %v386
        %v388 = vsub.f32 %v385, %v387
        %v389 = vadd.f32 %v388, 1.0
        %v390 = vmax.f32 %v389, 0.0
        %v391 = vstv %s377
        %v392 = vmin.f32 %v271, %v391
        %v393 = vstv %s373
        %v394 = vmax.f32 %v267, %v393
        %v395 = vsub.f32 %v392, %v394
        %v396 = vadd.f32 %v395, 1.0
        %v397 = vmax.f32 %v396, 0.0
        %v398 = vmul.f32 %v390, %v397
        %v399 = vstv %s379
        %v400 = vadd.f32 %v278, %v399
        %v401 = vsub.f32 %v400, %v398
        %v402 = vrcp.pop %v401
        %v403 = vmul.f32 %v398, %v402
        %p404 = scmp.gt.f32.partialorder %s381, 0.0
        %s405 = scalar_select %p404, 1, 0
        %v406 = vstv %s405
        %vm407 = vcmp.eq.s32.totalorder %v406, 1
        %v408 = vsel %vm407, 0.0, %v403
        %v409 = vsel %vm273, %v408, -1.0
        %v410 = vstv %s383
        %vm411 = vcmp.eq.f32.partialorder %v409, %v410
        %vm412 = vmor %vm363, %vm411
        %vm413 = vcmp.gt.f32.partialorder %v408, %v365
        %v414 = vsel %vm413, %v408, %v365
        %v415 = vsel %vm413, %v386, %v366
        %v416 = vsel %vm413, %v393, %v367
        %v417 = vsel %vm413, %v384, %v368
        %v418 = vsel %vm413, %v391, %v369
        %s419 = sadd.s32 %s279, 24
        %s420 = sld [smem:[#allocation2 + %s419]]
        %s421 = sadd.s32 %s279, 25
        %s422 = sld [smem:[#allocation2 + %s421]]
        %s423 = sadd.s32 %s279, 26
        %s424 = sld [smem:[#allocation2 + %s423]]
        %s425 = sadd.s32 %s279, 27
        %s426 = sld [smem:[#allocation2 + %s425]]
        %s427 = sadd.s32 %s279, 28
        %s428 = sld [smem:[#allocation2 + %s427]]
        %s429 = sadd.s32 %s279, 29
        %s430 = sld [smem:[#allocation2 + %s429]]
        %s431 = sadd.s32 %s279, 30
        %s432 = sld [smem:[#allocation2 + %s431]]
        %v433 = vstv %s424
        %v434 = vmin.f32 %v269, %v433
        %v435 = vstv %s420
        %v436 = vmax.f32 %v265, %v435
        %v437 = vsub.f32 %v434, %v436
        %v438 = vadd.f32 %v437, 1.0
        %v439 = vmax.f32 %v438, 0.0
        %v440 = vstv %s426
        %v441 = vmin.f32 %v271, %v440
        %v442 = vstv %s422
        %v443 = vmax.f32 %v267, %v442
        %v444 = vsub.f32 %v441, %v443
        %v445 = vadd.f32 %v444, 1.0
        %v446 = vmax.f32 %v445, 0.0
        %v447 = vmul.f32 %v439, %v446
        %v448 = vstv %s428
        %v449 = vadd.f32 %v278, %v448
        %v450 = vsub.f32 %v449, %v447
        %v451 = vrcp.pop %v450
        %v452 = vmul.f32 %v447, %v451
        %p453 = scmp.gt.f32.partialorder %s430, 0.0
        %s454 = scalar_select %p453, 1, 0
        %v455 = vstv %s454
        %vm456 = vcmp.eq.s32.totalorder %v455, 1
        %v457 = vsel %vm456, 0.0, %v452
        %v458 = vsel %vm273, %v457, -1.0
        %v459 = vstv %s432
        %vm460 = vcmp.eq.f32.partialorder %v458, %v459
        %vm461 = vmor %vm412, %vm460
        %vm462 = vcmp.gt.f32.partialorder %v457, %v414
        %v463 = vsel %vm462, %v457, %v414
        %v464 = vsel %vm462, %v435, %v415
        %v465 = vsel %vm462, %v442, %v416
        %v466 = vsel %vm462, %v433, %v417
        %v467 = vsel %vm462, %v440, %v418
        %s468 = sadd.s32 %s279, 32
        %s469 = sld [smem:[#allocation2 + %s468]]
        %s470 = sadd.s32 %s279, 33
        %s471 = sld [smem:[#allocation2 + %s470]]
        %s472 = sadd.s32 %s279, 34
        %s473 = sld [smem:[#allocation2 + %s472]]
        %s474 = sadd.s32 %s279, 35
        %s475 = sld [smem:[#allocation2 + %s474]]
        %s476 = sadd.s32 %s279, 36
        %s477 = sld [smem:[#allocation2 + %s476]]
        %s478 = sadd.s32 %s279, 37
        %s479 = sld [smem:[#allocation2 + %s478]]
        %s480 = sadd.s32 %s279, 38
        %s481 = sld [smem:[#allocation2 + %s480]]
        %v482 = vstv %s473
        %v483 = vmin.f32 %v269, %v482
        %v484 = vstv %s469
        %v485 = vmax.f32 %v265, %v484
        %v486 = vsub.f32 %v483, %v485
        %v487 = vadd.f32 %v486, 1.0
        %v488 = vmax.f32 %v487, 0.0
        %v489 = vstv %s475
        %v490 = vmin.f32 %v271, %v489
        %v491 = vstv %s471
        %v492 = vmax.f32 %v267, %v491
        %v493 = vsub.f32 %v490, %v492
        %v494 = vadd.f32 %v493, 1.0
        %v495 = vmax.f32 %v494, 0.0
        %v496 = vmul.f32 %v488, %v495
        %v497 = vstv %s477
        %v498 = vadd.f32 %v278, %v497
        %v499 = vsub.f32 %v498, %v496
        %v500 = vrcp.pop %v499
        %v501 = vmul.f32 %v496, %v500
        %p502 = scmp.gt.f32.partialorder %s479, 0.0
        %s503 = scalar_select %p502, 1, 0
        %v504 = vstv %s503
        %vm505 = vcmp.eq.s32.totalorder %v504, 1
        %v506 = vsel %vm505, 0.0, %v501
        %v507 = vsel %vm273, %v506, -1.0
        %v508 = vstv %s481
        %vm509 = vcmp.eq.f32.partialorder %v507, %v508
        %vm510 = vmor %vm461, %vm509
        %vm511 = vcmp.gt.f32.partialorder %v506, %v463
        %v512 = vsel %vm511, %v506, %v463
        %v513 = vsel %vm511, %v484, %v464
        %v514 = vsel %vm511, %v491, %v465
        %v515 = vsel %vm511, %v482, %v466
        %v516 = vsel %vm511, %v489, %v467
        %s517 = sadd.s32 %s279, 40
        %s518 = sld [smem:[#allocation2 + %s517]]
        %s519 = sadd.s32 %s279, 41
        %s520 = sld [smem:[#allocation2 + %s519]]
        %s521 = sadd.s32 %s279, 42
        %s522 = sld [smem:[#allocation2 + %s521]]
        %s523 = sadd.s32 %s279, 43
        %s524 = sld [smem:[#allocation2 + %s523]]
        %s525 = sadd.s32 %s279, 44
        %s526 = sld [smem:[#allocation2 + %s525]]
        %s527 = sadd.s32 %s279, 45
        %s528 = sld [smem:[#allocation2 + %s527]]
        %s529 = sadd.s32 %s279, 46
        %s530 = sld [smem:[#allocation2 + %s529]]
        %v531 = vstv %s522
        %v532 = vmin.f32 %v269, %v531
        %v533 = vstv %s518
        %v534 = vmax.f32 %v265, %v533
        %v535 = vsub.f32 %v532, %v534
        %v536 = vadd.f32 %v535, 1.0
        %v537 = vmax.f32 %v536, 0.0
        %v538 = vstv %s524
        %v539 = vmin.f32 %v271, %v538
        %v540 = vstv %s520
        %v541 = vmax.f32 %v267, %v540
        %v542 = vsub.f32 %v539, %v541
        %v543 = vadd.f32 %v542, 1.0
        %v544 = vmax.f32 %v543, 0.0
        %v545 = vmul.f32 %v537, %v544
        %v546 = vstv %s526
        %v547 = vadd.f32 %v278, %v546
        %v548 = vsub.f32 %v547, %v545
        %v549 = vrcp.pop %v548
        %v550 = vmul.f32 %v545, %v549
        %p551 = scmp.gt.f32.partialorder %s528, 0.0
        %s552 = scalar_select %p551, 1, 0
        %v553 = vstv %s552
        %vm554 = vcmp.eq.s32.totalorder %v553, 1
        %v555 = vsel %vm554, 0.0, %v550
        %v556 = vsel %vm273, %v555, -1.0
        %v557 = vstv %s530
        %vm558 = vcmp.eq.f32.partialorder %v556, %v557
        %vm559 = vmor %vm510, %vm558
        %vm560 = vcmp.gt.f32.partialorder %v555, %v512
        %v561 = vsel %vm560, %v555, %v512
        %v562 = vsel %vm560, %v533, %v513
        %v563 = vsel %vm560, %v540, %v514
        %v564 = vsel %vm560, %v531, %v515
        %v565 = vsel %vm560, %v538, %v516
        %s566 = sadd.s32 %s279, 48
        %s567 = sld [smem:[#allocation2 + %s566]]
        %s568 = sadd.s32 %s279, 49
        %s569 = sld [smem:[#allocation2 + %s568]]
        %s570 = sadd.s32 %s279, 50
        %s571 = sld [smem:[#allocation2 + %s570]]
        %s572 = sadd.s32 %s279, 51
        %s573 = sld [smem:[#allocation2 + %s572]]
        %s574 = sadd.s32 %s279, 52
        %s575 = sld [smem:[#allocation2 + %s574]]
        %s576 = sadd.s32 %s279, 53
        %s577 = sld [smem:[#allocation2 + %s576]]
        %s578 = sadd.s32 %s279, 54
        %s579 = sld [smem:[#allocation2 + %s578]]
        %v580 = vstv %s571
        %v581 = vmin.f32 %v269, %v580
        %v582 = vstv %s567
        %v583 = vmax.f32 %v265, %v582
        %v584 = vsub.f32 %v581, %v583
        %v585 = vadd.f32 %v584, 1.0
        %v586 = vmax.f32 %v585, 0.0
        %v587 = vstv %s573
        %v588 = vmin.f32 %v271, %v587
        %v589 = vstv %s569
        %v590 = vmax.f32 %v267, %v589
        %v591 = vsub.f32 %v588, %v590
        %v592 = vadd.f32 %v591, 1.0
        %v593 = vmax.f32 %v592, 0.0
        %v594 = vmul.f32 %v586, %v593
        %v595 = vstv %s575
        %v596 = vadd.f32 %v278, %v595
        %v597 = vsub.f32 %v596, %v594
        %v598 = vrcp.pop %v597
        %v599 = vmul.f32 %v594, %v598
        %p600 = scmp.gt.f32.partialorder %s577, 0.0
        %s601 = scalar_select %p600, 1, 0
        %v602 = vstv %s601
        %vm603 = vcmp.eq.s32.totalorder %v602, 1
        %v604 = vsel %vm603, 0.0, %v599
        %v605 = vsel %vm273, %v604, -1.0
        %v606 = vstv %s579
        %vm607 = vcmp.eq.f32.partialorder %v605, %v606
        %vm608 = vmor %vm559, %vm607
        %vm609 = vcmp.gt.f32.partialorder %v604, %v561
        %v610 = vsel %vm609, %v604, %v561
        %v611 = vsel %vm609, %v582, %v562
        %v612 = vsel %vm609, %v589, %v563
        %v613 = vsel %vm609, %v580, %v564
        %v614 = vsel %vm609, %v587, %v565
        %s615 = sadd.s32 %s279, 56
        %s616 = sld [smem:[#allocation2 + %s615]]
        %s617 = sadd.s32 %s279, 57
        %s618 = sld [smem:[#allocation2 + %s617]]
        %s619 = sadd.s32 %s279, 58
        %s620 = sld [smem:[#allocation2 + %s619]]
        %s621 = sadd.s32 %s279, 59
        %s622 = sld [smem:[#allocation2 + %s621]]
        %s623 = sadd.s32 %s279, 60
        %s624 = sld [smem:[#allocation2 + %s623]]
        %s625 = sadd.s32 %s279, 61
        %s626 = sld [smem:[#allocation2 + %s625]]
        %s627 = sadd.s32 %s279, 62
        %s628 = sld [smem:[#allocation2 + %s627]]
        %v629 = vstv %s620
        %v630 = vmin.f32 %v269, %v629
        %v631 = vstv %s616
        %v632 = vmax.f32 %v265, %v631
        %v633 = vsub.f32 %v630, %v632
        %v634 = vadd.f32 %v633, 1.0
        %v635 = vmax.f32 %v634, 0.0
        %v636 = vstv %s622
        %v637 = vmin.f32 %v271, %v636
        %v638 = vstv %s618
        %v639 = vmax.f32 %v267, %v638
        %v640 = vsub.f32 %v637, %v639
        %v641 = vadd.f32 %v640, 1.0
        %v642 = vmax.f32 %v641, 0.0
        %v643 = vmul.f32 %v635, %v642
        %v644 = vstv %s624
        %v645 = vadd.f32 %v278, %v644
        %v646 = vsub.f32 %v645, %v643
        %v647 = vrcp.pop %v646
        %v648 = vmul.f32 %v643, %v647
        %p649 = scmp.gt.f32.partialorder %s626, 0.0
        %s650 = scalar_select %p649, 1, 0
        %v651 = vstv %s650
        %vm652 = vcmp.eq.s32.totalorder %v651, 1
        %v653 = vsel %vm652, 0.0, %v648
        %v654 = vsel %vm273, %v653, -1.0
        %v655 = vstv %s628
        %vm656 = vcmp.eq.f32.partialorder %v654, %v655
        %vm657 = vmor %vm608, %vm656
        %vm658 = vcmp.gt.f32.partialorder %v653, %v610
        %v659 = vsel %vm658, %v653, %v610
        %v660 = vsel %vm658, %v631, %v611
        %v661 = vsel %vm658, %v638, %v612
        %v662 = vsel %vm658, %v629, %v613
        %v663 = vsel %vm658, %v636, %v614
        %vm664 = vcmp.lt.f32.partialorder %v659, 0.3
        %v665 = vsel %vm664, 0.0, -1.0
        %v666 = vsel %vm657, 1.0, %v665
        %vm667 = vcmp.ge.f32.partialorder %v659, 0.7
        %v668 = vsel %vm667, 1.0, %v666
        %v669 = vsel %vm273, %v668, -1.0
        %670 = vst [vmem:[%s256] sm:$0xff] %v669
        %v671 = vrcp.pop %v275
        %v672 = vrcp.pop %v277
        %v673 = vmul.f32 %v275, 0.5
        %v674 = vadd.f32 %v265, %v673
        %v675 = vmul.f32 %v277, 0.5
        %v676 = vadd.f32 %v267, %v675
        %v677 = vsub.f32 %v662, %v660
        %v678 = vadd.f32 %v677, 1.0
        %v679 = vsub.f32 %v663, %v661
        %v680 = vadd.f32 %v679, 1.0
        %v681 = vmul.f32 %v678, 0.5
        %v682 = vadd.f32 %v660, %v681
        %v683 = vmul.f32 %v680, 0.5
        %v684 = vadd.f32 %v661, %v683
        %v685 = vsub.f32 %v682, %v674
        %v686 = vmul.f32 %v685, %v671
        %v687 = vsub.f32 %v684, %v676
        %v688 = vmul.f32 %v687, %v672
        %v689 = vmul.f32 %v678, %v671
        %v690 = vlog2.pop %v689
        %v691 = vmul.f32 %v690, 0.6931472
        %v692 = vmul.f32 %v680, %v672
        %v693 = vlog2.pop %v692
        %v694 = vmul.f32 %v693, 0.6931472
        %v695 = vsel %vm273, %v686, 0.0
        %696 = vst [vmem:[%s264] sm:$0xff] %v695
        %v697 = vsel %vm273, %v688, 0.0
        %s698 = scalar_lea.vmem %s264, 8
        %699 = vst [vmem:[%s698] sm:$0xff] %v697
        %v700 = vsel %vm273, %v691, 0.0
        %s701 = scalar_lea.vmem %s264, 16
        %702 = vst [vmem:[%s701] sm:$0xff] %v700
        %v703 = vsel %vm273, %v694, 0.0
        %s704 = scalar_lea.vmem %s264, 24
        %705 = vst [vmem:[%s704] sm:$0xff] %v703
        %p706 = scmp.lt.s32.totalorder %s21, 1
        %s707 = scalar_select %p706, %s21, 1
        %p708 = scmp.lt.s32.totalorder %s22, 0
        %s709 = scalar_select %p708, %s22, 0
        %s710 = sadd.s32 %s709, %s707
        %s711 = smul.addr %s710, 8
        %s712 = scalar_lea.vmem %s3, %s711
        %p713 = scmp.lt.s32.totalorder %s21, 1
        %s714 = scalar_select %p713, %s21, 1
        %p715 = scmp.lt.s32.totalorder %s22, 0
        %s716 = scalar_select %p715, %s22, 0
        %s717 = smul.addr %s714, 4
        %s718 = sadd.s32 %s716, %s717
        %s719 = smul.addr %s718, 8
        %s720 = scalar_lea.vmem %s4, %s719
        // Predicated region
        $region37: #{anchor_target_forward.5} parent=31 // pred_check
          %p721 = pneg %p122
        $region38: #{anchor_target_forward.5} parent=31 // pred_check_branch
          %723 = sbr.rel (%p721) target = $region40
        $region39: #{anchor_target_forward.5} parent=31 // pred_region
          _
        $region40: #{anchor_target_forward.5} parent=31 // pred_fallthru
          _
        // Predicated region
        $region41: #{anchor_target_forward.5} parent=31 // pred_check
          %p724 = pneg %p150
        $region42: #{anchor_target_forward.5} parent=31 // pred_check_branch
          %726 = sbr.rel (%p724) target = $region44
        $region43: #{anchor_target_forward.5} parent=31 // pred_region
          _
        $region44: #{anchor_target_forward.5} parent=31 // pred_fallthru
          _
      $region32: #{anchor_target_forward.5} parent=5 // pred_fallthru
        _
      %p727 = scmp.le.s32.totalorder 2, %s12
      // Predicated region
      $region45: #{anchor_target_forward.5} parent=5 // pred_check
        %p728 = pneg %p727
      $region46: #{anchor_target_forward.5} parent=5 // pred_check_branch
        %730 = sbr.rel (%p728) target = $region48
      $region47: #{anchor_target_forward.5} parent=5 // pred_region
        %s731 = ssub.s32 %s12, 2
        // Predicated region
        $region49: #{anchor_target_forward.5} parent=47 // pred_check
          %p732 = pneg %p128
        $region50: #{anchor_target_forward.5} parent=47 // pred_check_branch
          %734 = sbr.rel (%p732) target = $region52
        $region51: #{anchor_target_forward.5} parent=47 // pred_region
          %p735 = scmp.lt.s32.totalorder %s23, 1
          %s736 = scalar_select %p735, %s23, 1
          %p737 = scmp.lt.s32.totalorder %s24, 0
          %s738 = scalar_select %p737, %s24, 0
          %s739 = sadd.s32 %s738, %s736
          %s740 = smul.addr %s739, 8
          %s741 = scalar_lea.vmem %s3, %s740
        $region52: #{anchor_target_forward.5} parent=47 // pred_fallthru
          _
        // Predicated region
        $region53: #{anchor_target_forward.5} parent=47 // pred_check
          %p742 = pneg %p156
        $region54: #{anchor_target_forward.5} parent=47 // pred_check_branch
          %744 = sbr.rel (%p742) target = $region56
        $region55: #{anchor_target_forward.5} parent=47 // pred_region
          %p745 = scmp.lt.s32.totalorder %s23, 1
          %s746 = scalar_select %p745, %s23, 1
          %p747 = scmp.lt.s32.totalorder %s24, 0
          %s748 = scalar_select %p747, %s24, 0
          %s749 = smul.addr %s746, 4
          %s750 = sadd.s32 %s748, %s749
          %s751 = smul.addr %s750, 8
          %s752 = scalar_lea.vmem %s4, %s751
        $region56: #{anchor_target_forward.5} parent=47 // pred_fallthru
          _
      $region48: #{anchor_target_forward.5} parent=5 // pred_fallthru
        _
    $region6: #{anchor_target_forward.5} parent=1 // loop_footer
      %s16 = sadd.s32 1, %s12
    $region7: #{anchor_target_forward.5} parent=1 // loop_footer_branch
      %11 = sbr.rel target = $region3
    $region8: #{anchor_target_forward.5} parent=1 // loop_exit
      _
    %753 = vsyncpa [#allocation3], 1
    %s754 = scalar_lea.sflag [#allocation3], 1
    %755 = vsyncpa %s754, 1

</llo_original>
